<compile_context>
chip_gen: v7x
topology: tpu7x:2x2x1
jax: 0.10.0
libtpu: 0.0.40
codegen_flags: <defaults>
</compile_context>

<pallas_src>
import functools
import math

import jax
import jax.numpy as jnp
from jax.experimental import pallas as pl
from jax.experimental.pallas import tpu as pltpu

# ------------------------- model config (small) -------------------------
VOCAB = 50
MAX_POS = 16
HIDDEN = 32
N_HEADS = 4
HEAD_DIM = HIDDEN // N_HEADS
FFN = 4 * HIDDEN          # 128
N_LAYERS = 2
N_LABELS = 3
LN_EPS = 1e-12            # DistilBERT LayerNorm eps
NEG_INF = float(jnp.finfo(jnp.float32).min)   # HF masked_fill value (f32 only)


# ============================ kernel helpers ============================

def _layernorm(x, g, b):
    mean = jnp.mean(x, axis=-1, keepdims=True)
    var = jnp.mean(jnp.square(x - mean), axis=-1, keepdims=True)
    return (x - mean) * jax.lax.rsqrt(var + LN_EPS) * g + b


def _gelu_erf(x):
    # Exact erf-GELU, matching HF DistilBERT ("gelu").
    return 0.5 * x * (1.0 + jax.lax.erf(x * (1.0 / math.sqrt(2.0))))


# ============================ fused kernel ==============================

def _distilbert_kernel(x_ref, bias_ref,
                       emb_g_ref, emb_b_ref,
                       qkv_w_ref, qkv_b_ref,
                       o_w_ref, o_b_ref,
                       sa_g_ref, sa_b_ref,
                       f1_w_ref, f1_b_ref,
                       f2_w_ref, f2_b_ref,
                       out_g_ref, out_b_ref,
                       pre_w_ref, pre_b_ref,
                       cls_w_ref, cls_b_ref,
                       logits_ref,
                       ctx_scr,
                       *, batch, seq):
    """Whole DistilBERT-for-seq-classification forward, VMEM resident.

    x_ref    : (B*S, H)   word + position embedding sum (pre-LayerNorm)
    bias_ref : (B, 1, S)  additive key-padding bias (0 = attend, finfo.min = masked)
    ctx_scr  : (B*S, H)   VMEM scratch collecting per-head context vectors
    """
    f32 = jnp.float32
    B, S, H = batch, seq, HIDDEN
    x = x_ref[...].astype(f32)                                    # (B*S, H)

    # Additive mask bias: broadcast ONCE (hoisted out of head/layer loops).
    mask_bias = jnp.broadcast_to(bias_ref[...].astype(f32), (B, S, S))

    # --- embedding LayerNorm (dropout is identity in eval) ---
    x = _layernorm(x, emb_g_ref[...], emb_b_ref[...])

    # --- transformer layers (static unroll, everything stays in VMEM) ---
    # TODO(synk): at real DistilBERT sizes (6 layers, H=768) the layer loop
    # should become an "arbitrary" grid axis with per-layer weight BlockSpecs
    # (double-buffered DMA); the toy weights fit VMEM so they stay resident.
    for li in range(N_LAYERS):
        # Fused QKV projection. The 1/sqrt(head_dim) scale is folded into the
        # Q columns of qkv_w at init (q bias is zero, so no bias scaling needed).
        qkv = jnp.dot(x, qkv_w_ref[li], preferred_element_type=f32) + qkv_b_ref[li]
        q3 = qkv[:, 0 * H:1 * H].reshape(B, S, H)                 # (B, S, H)
        k3 = qkv[:, 1 * H:2 * H].reshape(B, S, H)
        v3 = qkv[:, 2 * H:3 * H].reshape(B, S, H)

        # Per-head attention, batched over the batch dim only (per-sequence
        # (S, S) scores — no cross-batch work).
        for h in range(N_HEADS):
            lo = h * HEAD_DIM
            hi = lo + HEAD_DIM
            q_h = q3[:, :, lo:hi]                                 # (B, S, dh)
            k_h = k3[:, :, lo:hi]
            v_h = v3[:, :, lo:hi]

            s = jnp.einsum('bqd,bkd->bqk', q_h, k_h,
                           preferred_element_type=f32)            # (B, S, S)
            s = s + mask_bias                                     # additive key mask
            s = s - jnp.max(s, axis=-1, keepdims=True)
            p = jnp.exp(s)
            p = p / jnp.sum(p, axis=-1, keepdims=True)            # exact normalization

            ctx_h = jnp.einsum('bqk,bkd->bqd', p, v_h,
                               preferred_element_type=f32)        # (B, S, dh)
            # Static lane-offset write: assembles concat(ctx_h) without a
            # transpose; enables ONE (B*S,H)@(H,H) output projection below.
            ctx_scr[:, lo:hi] = ctx_h.reshape(B * S, HEAD_DIM)

        attn = jnp.dot(ctx_scr[...], o_w_ref[li],
                       preferred_element_type=f32) + o_b_ref[li]
        x = _layernorm(attn + x, sa_g_ref[li], sa_b_ref[li])

        h1 = jnp.dot(x, f1_w_ref[li], preferred_element_type=f32) + f1_b_ref[li]
        h1 = _gelu_erf(h1)
        h2 = jnp.dot(h1, f2_w_ref[li], preferred_element_type=f32) + f2_b_ref[li]
        x = _layernorm(h2 + x, out_g_ref[li], out_b_ref[li])

    # --- pooling head: hidden_state[:, 0] (CLS rows at static index b*S) ---
    pooled = x.reshape(B, S, H)[:, 0, :]                          # (B, H)
    pooled = jnp.dot(pooled, pre_w_ref[...], preferred_element_type=f32) + pre_b_ref[...]
    pooled = jnp.maximum(pooled, 0.0)                             # ReLU
    logits = jnp.dot(pooled, cls_w_ref[...], preferred_element_type=f32) + cls_b_ref[...]
    logits_ref[...] = logits.astype(logits_ref.dtype)


# ======================== parameter construction =======================

def init_params(key):
    std = 0.02  # DistilBERT initializer_range

    def nrm(k, shape):
        return (std * jax.random.normal(k, shape)).astype(jnp.float32)

    keys = jax.random.split(key, 4 + N_LAYERS)
    q_scale = 1.0 / math.sqrt(HEAD_DIM)   # folded into Q weight (q bias is zero)

    qkv_w, o_w, f1_w, f2_w = [], [], [], []
    for li in range(N_LAYERS):
        lk = jax.random.split(keys[4 + li], 6)
        q = nrm(lk[0], (HIDDEN, HIDDEN)) * q_scale
        k = nrm(lk[1], (HIDDEN, HIDDEN))
        v = nrm(lk[2], (HIDDEN, HIDDEN))
        qkv_w.append(jnp.concatenate([q, k, v], axis=1))     # (H, 3H) fused QKV
        o_w.append(nrm(lk[3], (HIDDEN, HIDDEN)))
        f1_w.append(nrm(lk[4], (HIDDEN, FFN)))
        f2_w.append(nrm(lk[5], (FFN, HIDDEN)))

    params = {
        "word_emb": nrm(keys[0], (VOCAB, HIDDEN)),
        "pos_emb": nrm(keys[1], (MAX_POS, HIDDEN)),
        "emb_ln_g": jnp.ones((1, HIDDEN), jnp.float32),
        "emb_ln_b": jnp.zeros((1, HIDDEN), jnp.float32),
        "qkv_w": jnp.stack(qkv_w),                                    # (L, H, 3H)
        "qkv_b": jnp.zeros((N_LAYERS, 1, 3 * HIDDEN), jnp.float32),
        "o_w": jnp.stack(o_w),                                        # (L, H, H)
        "o_b": jnp.zeros((N_LAYERS, 1, HIDDEN), jnp.float32),
        "sa_ln_g": jnp.ones((N_LAYERS, 1, HIDDEN), jnp.float32),
        "sa_ln_b": jnp.zeros((N_LAYERS, 1, HIDDEN), jnp.float32),
        "ffn1_w": jnp.stack(f1_w),                                    # (L, H, FFN)
        "ffn1_b": jnp.zeros((N_LAYERS, 1, FFN), jnp.float32),
        "ffn2_w": jnp.stack(f2_w),                                    # (L, FFN, H)
        "ffn2_b": jnp.zeros((N_LAYERS, 1, HIDDEN), jnp.float32),
        "out_ln_g": jnp.ones((N_LAYERS, 1, HIDDEN), jnp.float32),
        "out_ln_b": jnp.zeros((N_LAYERS, 1, HIDDEN), jnp.float32),
        "pre_w": nrm(keys[2], (HIDDEN, HIDDEN)),
        "pre_b": jnp.zeros((1, HIDDEN), jnp.float32),
        "cls_w": nrm(keys[3], (HIDDEN, N_LABELS)),
        "cls_b": jnp.zeros((1, N_LABELS), jnp.float32),
    }
    return params


# ============================ forward pass ==============================

def distilbert_sem_forward(params, input_ids, attention_mask, labels=None):
    """Mirrors DistilBertForSequenceClassification(..., return_dict=True)."""
    B, S = input_ids.shape
    H = HIDDEN

    # Embedding lookup (gather) + position add done in plain JAX; everything
    # else runs inside one fused Pallas kernel.
    # TODO(synk): token-id gather has no clean single-kernel Pallas form at
    # this size, so it stays as an XLA gather feeding the fused kernel.
    we = jnp.take(params["word_emb"], input_ids, axis=0)          # (B, S, H)
    pe = params["pos_emb"][:S][None, :, :]                        # (1, S, H)
    x_emb = (we + pe).reshape(B * S, H).astype(jnp.float32)

    # Additive key-padding bias (B, 1, S): 0 where attend, finfo(f32).min where
    # masked (same constant HF's masked_fill uses; kernel stays f32).
    mask_bias = jnp.where(attention_mask[:, None, :] == 0,
                          NEG_INF, 0.0).astype(jnp.float32)       # (B, 1, S)

    kernel = functools.partial(_distilbert_kernel, batch=B, seq=S)

    logits = pl.pallas_call(
        kernel,
        out_shape=jax.ShapeDtypeStruct((B, N_LABELS), jnp.float32),
        scratch_shapes=[pltpu.VMEM((B * S, H), jnp.float32)],
        # No grid / no BlockSpecs: whole activation slab + all weights (~60 KB)
        # are VMEM-resident for the single kernel invocation. At real sizes,
        # add a "parallel" batch grid axis + "arbitrary" layer-streaming axis.
    )(x_emb, mask_bias,
      params["emb_ln_g"], params["emb_ln_b"],
      params["qkv_w"], params["qkv_b"],
      params["o_w"], params["o_b"],
      params["sa_ln_g"], params["sa_ln_b"],
      params["ffn1_w"], params["ffn1_b"],
      params["ffn2_w"], params["ffn2_b"],
      params["out_ln_g"], params["out_ln_b"],
      params["pre_w"], params["pre_b"],
      params["cls_w"], params["cls_b"])

    out = {"logits": logits}
    if labels is not None:
        # CrossEntropyLoss (mean) on tiny (B, 3) logits — plain JAX glue.
        logp = jax.nn.log_softmax(logits, axis=-1)
        nll = -jnp.take_along_axis(logp, labels[:, None].astype(jnp.int32), axis=1)
        out["loss"] = jnp.mean(nll)
    return out


# ================================ main ==================================

if __name__ == "__main__":
    key = jax.random.PRNGKey(0)
    pkey, idkey, lkey = jax.random.split(key, 3)

    params = init_params(pkey)

    B, S = 2, 8
    input_ids = jax.random.randint(idkey, (B, S), 0, VOCAB, dtype=jnp.int32)
    attention_mask = jnp.ones((B, S), jnp.int32)
    attention_mask = attention_mask.at[1, 6:].set(0)   # pad tail of 2nd sequence
    labels = jax.random.randint(lkey, (B,), 0, N_LABELS, dtype=jnp.int32)

    fwd = jax.jit(distilbert_sem_forward)
    out = fwd(params, input_ids, attention_mask, labels=labels)
    jax.block_until_ready(out["logits"])
    jax.block_until_ready(out["loss"])

    assert out["logits"].shape == (B, N_LABELS)
    assert out["loss"].shape == ()
    print("KERNEL_OK")
</pallas_src>

<mosaic_0001>
module attributes {stable_mosaic.version = 11 : i64} {
  func.func @_distilbert_kernel(%arg0: memref<16x32xf32, #tpu.memory_space<vmem>>, %arg1: memref<2x1x8xf32, #tpu.memory_space<vmem>>, %arg2: memref<1x32xf32, #tpu.memory_space<vmem>>, %arg3: memref<1x32xf32, #tpu.memory_space<vmem>>, %arg4: memref<2x32x96xf32, #tpu.memory_space<vmem>>, %arg5: memref<2x1x96xf32, #tpu.memory_space<vmem>>, %arg6: memref<2x32x32xf32, #tpu.memory_space<vmem>>, %arg7: memref<2x1x32xf32, #tpu.memory_space<vmem>>, %arg8: memref<2x1x32xf32, #tpu.memory_space<vmem>>, %arg9: memref<2x1x32xf32, #tpu.memory_space<vmem>>, %arg10: memref<2x32x128xf32, #tpu.memory_space<vmem>>, %arg11: memref<2x1x128xf32, #tpu.memory_space<vmem>>, %arg12: memref<2x128x32xf32, #tpu.memory_space<vmem>>, %arg13: memref<2x1x32xf32, #tpu.memory_space<vmem>>, %arg14: memref<2x1x32xf32, #tpu.memory_space<vmem>>, %arg15: memref<2x1x32xf32, #tpu.memory_space<vmem>>, %arg16: memref<32x32xf32, #tpu.memory_space<vmem>>, %arg17: memref<1x32xf32, #tpu.memory_space<vmem>>, %arg18: memref<32x3xf32, #tpu.memory_space<vmem>>, %arg19: memref<1x3xf32, #tpu.memory_space<vmem>>, %arg20: memref<2x3xf32, #tpu.memory_space<vmem>>, %arg21: memref<16x32xf32, #tpu.memory_space<vmem>>) attributes {dimension_semantics = [], scalar_prefetch = 0 : i64, scratch_operands = 1 : i64, tpu.core_type = #tpu.core_type<tc>} {
    %c0 = arith.constant 0 : index
    %c0_0 = arith.constant 0 : index
    %0 = vector.load %arg0[%c0, %c0_0] : memref<16x32xf32, #tpu.memory_space<vmem>>, vector<16x32xf32>
    %c0_1 = arith.constant 0 : index
    %c0_2 = arith.constant 0 : index
    %c0_3 = arith.constant 0 : index
    %1 = vector.load %arg1[%c0_1, %c0_2, %c0_3] : memref<2x1x8xf32, #tpu.memory_space<vmem>>, vector<2x1x8xf32>
    %2 = vector.shape_cast %1 : vector<2x1x8xf32> to vector<2x1x8xf32>
    %3 = vector.broadcast %2 : vector<2x1x8xf32> to vector<2x8x8xf32>
    %c0_4 = arith.constant 0 : index
    %c0_5 = arith.constant 0 : index
    %4 = vector.load %arg2[%c0_4, %c0_5] : memref<1x32xf32, #tpu.memory_space<vmem>>, vector<1x32xf32>
    %c0_6 = arith.constant 0 : index
    %c0_7 = arith.constant 0 : index
    %5 = vector.load %arg3[%c0_6, %c0_7] : memref<1x32xf32, #tpu.memory_space<vmem>>, vector<1x32xf32>
    %cst = arith.constant dense<0.000000e+00> : vector<16xf32>
    %6 = vector.multi_reduction <add>, %0, %cst [1] : vector<16x32xf32> to vector<16xf32>
    %7 = vector.shape_cast %6 : vector<16xf32> to vector<16x1xf32>
    %cst_8 = arith.constant 3.200000e+01 : f32
    %8 = vector.broadcast %cst_8 : f32 to vector<16x1xf32>
    %9 = arith.divf %7, %8 : vector<16x1xf32>
    %10 = vector.broadcast %9 : vector<16x1xf32> to vector<16x32xf32>
    %11 = arith.subf %0, %10 : vector<16x32xf32>
    %12 = arith.mulf %11, %11 : vector<16x32xf32>
    %cst_9 = arith.constant dense<0.000000e+00> : vector<16xf32>
    %13 = vector.multi_reduction <add>, %12, %cst_9 [1] : vector<16x32xf32> to vector<16xf32>
    %14 = vector.shape_cast %13 : vector<16xf32> to vector<16x1xf32>
    %cst_10 = arith.constant 3.200000e+01 : f32
    %15 = vector.broadcast %cst_10 : f32 to vector<16x1xf32>
    %16 = arith.divf %14, %15 : vector<16x1xf32>
    %17 = vector.broadcast %9 : vector<16x1xf32> to vector<16x32xf32>
    %18 = arith.subf %0, %17 : vector<16x32xf32>
    %cst_11 = arith.constant 9.99999996E-13 : f32
    %19 = vector.broadcast %cst_11 : f32 to vector<16x1xf32>
    %20 = arith.addf %16, %19 : vector<16x1xf32>
    %21 = math.rsqrt %20 : vector<16x1xf32>
    %22 = vector.broadcast %21 : vector<16x1xf32> to vector<16x32xf32>
    %23 = arith.mulf %18, %22 : vector<16x32xf32>
    %24 = vector.broadcast %4 : vector<1x32xf32> to vector<16x32xf32>
    %25 = arith.mulf %23, %24 : vector<16x32xf32>
    %26 = vector.broadcast %5 : vector<1x32xf32> to vector<16x32xf32>
    %27 = arith.addf %25, %26 : vector<16x32xf32>
    %c0_12 = arith.constant 0 : index
    %c0_13 = arith.constant 0 : index
    %c0_14 = arith.constant 0 : index
    %28 = vector.load %arg4[%c0_12, %c0_13, %c0_14] : memref<2x32x96xf32, #tpu.memory_space<vmem>>, vector<1x32x96xf32>
    %29 = vector.shape_cast %28 : vector<1x32x96xf32> to vector<32x96xf32>
    %cst_15 = arith.constant dense<0.000000e+00> : vector<16x96xf32>
    %30 = tpu.matmul %27, %29, %cst_15 {dimension_numbers = #tpu.dot_dimension_numbers<[1], [0], [0], [1], [0, 0, 1, 1], [], []>} : vector<16x32xf32>, vector<32x96xf32>, vector<16x96xf32> -> vector<16x96xf32>
    %c0_16 = arith.constant 0 : index
    %c0_17 = arith.constant 0 : index
    %c0_18 = arith.constant 0 : index
    %31 = vector.load %arg5[%c0_16, %c0_17, %c0_18] : memref<2x1x96xf32, #tpu.memory_space<vmem>>, vector<1x1x96xf32>
    %32 = vector.shape_cast %31 : vector<1x1x96xf32> to vector<1x96xf32>
    %33 = vector.broadcast %32 : vector<1x96xf32> to vector<16x96xf32>
    %34 = arith.addf %30, %33 : vector<16x96xf32>
    %35 = vector.extract_strided_slice %34 {offsets = [0, 0], sizes = [16, 32], strides = [1, 1]} : vector<16x96xf32> to vector<16x32xf32>
    %36 = vector.shape_cast %35 : vector<16x32xf32> to vector<2x8x32xf32>
    %37 = vector.extract_strided_slice %34 {offsets = [0, 32], sizes = [16, 32], strides = [1, 1]} : vector<16x96xf32> to vector<16x32xf32>
    %38 = vector.shape_cast %37 : vector<16x32xf32> to vector<2x8x32xf32>
    %39 = vector.extract_strided_slice %34 {offsets = [0, 64], sizes = [16, 32], strides = [1, 1]} : vector<16x96xf32> to vector<16x32xf32>
    %40 = vector.shape_cast %39 : vector<16x32xf32> to vector<2x8x32xf32>
    %41 = vector.extract_strided_slice %36 {offsets = [0, 0, 0], sizes = [2, 8, 8], strides = [1, 1, 1]} : vector<2x8x32xf32> to vector<2x8x8xf32>
    %42 = vector.extract_strided_slice %38 {offsets = [0, 0, 0], sizes = [2, 8, 8], strides = [1, 1, 1]} : vector<2x8x32xf32> to vector<2x8x8xf32>
    %43 = vector.extract_strided_slice %40 {offsets = [0, 0, 0], sizes = [2, 8, 8], strides = [1, 1, 1]} : vector<2x8x32xf32> to vector<2x8x8xf32>
    "tpu.trace_start"() <{level = 10 : i32, message = "bqd,bkd->bqk"}> : () -> ()
    %cst_19 = arith.constant dense<0.000000e+00> : vector<2x8x8xf32>
    %44 = tpu.matmul %41, %42, %cst_19 {dimension_numbers = #tpu.dot_dimension_numbers<[2], [2], [1], [1], [0, 0, 0, 1, 1, 1], [0], [0]>} : vector<2x8x8xf32>, vector<2x8x8xf32>, vector<2x8x8xf32> -> vector<2x8x8xf32>
    "tpu.trace_stop"() : () -> ()
    %45 = arith.addf %44, %3 : vector<2x8x8xf32>
    %cst_20 = arith.constant dense<0xFF800000> : vector<2x8xf32>
    %46 = vector.multi_reduction <maximumf>, %45, %cst_20 [2] : vector<2x8x8xf32> to vector<2x8xf32>
    %47 = vector.shape_cast %46 : vector<2x8xf32> to vector<2x8x1xf32>
    %48 = vector.broadcast %47 : vector<2x8x1xf32> to vector<2x8x8xf32>
    %49 = arith.subf %45, %48 : vector<2x8x8xf32>
    %50 = math.exp %49 : vector<2x8x8xf32>
    %cst_21 = arith.constant dense<0.000000e+00> : vector<2x8xf32>
    %51 = vector.multi_reduction <add>, %50, %cst_21 [2] : vector<2x8x8xf32> to vector<2x8xf32>
    %52 = vector.shape_cast %51 : vector<2x8xf32> to vector<2x8x1xf32>
    %53 = vector.broadcast %52 : vector<2x8x1xf32> to vector<2x8x8xf32>
    %54 = arith.divf %50, %53 : vector<2x8x8xf32>
    "tpu.trace_start"() <{level = 10 : i32, message = "bqk,bkd->bqd"}> : () -> ()
    %cst_22 = arith.constant dense<0.000000e+00> : vector<2x8x8xf32>
    %55 = tpu.matmul %54, %43, %cst_22 {dimension_numbers = #tpu.dot_dimension_numbers<[2], [1], [1], [2], [0, 0, 0, 1, 1, 2], [0], [0]>} : vector<2x8x8xf32>, vector<2x8x8xf32>, vector<2x8x8xf32> -> vector<2x8x8xf32>
    "tpu.trace_stop"() : () -> ()
    %56 = vector.shape_cast %55 : vector<2x8x8xf32> to vector<16x8xf32>
    %c0_23 = arith.constant 0 : index
    %c0_24 = arith.constant 0 : index
    %57 = vector.load %arg21[%c0_23, %c0_24] : memref<16x32xf32, #tpu.memory_space<vmem>>, vector<16x8xf32>
    tpu.vector_store %arg21[%c0_23, %c0_24], %56 {strides = array<i32>} : memref<16x32xf32, #tpu.memory_space<vmem>>, vector<16x8xf32>,
    %58 = vector.extract_strided_slice %36 {offsets = [0, 0, 8], sizes = [2, 8, 8], strides = [1, 1, 1]} : vector<2x8x32xf32> to vector<2x8x8xf32>
    %59 = vector.extract_strided_slice %38 {offsets = [0, 0, 8], sizes = [2, 8, 8], strides = [1, 1, 1]} : vector<2x8x32xf32> to vector<2x8x8xf32>
    %60 = vector.extract_strided_slice %40 {offsets = [0, 0, 8], sizes = [2, 8, 8], strides = [1, 1, 1]} : vector<2x8x32xf32> to vector<2x8x8xf32>
    "tpu.trace_start"() <{level = 10 : i32, message = "bqd,bkd->bqk"}> : () -> ()
    %cst_25 = arith.constant dense<0.000000e+00> : vector<2x8x8xf32>
    %61 = tpu.matmul %58, %59, %cst_25 {dimension_numbers = #tpu.dot_dimension_numbers<[2], [2], [1], [1], [0, 0, 0, 1, 1, 1], [0], [0]>} : vector<2x8x8xf32>, vector<2x8x8xf32>, vector<2x8x8xf32> -> vector<2x8x8xf32>
    "tpu.trace_stop"() : () -> ()
    %62 = arith.addf %61, %3 : vector<2x8x8xf32>
    %cst_26 = arith.constant dense<0xFF800000> : vector<2x8xf32>
    %63 = vector.multi_reduction <maximumf>, %62, %cst_26 [2] : vector<2x8x8xf32> to vector<2x8xf32>
    %64 = vector.shape_cast %63 : vector<2x8xf32> to vector<2x8x1xf32>
    %65 = vector.broadcast %64 : vector<2x8x1xf32> to vector<2x8x8xf32>
    %66 = arith.subf %62, %65 : vector<2x8x8xf32>
    %67 = math.exp %66 : vector<2x8x8xf32>
    %cst_27 = arith.constant dense<0.000000e+00> : vector<2x8xf32>
    %68 = vector.multi_reduction <add>, %67, %cst_27 [2] : vector<2x8x8xf32> to vector<2x8xf32>
    %69 = vector.shape_cast %68 : vector<2x8xf32> to vector<2x8x1xf32>
    %70 = vector.broadcast %69 : vector<2x8x1xf32> to vector<2x8x8xf32>
    %71 = arith.divf %67, %70 : vector<2x8x8xf32>
    "tpu.trace_start"() <{level = 10 : i32, message = "bqk,bkd->bqd"}> : () -> ()
    %cst_28 = arith.constant dense<0.000000e+00> : vector<2x8x8xf32>
    %72 = tpu.matmul %71, %60, %cst_28 {dimension_numbers = #tpu.dot_dimension_numbers<[2], [1], [1], [2], [0, 0, 0, 1, 1, 2], [0], [0]>} : vector<2x8x8xf32>, vector<2x8x8xf32>, vector<2x8x8xf32> -> vector<2x8x8xf32>
    "tpu.trace_stop"() : () -> ()
    %73 = vector.shape_cast %72 : vector<2x8x8xf32> to vector<16x8xf32>
    %c0_29 = arith.constant 0 : index
    %c8 = arith.constant 8 : index
    %74 = vector.load %arg21[%c0_29, %c8] : memref<16x32xf32, #tpu.memory_space<vmem>>, vector<16x8xf32>
    tpu.vector_store %arg21[%c0_29, %c8], %73 {strides = array<i32>} : memref<16x32xf32, #tpu.memory_space<vmem>>, vector<16x8xf32>,
    %75 = vector.extract_strided_slice %36 {offsets = [0, 0, 16], sizes = [2, 8, 8], strides = [1, 1, 1]} : vector<2x8x32xf32> to vector<2x8x8xf32>
    %76 = vector.extract_strided_slice %38 {offsets = [0, 0, 16], sizes = [2, 8, 8], strides = [1, 1, 1]} : vector<2x8x32xf32> to vector<2x8x8xf32>
    %77 = vector.extract_strided_slice %40 {offsets = [0, 0, 16], sizes = [2, 8, 8], strides = [1, 1, 1]} : vector<2x8x32xf32> to vector<2x8x8xf32>
    "tpu.trace_start"() <{level = 10 : i32, message = "bqd,bkd->bqk"}> : () -> ()
    %cst_30 = arith.constant dense<0.000000e+00> : vector<2x8x8xf32>
    %78 = tpu.matmul %75, %76, %cst_30 {dimension_numbers = #tpu.dot_dimension_numbers<[2], [2], [1], [1], [0, 0, 0, 1, 1, 1], [0], [0]>} : vector<2x8x8xf32>, vector<2x8x8xf32>, vector<2x8x8xf32> -> vector<2x8x8xf32>
    "tpu.trace_stop"() : () -> ()
    %79 = arith.addf %78, %3 : vector<2x8x8xf32>
    %cst_31 = arith.constant dense<0xFF800000> : vector<2x8xf32>
    %80 = vector.multi_reduction <maximumf>, %79, %cst_31 [2] : vector<2x8x8xf32> to vector<2x8xf32>
    %81 = vector.shape_cast %80 : vector<2x8xf32> to vector<2x8x1xf32>
    %82 = vector.broadcast %81 : vector<2x8x1xf32> to vector<2x8x8xf32>
    %83 = arith.subf %79, %82 : vector<2x8x8xf32>
    %84 = math.exp %83 : vector<2x8x8xf32>
    %cst_32 = arith.constant dense<0.000000e+00> : vector<2x8xf32>
    %85 = vector.multi_reduction <add>, %84, %cst_32 [2] : vector<2x8x8xf32> to vector<2x8xf32>
    %86 = vector.shape_cast %85 : vector<2x8xf32> to vector<2x8x1xf32>
    %87 = vector.broadcast %86 : vector<2x8x1xf32> to vector<2x8x8xf32>
    %88 = arith.divf %84, %87 : vector<2x8x8xf32>
    "tpu.trace_start"() <{level = 10 : i32, message = "bqk,bkd->bqd"}> : () -> ()
    %cst_33 = arith.constant dense<0.000000e+00> : vector<2x8x8xf32>
    %89 = tpu.matmul %88, %77, %cst_33 {dimension_numbers = #tpu.dot_dimension_numbers<[2], [1], [1], [2], [0, 0, 0, 1, 1, 2], [0], [0]>} : vector<2x8x8xf32>, vector<2x8x8xf32>, vector<2x8x8xf32> -> vector<2x8x8xf32>
    "tpu.trace_stop"() : () -> ()
    %90 = vector.shape_cast %89 : vector<2x8x8xf32> to vector<16x8xf32>
    %c0_34 = arith.constant 0 : index
    %c16 = arith.constant 16 : index
    %91 = vector.load %arg21[%c0_34, %c16] : memref<16x32xf32, #tpu.memory_space<vmem>>, vector<16x8xf32>
    tpu.vector_store %arg21[%c0_34, %c16], %90 {strides = array<i32>} : memref<16x32xf32, #tpu.memory_space<vmem>>, vector<16x8xf32>,
    %92 = vector.extract_strided_slice %36 {offsets = [0, 0, 24], sizes = [2, 8, 8], strides = [1, 1, 1]} : vector<2x8x32xf32> to vector<2x8x8xf32>
    %93 = vector.extract_strided_slice %38 {offsets = [0, 0, 24], sizes = [2, 8, 8], strides = [1, 1, 1]} : vector<2x8x32xf32> to vector<2x8x8xf32>
    %94 = vector.extract_strided_slice %40 {offsets = [0, 0, 24], sizes = [2, 8, 8], strides = [1, 1, 1]} : vector<2x8x32xf32> to vector<2x8x8xf32>
    "tpu.trace_start"() <{level = 10 : i32, message = "bqd,bkd->bqk"}> : () -> ()
    %cst_35 = arith.constant dense<0.000000e+00> : vector<2x8x8xf32>
    %95 = tpu.matmul %92, %93, %cst_35 {dimension_numbers = #tpu.dot_dimension_numbers<[2], [2], [1], [1], [0, 0, 0, 1, 1, 1], [0], [0]>} : vector<2x8x8xf32>, vector<2x8x8xf32>, vector<2x8x8xf32> -> vector<2x8x8xf32>
    "tpu.trace_stop"() : () -> ()
    %96 = arith.addf %95, %3 : vector<2x8x8xf32>
    %cst_36 = arith.constant dense<0xFF800000> : vector<2x8xf32>
    %97 = vector.multi_reduction <maximumf>, %96, %cst_36 [2] : vector<2x8x8xf32> to vector<2x8xf32>
    %98 = vector.shape_cast %97 : vector<2x8xf32> to vector<2x8x1xf32>
    %99 = vector.broadcast %98 : vector<2x8x1xf32> to vector<2x8x8xf32>
    %100 = arith.subf %96, %99 : vector<2x8x8xf32>
    %101 = math.exp %100 : vector<2x8x8xf32>
    %cst_37 = arith.constant dense<0.000000e+00> : vector<2x8xf32>
    %102 = vector.multi_reduction <add>, %101, %cst_37 [2] : vector<2x8x8xf32> to vector<2x8xf32>
    %103 = vector.shape_cast %102 : vector<2x8xf32> to vector<2x8x1xf32>
    %104 = vector.broadcast %103 : vector<2x8x1xf32> to vector<2x8x8xf32>
    %105 = arith.divf %101, %104 : vector<2x8x8xf32>
    "tpu.trace_start"() <{level = 10 : i32, message = "bqk,bkd->bqd"}> : () -> ()
    %cst_38 = arith.constant dense<0.000000e+00> : vector<2x8x8xf32>
    %106 = tpu.matmul %105, %94, %cst_38 {dimension_numbers = #tpu.dot_dimension_numbers<[2], [1], [1], [2], [0, 0, 0, 1, 1, 2], [0], [0]>} : vector<2x8x8xf32>, vector<2x8x8xf32>, vector<2x8x8xf32> -> vector<2x8x8xf32>
    "tpu.trace_stop"() : () -> ()
    %107 = vector.shape_cast %106 : vector<2x8x8xf32> to vector<16x8xf32>
    %c0_39 = arith.constant 0 : index
    %c24 = arith.constant 24 : index
    %108 = vector.load %arg21[%c0_39, %c24] : memref<16x32xf32, #tpu.memory_space<vmem>>, vector<16x8xf32>
    tpu.vector_store %arg21[%c0_39, %c24], %107 {strides = array<i32>} : memref<16x32xf32, #tpu.memory_space<vmem>>, vector<16x8xf32>,
    %c0_40 = arith.constant 0 : index
    %c0_41 = arith.constant 0 : index
    %109 = vector.load %arg21[%c0_40, %c0_41] : memref<16x32xf32, #tpu.memory_space<vmem>>, vector<16x32xf32>
    %c0_42 = arith.constant 0 : index
    %c0_43 = arith.constant 0 : index
    %c0_44 = arith.constant 0 : index
    %110 = vector.load %arg6[%c0_42, %c0_43, %c0_44] : memref<2x32x32xf32, #tpu.memory_space<vmem>>, vector<1x32x32xf32>
    %111 = vector.shape_cast %110 : vector<1x32x32xf32> to vector<32x32xf32>
    %cst_45 = arith.constant dense<0.000000e+00> : vector<16x32xf32>
    %112 = tpu.matmul %109, %111, %cst_45 {dimension_numbers = #tpu.dot_dimension_numbers<[1], [0], [0], [1], [0, 0, 1, 1], [], []>} : vector<16x32xf32>, vector<32x32xf32>, vector<16x32xf32> -> vector<16x32xf32>
    %c0_46 = arith.constant 0 : index
    %c0_47 = arith.constant 0 : index
    %c0_48 = arith.constant 0 : index
    %113 = vector.load %arg7[%c0_46, %c0_47, %c0_48] : memref<2x1x32xf32, #tpu.memory_space<vmem>>, vector<1x1x32xf32>
    %114 = vector.shape_cast %113 : vector<1x1x32xf32> to vector<1x32xf32>
    %115 = vector.broadcast %114 : vector<1x32xf32> to vector<16x32xf32>
    %116 = arith.addf %112, %115 : vector<16x32xf32>
    %117 = arith.addf %116, %27 : vector<16x32xf32>
    %c0_49 = arith.constant 0 : index
    %c0_50 = arith.constant 0 : index
    %c0_51 = arith.constant 0 : index
    %118 = vector.load %arg8[%c0_49, %c0_50, %c0_51] : memref<2x1x32xf32, #tpu.memory_space<vmem>>, vector<1x1x32xf32>
    %119 = vector.shape_cast %118 : vector<1x1x32xf32> to vector<1x32xf32>
    %c0_52 = arith.constant 0 : index
    %c0_53 = arith.constant 0 : index
    %c0_54 = arith.constant 0 : index
    %120 = vector.load %arg9[%c0_52, %c0_53, %c0_54] : memref<2x1x32xf32, #tpu.memory_space<vmem>>, vector<1x1x32xf32>
    %121 = vector.shape_cast %120 : vector<1x1x32xf32> to vector<1x32xf32>
    %cst_55 = arith.constant dense<0.000000e+00> : vector<16xf32>
    %122 = vector.multi_reduction <add>, %117, %cst_55 [1] : vector<16x32xf32> to vector<16xf32>
    %123 = vector.shape_cast %122 : vector<16xf32> to vector<16x1xf32>
    %cst_56 = arith.constant 3.200000e+01 : f32
    %124 = vector.broadcast %cst_56 : f32 to vector<16x1xf32>
    %125 = arith.divf %123, %124 : vector<16x1xf32>
    %126 = vector.broadcast %125 : vector<16x1xf32> to vector<16x32xf32>
    %127 = arith.subf %117, %126 : vector<16x32xf32>
    %128 = arith.mulf %127, %127 : vector<16x32xf32>
    %cst_57 = arith.constant dense<0.000000e+00> : vector<16xf32>
    %129 = vector.multi_reduction <add>, %128, %cst_57 [1] : vector<16x32xf32> to vector<16xf32>
    %130 = vector.shape_cast %129 : vector<16xf32> to vector<16x1xf32>
    %cst_58 = arith.constant 3.200000e+01 : f32
    %131 = vector.broadcast %cst_58 : f32 to vector<16x1xf32>
    %132 = arith.divf %130, %131 : vector<16x1xf32>
    %133 = vector.broadcast %125 : vector<16x1xf32> to vector<16x32xf32>
    %134 = arith.subf %117, %133 : vector<16x32xf32>
    %cst_59 = arith.constant 9.99999996E-13 : f32
    %135 = vector.broadcast %cst_59 : f32 to vector<16x1xf32>
    %136 = arith.addf %132, %135 : vector<16x1xf32>
    %137 = math.rsqrt %136 : vector<16x1xf32>
    %138 = vector.broadcast %137 : vector<16x1xf32> to vector<16x32xf32>
    %139 = arith.mulf %134, %138 : vector<16x32xf32>
    %140 = vector.broadcast %119 : vector<1x32xf32> to vector<16x32xf32>
    %141 = arith.mulf %139, %140 : vector<16x32xf32>
    %142 = vector.broadcast %121 : vector<1x32xf32> to vector<16x32xf32>
    %143 = arith.addf %141, %142 : vector<16x32xf32>
    %c0_60 = arith.constant 0 : index
    %c0_61 = arith.constant 0 : index
    %c0_62 = arith.constant 0 : index
    %144 = vector.load %arg10[%c0_60, %c0_61, %c0_62] : memref<2x32x128xf32, #tpu.memory_space<vmem>>, vector<1x32x128xf32>
    %145 = vector.shape_cast %144 : vector<1x32x128xf32> to vector<32x128xf32>
    %cst_63 = arith.constant dense<0.000000e+00> : vector<16x128xf32>
    %146 = tpu.matmul %143, %145, %cst_63 {dimension_numbers = #tpu.dot_dimension_numbers<[1], [0], [0], [1], [0, 0, 1, 1], [], []>} : vector<16x32xf32>, vector<32x128xf32>, vector<16x128xf32> -> vector<16x128xf32>
    %c0_64 = arith.constant 0 : index
    %c0_65 = arith.constant 0 : index
    %c0_66 = arith.constant 0 : index
    %147 = vector.load %arg11[%c0_64, %c0_65, %c0_66] : memref<2x1x128xf32, #tpu.memory_space<vmem>>, vector<1x1x128xf32>
    %148 = vector.shape_cast %147 : vector<1x1x128xf32> to vector<1x128xf32>
    %149 = vector.broadcast %148 : vector<1x128xf32> to vector<16x128xf32>
    %150 = arith.addf %146, %149 : vector<16x128xf32>
    %cst_67 = arith.constant 5.000000e-01 : f32
    %151 = vector.broadcast %cst_67 : f32 to vector<16x128xf32>
    %152 = arith.mulf %151, %150 : vector<16x128xf32>
    %cst_68 = arith.constant 0.707106769 : f32
    %153 = vector.broadcast %cst_68 : f32 to vector<16x128xf32>
    %154 = arith.mulf %150, %153 : vector<16x128xf32>
    %155 = math.erf %154 : vector<16x128xf32>
    %cst_69 = arith.constant 1.000000e+00 : f32
    %156 = vector.broadcast %cst_69 : f32 to vector<16x128xf32>
    %157 = arith.addf %156, %155 : vector<16x128xf32>
    %158 = arith.mulf %152, %157 : vector<16x128xf32>
    %c0_70 = arith.constant 0 : index
    %c0_71 = arith.constant 0 : index
    %c0_72 = arith.constant 0 : index
    %159 = vector.load %arg12[%c0_70, %c0_71, %c0_72] : memref<2x128x32xf32, #tpu.memory_space<vmem>>, vector<1x128x32xf32>
    %160 = vector.shape_cast %159 : vector<1x128x32xf32> to vector<128x32xf32>
    %cst_73 = arith.constant dense<0.000000e+00> : vector<16x32xf32>
    %161 = tpu.matmul %158, %160, %cst_73 {dimension_numbers = #tpu.dot_dimension_numbers<[1], [0], [0], [1], [0, 0, 1, 1], [], []>} : vector<16x128xf32>, vector<128x32xf32>, vector<16x32xf32> -> vector<16x32xf32>
    %c0_74 = arith.constant 0 : index
    %c0_75 = arith.constant 0 : index
    %c0_76 = arith.constant 0 : index
    %162 = vector.load %arg13[%c0_74, %c0_75, %c0_76] : memref<2x1x32xf32, #tpu.memory_space<vmem>>, vector<1x1x32xf32>
    %163 = vector.shape_cast %162 : vector<1x1x32xf32> to vector<1x32xf32>
    %164 = vector.broadcast %163 : vector<1x32xf32> to vector<16x32xf32>
    %165 = arith.addf %161, %164 : vector<16x32xf32>
    %166 = arith.addf %165, %143 : vector<16x32xf32>
    %c0_77 = arith.constant 0 : index
    %c0_78 = arith.constant 0 : index
    %c0_79 = arith.constant 0 : index
    %167 = vector.load %arg14[%c0_77, %c0_78, %c0_79] : memref<2x1x32xf32, #tpu.memory_space<vmem>>, vector<1x1x32xf32>
    %168 = vector.shape_cast %167 : vector<1x1x32xf32> to vector<1x32xf32>
    %c0_80 = arith.constant 0 : index
    %c0_81 = arith.constant 0 : index
    %c0_82 = arith.constant 0 : index
    %169 = vector.load %arg15[%c0_80, %c0_81, %c0_82] : memref<2x1x32xf32, #tpu.memory_space<vmem>>, vector<1x1x32xf32>
    %170 = vector.shape_cast %169 : vector<1x1x32xf32> to vector<1x32xf32>
    %cst_83 = arith.constant dense<0.000000e+00> : vector<16xf32>
    %171 = vector.multi_reduction <add>, %166, %cst_83 [1] : vector<16x32xf32> to vector<16xf32>
    %172 = vector.shape_cast %171 : vector<16xf32> to vector<16x1xf32>
    %cst_84 = arith.constant 3.200000e+01 : f32
    %173 = vector.broadcast %cst_84 : f32 to vector<16x1xf32>
    %174 = arith.divf %172, %173 : vector<16x1xf32>
    %175 = vector.broadcast %174 : vector<16x1xf32> to vector<16x32xf32>
    %176 = arith.subf %166, %175 : vector<16x32xf32>
    %177 = arith.mulf %176, %176 : vector<16x32xf32>
    %cst_85 = arith.constant dense<0.000000e+00> : vector<16xf32>
    %178 = vector.multi_reduction <add>, %177, %cst_85 [1] : vector<16x32xf32> to vector<16xf32>
    %179 = vector.shape_cast %178 : vector<16xf32> to vector<16x1xf32>
    %cst_86 = arith.constant 3.200000e+01 : f32
    %180 = vector.broadcast %cst_86 : f32 to vector<16x1xf32>
    %181 = arith.divf %179, %180 : vector<16x1xf32>
    %182 = vector.broadcast %174 : vector<16x1xf32> to vector<16x32xf32>
    %183 = arith.subf %166, %182 : vector<16x32xf32>
    %cst_87 = arith.constant 9.99999996E-13 : f32
    %184 = vector.broadcast %cst_87 : f32 to vector<16x1xf32>
    %185 = arith.addf %181, %184 : vector<16x1xf32>
    %186 = math.rsqrt %185 : vector<16x1xf32>
    %187 = vector.broadcast %186 : vector<16x1xf32> to vector<16x32xf32>
    %188 = arith.mulf %183, %187 : vector<16x32xf32>
    %189 = vector.broadcast %168 : vector<1x32xf32> to vector<16x32xf32>
    %190 = arith.mulf %188, %189 : vector<16x32xf32>
    %191 = vector.broadcast %170 : vector<1x32xf32> to vector<16x32xf32>
    %192 = arith.addf %190, %191 : vector<16x32xf32>
    %c1 = arith.constant 1 : index
    %c0_88 = arith.constant 0 : index
    %c0_89 = arith.constant 0 : index
    %193 = vector.load %arg4[%c1, %c0_88, %c0_89] : memref<2x32x96xf32, #tpu.memory_space<vmem>>, vector<1x32x96xf32>
    %194 = vector.shape_cast %193 : vector<1x32x96xf32> to vector<32x96xf32>
    %cst_90 = arith.constant dense<0.000000e+00> : vector<16x96xf32>
    %195 = tpu.matmul %192, %194, %cst_90 {dimension_numbers = #tpu.dot_dimension_numbers<[1], [0], [0], [1], [0, 0, 1, 1], [], []>} : vector<16x32xf32>, vector<32x96xf32>, vector<16x96xf32> -> vector<16x96xf32>
    %c1_91 = arith.constant 1 : index
    %c0_92 = arith.constant 0 : index
    %c0_93 = arith.constant 0 : index
    %196 = vector.load %arg5[%c1_91, %c0_92, %c0_93] : memref<2x1x96xf32, #tpu.memory_space<vmem>>, vector<1x1x96xf32>
    %197 = vector.shape_cast %196 : vector<1x1x96xf32> to vector<1x96xf32>
    %198 = vector.broadcast %197 : vector<1x96xf32> to vector<16x96xf32>
    %199 = arith.addf %195, %198 : vector<16x96xf32>
    %200 = vector.extract_strided_slice %199 {offsets = [0, 0], sizes = [16, 32], strides = [1, 1]} : vector<16x96xf32> to vector<16x32xf32>
    %201 = vector.shape_cast %200 : vector<16x32xf32> to vector<2x8x32xf32>
    %202 = vector.extract_strided_slice %199 {offsets = [0, 32], sizes = [16, 32], strides = [1, 1]} : vector<16x96xf32> to vector<16x32xf32>
    %203 = vector.shape_cast %202 : vector<16x32xf32> to vector<2x8x32xf32>
    %204 = vector.extract_strided_slice %199 {offsets = [0, 64], sizes = [16, 32], strides = [1, 1]} : vector<16x96xf32> to vector<16x32xf32>
    %205 = vector.shape_cast %204 : vector<16x32xf32> to vector<2x8x32xf32>
    %206 = vector.extract_strided_slice %201 {offsets = [0, 0, 0], sizes = [2, 8, 8], strides = [1, 1, 1]} : vector<2x8x32xf32> to vector<2x8x8xf32>
    %207 = vector.extract_strided_slice %203 {offsets = [0, 0, 0], sizes = [2, 8, 8], strides = [1, 1, 1]} : vector<2x8x32xf32> to vector<2x8x8xf32>
    %208 = vector.extract_strided_slice %205 {offsets = [0, 0, 0], sizes = [2, 8, 8], strides = [1, 1, 1]} : vector<2x8x32xf32> to vector<2x8x8xf32>
    "tpu.trace_start"() <{level = 10 : i32, message = "bqd,bkd->bqk"}> : () -> ()
    %cst_94 = arith.constant dense<0.000000e+00> : vector<2x8x8xf32>
    %209 = tpu.matmul %206, %207, %cst_94 {dimension_numbers = #tpu.dot_dimension_numbers<[2], [2], [1], [1], [0, 0, 0, 1, 1, 1], [0], [0]>} : vector<2x8x8xf32>, vector<2x8x8xf32>, vector<2x8x8xf32> -> vector<2x8x8xf32>
    "tpu.trace_stop"() : () -> ()
    %210 = arith.addf %209, %3 : vector<2x8x8xf32>
    %cst_95 = arith.constant dense<0xFF800000> : vector<2x8xf32>
    %211 = vector.multi_reduction <maximumf>, %210, %cst_95 [2] : vector<2x8x8xf32> to vector<2x8xf32>
    %212 = vector.shape_cast %211 : vector<2x8xf32> to vector<2x8x1xf32>
    %213 = vector.broadcast %212 : vector<2x8x1xf32> to vector<2x8x8xf32>
    %214 = arith.subf %210, %213 : vector<2x8x8xf32>
    %215 = math.exp %214 : vector<2x8x8xf32>
    %cst_96 = arith.constant dense<0.000000e+00> : vector<2x8xf32>
    %216 = vector.multi_reduction <add>, %215, %cst_96 [2] : vector<2x8x8xf32> to vector<2x8xf32>
    %217 = vector.shape_cast %216 : vector<2x8xf32> to vector<2x8x1xf32>
    %218 = vector.broadcast %217 : vector<2x8x1xf32> to vector<2x8x8xf32>
    %219 = arith.divf %215, %218 : vector<2x8x8xf32>
    "tpu.trace_start"() <{level = 10 : i32, message = "bqk,bkd->bqd"}> : () -> ()
    %cst_97 = arith.constant dense<0.000000e+00> : vector<2x8x8xf32>
    %220 = tpu.matmul %219, %208, %cst_97 {dimension_numbers = #tpu.dot_dimension_numbers<[2], [1], [1], [2], [0, 0, 0, 1, 1, 2], [0], [0]>} : vector<2x8x8xf32>, vector<2x8x8xf32>, vector<2x8x8xf32> -> vector<2x8x8xf32>
    "tpu.trace_stop"() : () -> ()
    %221 = vector.shape_cast %220 : vector<2x8x8xf32> to vector<16x8xf32>
    %c0_98 = arith.constant 0 : index
    %c0_99 = arith.constant 0 : index
    %222 = vector.load %arg21[%c0_98, %c0_99] : memref<16x32xf32, #tpu.memory_space<vmem>>, vector<16x8xf32>
    tpu.vector_store %arg21[%c0_98, %c0_99], %221 {strides = array<i32>} : memref<16x32xf32, #tpu.memory_space<vmem>>, vector<16x8xf32>,
    %223 = vector.extract_strided_slice %201 {offsets = [0, 0, 8], sizes = [2, 8, 8], strides = [1, 1, 1]} : vector<2x8x32xf32> to vector<2x8x8xf32>
    %224 = vector.extract_strided_slice %203 {offsets = [0, 0, 8], sizes = [2, 8, 8], strides = [1, 1, 1]} : vector<2x8x32xf32> to vector<2x8x8xf32>
    %225 = vector.extract_strided_slice %205 {offsets = [0, 0, 8], sizes = [2, 8, 8], strides = [1, 1, 1]} : vector<2x8x32xf32> to vector<2x8x8xf32>
    "tpu.trace_start"() <{level = 10 : i32, message = "bqd,bkd->bqk"}> : () -> ()
    %cst_100 = arith.constant dense<0.000000e+00> : vector<2x8x8xf32>
    %226 = tpu.matmul %223, %224, %cst_100 {dimension_numbers = #tpu.dot_dimension_numbers<[2], [2], [1], [1], [0, 0, 0, 1, 1, 1], [0], [0]>} : vector<2x8x8xf32>, vector<2x8x8xf32>, vector<2x8x8xf32> -> vector<2x8x8xf32>
    "tpu.trace_stop"() : () -> ()
    %227 = arith.addf %226, %3 : vector<2x8x8xf32>
    %cst_101 = arith.constant dense<0xFF800000> : vector<2x8xf32>
    %228 = vector.multi_reduction <maximumf>, %227, %cst_101 [2] : vector<2x8x8xf32> to vector<2x8xf32>
    %229 = vector.shape_cast %228 : vector<2x8xf32> to vector<2x8x1xf32>
    %230 = vector.broadcast %229 : vector<2x8x1xf32> to vector<2x8x8xf32>
    %231 = arith.subf %227, %230 : vector<2x8x8xf32>
    %232 = math.exp %231 : vector<2x8x8xf32>
    %cst_102 = arith.constant dense<0.000000e+00> : vector<2x8xf32>
    %233 = vector.multi_reduction <add>, %232, %cst_102 [2] : vector<2x8x8xf32> to vector<2x8xf32>
    %234 = vector.shape_cast %233 : vector<2x8xf32> to vector<2x8x1xf32>
    %235 = vector.broadcast %234 : vector<2x8x1xf32> to vector<2x8x8xf32>
    %236 = arith.divf %232, %235 : vector<2x8x8xf32>
    "tpu.trace_start"() <{level = 10 : i32, message = "bqk,bkd->bqd"}> : () -> ()
    %cst_103 = arith.constant dense<0.000000e+00> : vector<2x8x8xf32>
    %237 = tpu.matmul %236, %225, %cst_103 {dimension_numbers = #tpu.dot_dimension_numbers<[2], [1], [1], [2], [0, 0, 0, 1, 1, 2], [0], [0]>} : vector<2x8x8xf32>, vector<2x8x8xf32>, vector<2x8x8xf32> -> vector<2x8x8xf32>
    "tpu.trace_stop"() : () -> ()
    %238 = vector.shape_cast %237 : vector<2x8x8xf32> to vector<16x8xf32>
    %c0_104 = arith.constant 0 : index
    %c8_105 = arith.constant 8 : index
    %239 = vector.load %arg21[%c0_104, %c8_105] : memref<16x32xf32, #tpu.memory_space<vmem>>, vector<16x8xf32>
    tpu.vector_store %arg21[%c0_104, %c8_105], %238 {strides = array<i32>} : memref<16x32xf32, #tpu.memory_space<vmem>>, vector<16x8xf32>,
    %240 = vector.extract_strided_slice %201 {offsets = [0, 0, 16], sizes = [2, 8, 8], strides = [1, 1, 1]} : vector<2x8x32xf32> to vector<2x8x8xf32>
    %241 = vector.extract_strided_slice %203 {offsets = [0, 0, 16], sizes = [2, 8, 8], strides = [1, 1, 1]} : vector<2x8x32xf32> to vector<2x8x8xf32>
    %242 = vector.extract_strided_slice %205 {offsets = [0, 0, 16], sizes = [2, 8, 8], strides = [1, 1, 1]} : vector<2x8x32xf32> to vector<2x8x8xf32>
    "tpu.trace_start"() <{level = 10 : i32, message = "bqd,bkd->bqk"}> : () -> ()
    %cst_106 = arith.constant dense<0.000000e+00> : vector<2x8x8xf32>
    %243 = tpu.matmul %240, %241, %cst_106 {dimension_numbers = #tpu.dot_dimension_numbers<[2], [2], [1], [1], [0, 0, 0, 1, 1, 1], [0], [0]>} : vector<2x8x8xf32>, vector<2x8x8xf32>, vector<2x8x8xf32> -> vector<2x8x8xf32>
    "tpu.trace_stop"() : () -> ()
    %244 = arith.addf %243, %3 : vector<2x8x8xf32>
    %cst_107 = arith.constant dense<0xFF800000> : vector<2x8xf32>
    %245 = vector.multi_reduction <maximumf>, %244, %cst_107 [2] : vector<2x8x8xf32> to vector<2x8xf32>
    %246 = vector.shape_cast %245 : vector<2x8xf32> to vector<2x8x1xf32>
    %247 = vector.broadcast %246 : vector<2x8x1xf32> to vector<2x8x8xf32>
    %248 = arith.subf %244, %247 : vector<2x8x8xf32>
    %249 = math.exp %248 : vector<2x8x8xf32>
    %cst_108 = arith.constant dense<0.000000e+00> : vector<2x8xf32>
    %250 = vector.multi_reduction <add>, %249, %cst_108 [2] : vector<2x8x8xf32> to vector<2x8xf32>
    %251 = vector.shape_cast %250 : vector<2x8xf32> to vector<2x8x1xf32>
    %252 = vector.broadcast %251 : vector<2x8x1xf32> to vector<2x8x8xf32>
    %253 = arith.divf %249, %252 : vector<2x8x8xf32>
    "tpu.trace_start"() <{level = 10 : i32, message = "bqk,bkd->bqd"}> : () -> ()
    %cst_109 = arith.constant dense<0.000000e+00> : vector<2x8x8xf32>
    %254 = tpu.matmul %253, %242, %cst_109 {dimension_numbers = #tpu.dot_dimension_numbers<[2], [1], [1], [2], [0, 0, 0, 1, 1, 2], [0], [0]>} : vector<2x8x8xf32>, vector<2x8x8xf32>, vector<2x8x8xf32> -> vector<2x8x8xf32>
    "tpu.trace_stop"() : () -> ()
    %255 = vector.shape_cast %254 : vector<2x8x8xf32> to vector<16x8xf32>
    %c0_110 = arith.constant 0 : index
    %c16_111 = arith.constant 16 : index
    %256 = vector.load %arg21[%c0_110, %c16_111] : memref<16x32xf32, #tpu.memory_space<vmem>>, vector<16x8xf32>
    tpu.vector_store %arg21[%c0_110, %c16_111], %255 {strides = array<i32>} : memref<16x32xf32, #tpu.memory_space<vmem>>, vector<16x8xf32>,
    %257 = vector.extract_strided_slice %201 {offsets = [0, 0, 24], sizes = [2, 8, 8], strides = [1, 1, 1]} : vector<2x8x32xf32> to vector<2x8x8xf32>
    %258 = vector.extract_strided_slice %203 {offsets = [0, 0, 24], sizes = [2, 8, 8], strides = [1, 1, 1]} : vector<2x8x32xf32> to vector<2x8x8xf32>
    %259 = vector.extract_strided_slice %205 {offsets = [0, 0, 24], sizes = [2, 8, 8], strides = [1, 1, 1]} : vector<2x8x32xf32> to vector<2x8x8xf32>
    "tpu.trace_start"() <{level = 10 : i32, message = "bqd,bkd->bqk"}> : () -> ()
    %cst_112 = arith.constant dense<0.000000e+00> : vector<2x8x8xf32>
    %260 = tpu.matmul %257, %258, %cst_112 {dimension_numbers = #tpu.dot_dimension_numbers<[2], [2], [1], [1], [0, 0, 0, 1, 1, 1], [0], [0]>} : vector<2x8x8xf32>, vector<2x8x8xf32>, vector<2x8x8xf32> -> vector<2x8x8xf32>
    "tpu.trace_stop"() : () -> ()
    %261 = arith.addf %260, %3 : vector<2x8x8xf32>
    %cst_113 = arith.constant dense<0xFF800000> : vector<2x8xf32>
    %262 = vector.multi_reduction <maximumf>, %261, %cst_113 [2] : vector<2x8x8xf32> to vector<2x8xf32>
    %263 = vector.shape_cast %262 : vector<2x8xf32> to vector<2x8x1xf32>
    %264 = vector.broadcast %263 : vector<2x8x1xf32> to vector<2x8x8xf32>
    %265 = arith.subf %261, %264 : vector<2x8x8xf32>
    %266 = math.exp %265 : vector<2x8x8xf32>
    %cst_114 = arith.constant dense<0.000000e+00> : vector<2x8xf32>
    %267 = vector.multi_reduction <add>, %266, %cst_114 [2] : vector<2x8x8xf32> to vector<2x8xf32>
    %268 = vector.shape_cast %267 : vector<2x8xf32> to vector<2x8x1xf32>
    %269 = vector.broadcast %268 : vector<2x8x1xf32> to vector<2x8x8xf32>
    %270 = arith.divf %266, %269 : vector<2x8x8xf32>
    "tpu.trace_start"() <{level = 10 : i32, message = "bqk,bkd->bqd"}> : () -> ()
    %cst_115 = arith.constant dense<0.000000e+00> : vector<2x8x8xf32>
    %271 = tpu.matmul %270, %259, %cst_115 {dimension_numbers = #tpu.dot_dimension_numbers<[2], [1], [1], [2], [0, 0, 0, 1, 1, 2], [0], [0]>} : vector<2x8x8xf32>, vector<2x8x8xf32>, vector<2x8x8xf32> -> vector<2x8x8xf32>
    "tpu.trace_stop"() : () -> ()
    %272 = vector.shape_cast %271 : vector<2x8x8xf32> to vector<16x8xf32>
    %c0_116 = arith.constant 0 : index
    %c24_117 = arith.constant 24 : index
    %273 = vector.load %arg21[%c0_116, %c24_117] : memref<16x32xf32, #tpu.memory_space<vmem>>, vector<16x8xf32>
    tpu.vector_store %arg21[%c0_116, %c24_117], %272 {strides = array<i32>} : memref<16x32xf32, #tpu.memory_space<vmem>>, vector<16x8xf32>,
    %c0_118 = arith.constant 0 : index
    %c0_119 = arith.constant 0 : index
    %274 = vector.load %arg21[%c0_118, %c0_119] : memref<16x32xf32, #tpu.memory_space<vmem>>, vector<16x32xf32>
    %c1_120 = arith.constant 1 : index
    %c0_121 = arith.constant 0 : index
    %c0_122 = arith.constant 0 : index
    %275 = vector.load %arg6[%c1_120, %c0_121, %c0_122] : memref<2x32x32xf32, #tpu.memory_space<vmem>>, vector<1x32x32xf32>
    %276 = vector.shape_cast %275 : vector<1x32x32xf32> to vector<32x32xf32>
    %cst_123 = arith.constant dense<0.000000e+00> : vector<16x32xf32>
    %277 = tpu.matmul %274, %276, %cst_123 {dimension_numbers = #tpu.dot_dimension_numbers<[1], [0], [0], [1], [0, 0, 1, 1], [], []>} : vector<16x32xf32>, vector<32x32xf32>, vector<16x32xf32> -> vector<16x32xf32>
    %c1_124 = arith.constant 1 : index
    %c0_125 = arith.constant 0 : index
    %c0_126 = arith.constant 0 : index
    %278 = vector.load %arg7[%c1_124, %c0_125, %c0_126] : memref<2x1x32xf32, #tpu.memory_space<vmem>>, vector<1x1x32xf32>
    %279 = vector.shape_cast %278 : vector<1x1x32xf32> to vector<1x32xf32>
    %280 = vector.broadcast %279 : vector<1x32xf32> to vector<16x32xf32>
    %281 = arith.addf %277, %280 : vector<16x32xf32>
    %282 = arith.addf %281, %192 : vector<16x32xf32>
    %c1_127 = arith.constant 1 : index
    %c0_128 = arith.constant 0 : index
    %c0_129 = arith.constant 0 : index
    %283 = vector.load %arg8[%c1_127, %c0_128, %c0_129] : memref<2x1x32xf32, #tpu.memory_space<vmem>>, vector<1x1x32xf32>
    %284 = vector.shape_cast %283 : vector<1x1x32xf32> to vector<1x32xf32>
    %c1_130 = arith.constant 1 : index
    %c0_131 = arith.constant 0 : index
    %c0_132 = arith.constant 0 : index
    %285 = vector.load %arg9[%c1_130, %c0_131, %c0_132] : memref<2x1x32xf32, #tpu.memory_space<vmem>>, vector<1x1x32xf32>
    %286 = vector.shape_cast %285 : vector<1x1x32xf32> to vector<1x32xf32>
    %cst_133 = arith.constant dense<0.000000e+00> : vector<16xf32>
    %287 = vector.multi_reduction <add>, %282, %cst_133 [1] : vector<16x32xf32> to vector<16xf32>
    %288 = vector.shape_cast %287 : vector<16xf32> to vector<16x1xf32>
    %cst_134 = arith.constant 3.200000e+01 : f32
    %289 = vector.broadcast %cst_134 : f32 to vector<16x1xf32>
    %290 = arith.divf %288, %289 : vector<16x1xf32>
    %291 = vector.broadcast %290 : vector<16x1xf32> to vector<16x32xf32>
    %292 = arith.subf %282, %291 : vector<16x32xf32>
    %293 = arith.mulf %292, %292 : vector<16x32xf32>
    %cst_135 = arith.constant dense<0.000000e+00> : vector<16xf32>
    %294 = vector.multi_reduction <add>, %293, %cst_135 [1] : vector<16x32xf32> to vector<16xf32>
    %295 = vector.shape_cast %294 : vector<16xf32> to vector<16x1xf32>
    %cst_136 = arith.constant 3.200000e+01 : f32
    %296 = vector.broadcast %cst_136 : f32 to vector<16x1xf32>
    %297 = arith.divf %295, %296 : vector<16x1xf32>
    %298 = vector.broadcast %290 : vector<16x1xf32> to vector<16x32xf32>
    %299 = arith.subf %282, %298 : vector<16x32xf32>
    %cst_137 = arith.constant 9.99999996E-13 : f32
    %300 = vector.broadcast %cst_137 : f32 to vector<16x1xf32>
    %301 = arith.addf %297, %300 : vector<16x1xf32>
    %302 = math.rsqrt %301 : vector<16x1xf32>
    %303 = vector.broadcast %302 : vector<16x1xf32> to vector<16x32xf32>
    %304 = arith.mulf %299, %303 : vector<16x32xf32>
    %305 = vector.broadcast %284 : vector<1x32xf32> to vector<16x32xf32>
    %306 = arith.mulf %304, %305 : vector<16x32xf32>
    %307 = vector.broadcast %286 : vector<1x32xf32> to vector<16x32xf32>
    %308 = arith.addf %306, %307 : vector<16x32xf32>
    %c1_138 = arith.constant 1 : index
    %c0_139 = arith.constant 0 : index
    %c0_140 = arith.constant 0 : index
    %309 = vector.load %arg10[%c1_138, %c0_139, %c0_140] : memref<2x32x128xf32, #tpu.memory_space<vmem>>, vector<1x32x128xf32>
    %310 = vector.shape_cast %309 : vector<1x32x128xf32> to vector<32x128xf32>
    %cst_141 = arith.constant dense<0.000000e+00> : vector<16x128xf32>
    %311 = tpu.matmul %308, %310, %cst_141 {dimension_numbers = #tpu.dot_dimension_numbers<[1], [0], [0], [1], [0, 0, 1, 1], [], []>} : vector<16x32xf32>, vector<32x128xf32>, vector<16x128xf32> -> vector<16x128xf32>
    %c1_142 = arith.constant 1 : index
    %c0_143 = arith.constant 0 : index
    %c0_144 = arith.constant 0 : index
    %312 = vector.load %arg11[%c1_142, %c0_143, %c0_144] : memref<2x1x128xf32, #tpu.memory_space<vmem>>, vector<1x1x128xf32>
    %313 = vector.shape_cast %312 : vector<1x1x128xf32> to vector<1x128xf32>
    %314 = vector.broadcast %313 : vector<1x128xf32> to vector<16x128xf32>
    %315 = arith.addf %311, %314 : vector<16x128xf32>
    %cst_145 = arith.constant 5.000000e-01 : f32
    %316 = vector.broadcast %cst_145 : f32 to vector<16x128xf32>
    %317 = arith.mulf %316, %315 : vector<16x128xf32>
    %cst_146 = arith.constant 0.707106769 : f32
    %318 = vector.broadcast %cst_146 : f32 to vector<16x128xf32>
    %319 = arith.mulf %315, %318 : vector<16x128xf32>
    %320 = math.erf %319 : vector<16x128xf32>
    %cst_147 = arith.constant 1.000000e+00 : f32
    %321 = vector.broadcast %cst_147 : f32 to vector<16x128xf32>
    %322 = arith.addf %321, %320 : vector<16x128xf32>
    %323 = arith.mulf %317, %322 : vector<16x128xf32>
    %c1_148 = arith.constant 1 : index
    %c0_149 = arith.constant 0 : index
    %c0_150 = arith.constant 0 : index
    %324 = vector.load %arg12[%c1_148, %c0_149, %c0_150] : memref<2x128x32xf32, #tpu.memory_space<vmem>>, vector<1x128x32xf32>
    %325 = vector.shape_cast %324 : vector<1x128x32xf32> to vector<128x32xf32>
    %cst_151 = arith.constant dense<0.000000e+00> : vector<16x32xf32>
    %326 = tpu.matmul %323, %325, %cst_151 {dimension_numbers = #tpu.dot_dimension_numbers<[1], [0], [0], [1], [0, 0, 1, 1], [], []>} : vector<16x128xf32>, vector<128x32xf32>, vector<16x32xf32> -> vector<16x32xf32>
    %c1_152 = arith.constant 1 : index
    %c0_153 = arith.constant 0 : index
    %c0_154 = arith.constant 0 : index
    %327 = vector.load %arg13[%c1_152, %c0_153, %c0_154] : memref<2x1x32xf32, #tpu.memory_space<vmem>>, vector<1x1x32xf32>
    %328 = vector.shape_cast %327 : vector<1x1x32xf32> to vector<1x32xf32>
    %329 = vector.broadcast %328 : vector<1x32xf32> to vector<16x32xf32>
    %330 = arith.addf %326, %329 : vector<16x32xf32>
    %331 = arith.addf %330, %308 : vector<16x32xf32>
    %c1_155 = arith.constant 1 : index
    %c0_156 = arith.constant 0 : index
    %c0_157 = arith.constant 0 : index
    %332 = vector.load %arg14[%c1_155, %c0_156, %c0_157] : memref<2x1x32xf32, #tpu.memory_space<vmem>>, vector<1x1x32xf32>
    %333 = vector.shape_cast %332 : vector<1x1x32xf32> to vector<1x32xf32>
    %c1_158 = arith.constant 1 : index
    %c0_159 = arith.constant 0 : index
    %c0_160 = arith.constant 0 : index
    %334 = vector.load %arg15[%c1_158, %c0_159, %c0_160] : memref<2x1x32xf32, #tpu.memory_space<vmem>>, vector<1x1x32xf32>
    %335 = vector.shape_cast %334 : vector<1x1x32xf32> to vector<1x32xf32>
    %cst_161 = arith.constant dense<0.000000e+00> : vector<16xf32>
    %336 = vector.multi_reduction <add>, %331, %cst_161 [1] : vector<16x32xf32> to vector<16xf32>
    %337 = vector.shape_cast %336 : vector<16xf32> to vector<16x1xf32>
    %cst_162 = arith.constant 3.200000e+01 : f32
    %338 = vector.broadcast %cst_162 : f32 to vector<16x1xf32>
    %339 = arith.divf %337, %338 : vector<16x1xf32>
    %340 = vector.broadcast %339 : vector<16x1xf32> to vector<16x32xf32>
    %341 = arith.subf %331, %340 : vector<16x32xf32>
    %342 = arith.mulf %341, %341 : vector<16x32xf32>
    %cst_163 = arith.constant dense<0.000000e+00> : vector<16xf32>
    %343 = vector.multi_reduction <add>, %342, %cst_163 [1] : vector<16x32xf32> to vector<16xf32>
    %344 = vector.shape_cast %343 : vector<16xf32> to vector<16x1xf32>
    %cst_164 = arith.constant 3.200000e+01 : f32
    %345 = vector.broadcast %cst_164 : f32 to vector<16x1xf32>
    %346 = arith.divf %344, %345 : vector<16x1xf32>
    %347 = vector.broadcast %339 : vector<16x1xf32> to vector<16x32xf32>
    %348 = arith.subf %331, %347 : vector<16x32xf32>
    %cst_165 = arith.constant 9.99999996E-13 : f32
    %349 = vector.broadcast %cst_165 : f32 to vector<16x1xf32>
    %350 = arith.addf %346, %349 : vector<16x1xf32>
    %351 = math.rsqrt %350 : vector<16x1xf32>
    %352 = vector.broadcast %351 : vector<16x1xf32> to vector<16x32xf32>
    %353 = arith.mulf %348, %352 : vector<16x32xf32>
    %354 = vector.broadcast %333 : vector<1x32xf32> to vector<16x32xf32>
    %355 = arith.mulf %353, %354 : vector<16x32xf32>
    %356 = vector.broadcast %335 : vector<1x32xf32> to vector<16x32xf32>
    %357 = arith.addf %355, %356 : vector<16x32xf32>
    %358 = vector.shape_cast %357 : vector<16x32xf32> to vector<2x8x32xf32>
    %359 = vector.extract_strided_slice %358 {offsets = [0, 0, 0], sizes = [2, 1, 32], strides = [1, 1, 1]} : vector<2x8x32xf32> to vector<2x1x32xf32>
    %360 = vector.shape_cast %359 : vector<2x1x32xf32> to vector<2x32xf32>
    %c0_166 = arith.constant 0 : index
    %c0_167 = arith.constant 0 : index
    %361 = vector.load %arg16[%c0_166, %c0_167] : memref<32x32xf32, #tpu.memory_space<vmem>>, vector<32x32xf32>
    %cst_168 = arith.constant dense<0.000000e+00> : vector<2x32xf32>
    %362 = tpu.matmul %360, %361, %cst_168 {dimension_numbers = #tpu.dot_dimension_numbers<[1], [0], [0], [1], [0, 0, 1, 1], [], []>} : vector<2x32xf32>, vector<32x32xf32>, vector<2x32xf32> -> vector<2x32xf32>
    %c0_169 = arith.constant 0 : index
    %c0_170 = arith.constant 0 : index
    %363 = vector.load %arg17[%c0_169, %c0_170] : memref<1x32xf32, #tpu.memory_space<vmem>>, vector<1x32xf32>
    %364 = vector.broadcast %363 : vector<1x32xf32> to vector<2x32xf32>
    %365 = arith.addf %362, %364 : vector<2x32xf32>
    %cst_171 = arith.constant 0.000000e+00 : f32
    %366 = vector.broadcast %cst_171 : f32 to vector<2x32xf32>
    %367 = arith.maximumf %365, %366 : vector<2x32xf32>
    %c0_172 = arith.constant 0 : index
    %c0_173 = arith.constant 0 : index
    %368 = vector.load %arg18[%c0_172, %c0_173] : memref<32x3xf32, #tpu.memory_space<vmem>>, vector<32x3xf32>
    %cst_174 = arith.constant dense<0.000000e+00> : vector<2x3xf32>
    %369 = tpu.matmul %367, %368, %cst_174 {dimension_numbers = #tpu.dot_dimension_numbers<[1], [0], [0], [1], [0, 0, 1, 1], [], []>} : vector<2x32xf32>, vector<32x3xf32>, vector<2x3xf32> -> vector<2x3xf32>
    %c0_175 = arith.constant 0 : index
    %c0_176 = arith.constant 0 : index
    %370 = vector.load %arg19[%c0_175, %c0_176] : memref<1x3xf32, #tpu.memory_space<vmem>>, vector<1x3xf32>
    %371 = vector.broadcast %370 : vector<1x3xf32> to vector<2x3xf32>
    %372 = arith.addf %369, %371 : vector<2x3xf32>
    %c0_177 = arith.constant 0 : index
    %c0_178 = arith.constant 0 : index
    %373 = vector.load %arg20[%c0_177, %c0_178] : memref<2x3xf32, #tpu.memory_space<vmem>>, vector<2x3xf32>
    tpu.vector_store %arg20[%c0_177, %c0_178], %372 {strides = array<i32>} : memref<2x3xf32, #tpu.memory_space<vmem>>, vector<2x3xf32>,
    return
  }
}

</mosaic_0001>

<llo_original>
// kernel: distilbert_sem_forward.1
$region0: #{distilbert_sem_forward.1}
  #allocation0 [shape = 'u32[]', space=smem, size = 0x4, offset = 0x4, fixed_abs, tag = 'smem constant byte address 0x4 - core index']
  #allocation1 [shape = 'u32[144,128]{1,0:T(1,128)}', space=vmem, size = 0x12000, scoped, tag = 'internal scratch']
  #allocation2 [shape = 'f32[16,32]{1,0:T(8,128)}', space=vmem, size = 0x2000, scoped, tag = 'scratch operand']
  %s0 = inlined_call_operand.vmem [shape: f32[16,32], index: 0, kind: input, shape index: {}]
  %s1 = inlined_call_operand.vmem [shape: f32[2,1,8], index: 1, kind: input, shape index: {}]
  %s2 = inlined_call_operand.vmem [shape: f32[1,32], index: 2, kind: input, shape index: {}]
  %s3 = inlined_call_operand.vmem [shape: f32[1,32], index: 3, kind: input, shape index: {}]
  %s4 = inlined_call_operand.vmem [shape: f32[2,32,96], index: 4, kind: input, shape index: {}]
  %s5 = inlined_call_operand.vmem [shape: f32[2,1,96], index: 5, kind: input, shape index: {}]
  %s6 = inlined_call_operand.vmem [shape: f32[2,32,32], index: 6, kind: input, shape index: {}]
  %s7 = inlined_call_operand.vmem [shape: f32[2,1,32], index: 7, kind: input, shape index: {}]
  %s8 = inlined_call_operand.vmem [shape: f32[2,1,32], index: 8, kind: input, shape index: {}]
  %s9 = inlined_call_operand.vmem [shape: f32[2,1,32], index: 9, kind: input, shape index: {}]
  %s10 = inlined_call_operand.vmem [shape: f32[2,32,128], index: 10, kind: input, shape index: {}]
  %s11 = inlined_call_operand.vmem [shape: f32[2,1,128], index: 11, kind: input, shape index: {}]
  %s12 = inlined_call_operand.vmem [shape: f32[2,128,32], index: 12, kind: input, shape index: {}]
  %s13 = inlined_call_operand.vmem [shape: f32[2,1,32], index: 13, kind: input, shape index: {}]
  %s14 = inlined_call_operand.vmem [shape: f32[2,1,32], index: 14, kind: input, shape index: {}]
  %s15 = inlined_call_operand.vmem [shape: f32[2,1,32], index: 15, kind: input, shape index: {}]
  %s16 = inlined_call_operand.vmem [shape: f32[32,32], index: 16, kind: input, shape index: {}]
  %s17 = inlined_call_operand.vmem [shape: f32[1,32], index: 17, kind: input, shape index: {}]
  %s18 = inlined_call_operand.vmem [shape: f32[32,3], index: 18, kind: input, shape index: {}]
  %s19 = inlined_call_operand.vmem [shape: f32[1,3], index: 19, kind: input, shape index: {}]
  %s20 = inlined_call_operand.vmem [shape: f32[2,3], index: 20, kind: output, shape index: {}]
  %s21 = sld [smem:[#allocation0]]
  $region90: #{distilbert_sem_forward.1} parent=0
    _
  %s23 = ssub.s32 1, %s21
  %s24 = scalar_select 0, %s23, %s21
  // Predicated region
  $region2: #{distilbert_sem_forward.1} parent=0 // pred_check
    _
  $region3: #{distilbert_sem_forward.1} parent=0 // pred_check_branch
    %26 = sbr.rel (0) target = $region5
  $region4: #{distilbert_sem_forward.1} parent=0 // pred_region
    _
  $region5: #{distilbert_sem_forward.1} parent=0 // pred_fallthru
    _
  // Predicated region
  $region6: #{distilbert_sem_forward.1} parent=0 // pred_check
    _
  $region7: #{distilbert_sem_forward.1} parent=0 // pred_check_branch
    %28 = sbr.rel (0) target = $region9
  $region8: #{distilbert_sem_forward.1} parent=0 // pred_region
    _
  $region9: #{distilbert_sem_forward.1} parent=0 // pred_fallthru
    _
  // Predicated region
  $region10: #{distilbert_sem_forward.1} parent=0 // pred_check
    _
  $region11: #{distilbert_sem_forward.1} parent=0 // pred_check_branch
    %30 = sbr.rel (0) target = $region13
  $region12: #{distilbert_sem_forward.1} parent=0 // pred_region
    _
  $region13: #{distilbert_sem_forward.1} parent=0 // pred_fallthru
    _
  // Predicated region
  $region14: #{distilbert_sem_forward.1} parent=0 // pred_check
    _
  $region15: #{distilbert_sem_forward.1} parent=0 // pred_check_branch
    %32 = sbr.rel (0) target = $region17
  $region16: #{distilbert_sem_forward.1} parent=0 // pred_region
    _
  $region17: #{distilbert_sem_forward.1} parent=0 // pred_fallthru
    _
  // Predicated region
  $region18: #{distilbert_sem_forward.1} parent=0 // pred_check
    _
  $region19: #{distilbert_sem_forward.1} parent=0 // pred_check_branch
    %34 = sbr.rel (0) target = $region21
  $region20: #{distilbert_sem_forward.1} parent=0 // pred_region
    _
  $region21: #{distilbert_sem_forward.1} parent=0 // pred_fallthru
    _
  // Predicated region
  $region22: #{distilbert_sem_forward.1} parent=0 // pred_check
    _
  $region23: #{distilbert_sem_forward.1} parent=0 // pred_check_branch
    %36 = sbr.rel (0) target = $region25
  $region24: #{distilbert_sem_forward.1} parent=0 // pred_region
    _
  $region25: #{distilbert_sem_forward.1} parent=0 // pred_fallthru
    _
  // Predicated region
  $region26: #{distilbert_sem_forward.1} parent=0 // pred_check
    _
  $region27: #{distilbert_sem_forward.1} parent=0 // pred_check_branch
    %38 = sbr.rel (0) target = $region29
  $region28: #{distilbert_sem_forward.1} parent=0 // pred_region
    _
  $region29: #{distilbert_sem_forward.1} parent=0 // pred_fallthru
    _
  // Predicated region
  $region30: #{distilbert_sem_forward.1} parent=0 // pred_check
    _
  $region31: #{distilbert_sem_forward.1} parent=0 // pred_check_branch
    %40 = sbr.rel (0) target = $region33
  $region32: #{distilbert_sem_forward.1} parent=0 // pred_region
    _
  $region33: #{distilbert_sem_forward.1} parent=0 // pred_fallthru
    _
  // Predicated region
  $region34: #{distilbert_sem_forward.1} parent=0 // pred_check
    _
  $region35: #{distilbert_sem_forward.1} parent=0 // pred_check_branch
    %42 = sbr.rel (0) target = $region37
  $region36: #{distilbert_sem_forward.1} parent=0 // pred_region
    _
  $region37: #{distilbert_sem_forward.1} parent=0 // pred_fallthru
    _
  // Predicated region
  $region38: #{distilbert_sem_forward.1} parent=0 // pred_check
    _
  $region39: #{distilbert_sem_forward.1} parent=0 // pred_check_branch
    %44 = sbr.rel (0) target = $region41
  $region40: #{distilbert_sem_forward.1} parent=0 // pred_region
    _
  $region41: #{distilbert_sem_forward.1} parent=0 // pred_fallthru
    _
  // Predicated region
  $region42: #{distilbert_sem_forward.1} parent=0 // pred_check
    _
  $region43: #{distilbert_sem_forward.1} parent=0 // pred_check_branch
    %46 = sbr.rel (0) target = $region45
  $region44: #{distilbert_sem_forward.1} parent=0 // pred_region
    _
  $region45: #{distilbert_sem_forward.1} parent=0 // pred_fallthru
    _
  // Predicated region
  $region46: #{distilbert_sem_forward.1} parent=0 // pred_check
    _
  $region47: #{distilbert_sem_forward.1} parent=0 // pred_check_branch
    %48 = sbr.rel (0) target = $region49
  $region48: #{distilbert_sem_forward.1} parent=0 // pred_region
    _
  $region49: #{distilbert_sem_forward.1} parent=0 // pred_fallthru
    _
  // Predicated region
  $region50: #{distilbert_sem_forward.1} parent=0 // pred_check
    _
  $region51: #{distilbert_sem_forward.1} parent=0 // pred_check_branch
    %50 = sbr.rel (0) target = $region53
  $region52: #{distilbert_sem_forward.1} parent=0 // pred_region
    _
  $region53: #{distilbert_sem_forward.1} parent=0 // pred_fallthru
    _
  // Predicated region
  $region54: #{distilbert_sem_forward.1} parent=0 // pred_check
    _
  $region55: #{distilbert_sem_forward.1} parent=0 // pred_check_branch
    %52 = sbr.rel (0) target = $region57
  $region56: #{distilbert_sem_forward.1} parent=0 // pred_region
    _
  $region57: #{distilbert_sem_forward.1} parent=0 // pred_fallthru
    _
  // Predicated region
  $region58: #{distilbert_sem_forward.1} parent=0 // pred_check
    _
  $region59: #{distilbert_sem_forward.1} parent=0 // pred_check_branch
    %54 = sbr.rel (0) target = $region61
  $region60: #{distilbert_sem_forward.1} parent=0 // pred_region
    _
  $region61: #{distilbert_sem_forward.1} parent=0 // pred_fallthru
    _
  // Predicated region
  $region62: #{distilbert_sem_forward.1} parent=0 // pred_check
    _
  $region63: #{distilbert_sem_forward.1} parent=0 // pred_check_branch
    %56 = sbr.rel (0) target = $region65
  $region64: #{distilbert_sem_forward.1} parent=0 // pred_region
    _
  $region65: #{distilbert_sem_forward.1} parent=0 // pred_fallthru
    _
  // Predicated region
  $region66: #{distilbert_sem_forward.1} parent=0 // pred_check
    _
  $region67: #{distilbert_sem_forward.1} parent=0 // pred_check_branch
    %58 = sbr.rel (0) target = $region69
  $region68: #{distilbert_sem_forward.1} parent=0 // pred_region
    _
  $region69: #{distilbert_sem_forward.1} parent=0 // pred_fallthru
    _
  // Predicated region
  $region70: #{distilbert_sem_forward.1} parent=0 // pred_check
    _
  $region71: #{distilbert_sem_forward.1} parent=0 // pred_check_branch
    %60 = sbr.rel (0) target = $region73
  $region72: #{distilbert_sem_forward.1} parent=0 // pred_region
    _
  $region73: #{distilbert_sem_forward.1} parent=0 // pred_fallthru
    _
  // Predicated region
  $region74: #{distilbert_sem_forward.1} parent=0 // pred_check
    _
  $region75: #{distilbert_sem_forward.1} parent=0 // pred_check_branch
    %62 = sbr.rel (0) target = $region77
  $region76: #{distilbert_sem_forward.1} parent=0 // pred_region
    _
  $region77: #{distilbert_sem_forward.1} parent=0 // pred_fallthru
    _
  // Predicated region
  $region78: #{distilbert_sem_forward.1} parent=0 // pred_check
    _
  $region79: #{distilbert_sem_forward.1} parent=0 // pred_check_branch
    %64 = sbr.rel (0) target = $region81
  $region80: #{distilbert_sem_forward.1} parent=0 // pred_region
    _
  $region81: #{distilbert_sem_forward.1} parent=0 // pred_fallthru
    _
  %v65 = vld [vmem:[%s0] sm:$0xff]
  %v66 = vld [vmem:[%s0 + $0x8] sm:$0xff]
  %v67 = vld [vmem:[%s1] sm:$0x1]
  %v68 = vld [vmem:[%s1 + $0x1] sm:$0x1]
  %v71 = vlaneseq
  %v72 = vshrl.u32 %v71, 7
  %v73 = vsub.s32 0, %v72
  %v74 = vrot.slane %v67, %v73
  %v75 = vlaneseq
  %v76 = vshrl.u32 %v75, 7
  %v77 = vsub.s32 0, %v76
  %v78 = vrot.slane %v68, %v77
  %v81 = vld [vmem:[%s2] sm:$0x1]
  %v82 = vld [vmem:[%s3] sm:$0x1]
  %vm83 = vcmask 261120
  %v84 = vsel %vm83, %v65, 0.0
  %85 = vadd.xlane.f32.xlu0 %v84
  %v86 = vpop.xlane.xlu0 %85
  %v87 = vsel %vm83, %v66, 0.0
  %88 = vadd.xlane.f32.xlu0 %v87
  %v89 = vpop.xlane.xlu0 %88
  %v90 = vrcp.pop 32.0
  %v91 = vmul.f32 %v86, %v90
  %v92 = vmul.f32 %v89, %v90
  %v93 = vsub.f32 %v65, %v91
  %v94 = vsub.f32 %v66, %v92
  %v95 = vmul.f32 %v93, %v93
  %v96 = vmul.f32 %v94, %v94
  %v97 = vsel %vm83, %v95, 0.0
  %98 = vadd.xlane.f32.xlu0 %v97
  %v99 = vpop.xlane.xlu0 %98
  %v100 = vsel %vm83, %v96, 0.0
  %101 = vadd.xlane.f32.xlu0 %v100
  %v102 = vpop.xlane.xlu0 %101
  %v103 = vmul.f32 %v99, %v90
  %v104 = vmul.f32 %v102, %v90
  %v105 = vadd.f32 %v103, 1e-12
  %v106 = vadd.f32 %v104, 1e-12
  %v107 = vrsqrt.pop %v105
  %v108 = vrsqrt.pop %v106
  %v109 = vmul.f32 %v93, %v107
  %v110 = vmul.f32 %v94, %v108
  %v112 = vlaneseq
  %v113 = vshrl.u32 %v112, 7
  %v114 = vsub.s32 0, %v113
  %v115 = vrot.slane %v81, %v114
  %v117 = vmul.f32 %v109, %v115
  %v118 = vmul.f32 %v110, %v115
  %v120 = vlaneseq
  %v121 = vshrl.u32 %v120, 7
  %v122 = vsub.s32 0, %v121
  %v123 = vrot.slane %v82, %v122
  %v125 = vadd.f32 %v117, %v123
  %v126 = vadd.f32 %v118, %v123
  %v127 = vld [vmem:[%s4] sm:$0xff]
  %v128 = vld [vmem:[%s4 + $0x8] sm:$0xff]
  %v129 = vld [vmem:[%s4 + $0x10] sm:$0xff]
  %v130 = vld [vmem:[%s4 + $0x18] sm:$0xff]
  %v131 = vld [vmem:[%s5] sm:$0x1]
  %v133 = vlaneseq
  %v134 = vshrl.u32 %v133, 7
  %v135 = vsub.s32 0, %v134
  %v136 = vrot.slane %v131, %v135
  %v139 = vsel %vm83, %v125, 0
  %v142 = vsel %vm83, %v126, 0
  %144 = vmatprep.subr.mxu0 0.0
  %145 = vmatpush1.msra.mxu0 %v127
  %146 = vmatprep.subr.mxu0 0.0
  %147 = vmatpush1.msra.mxu0 %v128
  %148 = vmatprep.subr.mxu0 0.0
  %149 = vmatpush1.msra.mxu0 %v129
  %150 = vmatprep.subr.mxu0 0.0
  %151 = vmatpush1.msra.mxu0 %v130
  %152 = vmatprep.subr.mxu0 0.0
  %153 = vmatpush1.msra.mxu0 0.0
  %154 = vmatprep.subr.mxu0 0.0
  %155 = vmatpush1.msra.mxu0 0.0
  %156 = vmatprep.subr.mxu0 0.0
  %157 = vmatpush1.msra.mxu0 0.0
  %158 = vmatprep.subr.mxu0 0.0
  %159 = vmatpush1.msra.mxu0 0.0
  %160 = vmatprep.subr.mxu0 0.0
  %161 = vmatpush1.msra.mxu0 0.0
  %162 = vmatprep.subr.mxu0 0.0
  %163 = vmatpush1.msra.mxu0 0.0
  %164 = vmatprep.subr.mxu0 0.0
  %165 = vmatpush1.msra.mxu0 0.0
  %166 = vmatprep.subr.mxu0 0.0
  %167 = vmatpush1.msra.mxu0 0.0
  %168 = vmatprep.subr.mxu0 0.0
  %169 = vmatpush1.msra.mxu0 0.0
  %170 = vmatprep.subr.mxu0 0.0
  %171 = vmatpush1.msra.mxu0 0.0
  %172 = vmatprep.subr.mxu0 0.0
  %173 = vmatpush1.msra.mxu0 0.0
  %174 = vmatprep.subr.mxu0 0.0
  %175 = vmatpush1.msra.mxu0 0.0
  %176 = vmatprep.subr.mxu0 0.0
  %177 = vmatpush1.msra.mxu0 0.0
  %178 = vmatprep.subr.mxu0 0.0
  %179 = vmatpush1.msra.mxu0 0.0
  %180 = vmatprep.subr.mxu0 0.0
  %181 = vmatpush1.msra.mxu0 0.0
  %182 = vmatprep.subr.mxu0 0.0
  %183 = vmatpush1.msra.mxu0 0.0
  %184 = vmatprep.subr.mxu0 0.0
  %185 = vmatpush1.msra.mxu0 0.0
  %186 = vmatprep.subr.mxu0 0.0
  %187 = vmatpush1.msra.mxu0 0.0
  %188 = vmatprep.subr.mxu0 0.0
  %189 = vmatpush1.msra.mxu0 0.0
  %190 = vmatprep.subr.mxu0 0.0
  %191 = vmatpush1.msra.mxu0 0.0
  %192 = vmatprep.subr.mxu0 0.0
  %193 = vmatpush1.msra.mxu0 0.0
  %194 = vmatprep.subr.mxu0 0.0
  %195 = vmatpush1.msra.mxu0 0.0
  %196 = vmatprep.subr.mxu0 0.0
  %197 = vmatpush1.msra.mxu0 0.0
  %198 = vmatprep.subr.mxu0 0.0
  %199 = vmatpush1.msra.mxu0 0.0
  %200 = vmatprep.subr.mxu0 0.0
  %201 = vmatpush1.msra.mxu0 0.0
  %202 = vmatprep.subr.mxu0 0.0
  %203 = vmatpush1.msra.mxu0 0.0
  %204 = vmatprep.subr.mxu0 0.0
  %205 = vmatpush1.msra.mxu0 0.0
  %206 = vmatprep.subr.mxu0 0.0
  %207 = vmatpush1.msra.mxu0 0.0
  %208 = vmatprep.mubr.f32.mxu0 0.0
  %209 = vmatmul.mubr.f32.gmra.mrb[0].mxu0 %v139
  %v210 = vpop.f32.mrb[0].mxu0
  %v211 = vadd.f32 %v136, %v210
  %v212 = vpop.f32.mrb[0].mxu0
  %213 = vmatprep.mubr.f32.mxu0 0.0
  %214 = vmatmul.mubr.f32.gmra.mrb[0].mxu0 %v142
  %v215 = vpop.f32.mrb[0].mxu0
  %v216 = vadd.f32 %v136, %v215
  %v217 = vpop.f32.mrb[0].mxu0
  %218 = vdwg.mxu0
  %220 = vrot.lane.b32.xlu0 %v211, 96
  %v221 = vpop.permute.xlu0 %220
  %vm222 = vcmask 64512
  %v223 = vsel %vm222, %v211, 0
  %v225 = vsel %vm222, %v221, 0
  %227 = vmatprep.subr.mxu0 0.0
  %228 = vmatpush1.xpose.msra.mxu0 %v225
  %229 = vmatprep.subr.mxu0 0.0
  %230 = vmatpush1.xpose.msra.mxu0 0.0
  %231 = vmatprep.subr.mxu0 0.0
  %232 = vmatpush1.xpose.msra.mxu0 0.0
  %233 = vmatprep.subr.mxu0 0.0
  %234 = vmatpush1.xpose.msra.mxu0 0.0
  %235 = vmatprep.subr.mxu0 0.0
  %236 = vmatpush1.xpose.msra.mxu0 0.0
  %237 = vmatprep.subr.mxu0 0.0
  %238 = vmatpush1.xpose.msra.mxu0 0.0
  %239 = vmatprep.subr.mxu0 0.0
  %240 = vmatpush1.xpose.msra.mxu0 0.0
  %241 = vmatprep.subr.mxu0 0.0
  %242 = vmatpush1.xpose.msra.mxu0 0.0
  %243 = vmatprep.subr.mxu0 0.0
  %244 = vmatpush1.xpose.msra.mxu0 0.0
  %245 = vmatprep.subr.mxu0 0.0
  %246 = vmatpush1.xpose.msra.mxu0 0.0
  %247 = vmatprep.subr.mxu0 0.0
  %248 = vmatpush1.xpose.msra.mxu0 0.0
  %249 = vmatprep.subr.mxu0 0.0
  %250 = vmatpush1.xpose.msra.mxu0 0.0
  %251 = vmatprep.subr.mxu0 0.0
  %252 = vmatpush1.xpose.msra.mxu0 0.0
  %253 = vmatprep.subr.mxu0 0.0
  %254 = vmatpush1.xpose.msra.mxu0 0.0
  %255 = vmatprep.subr.mxu0 0.0
  %256 = vmatpush1.xpose.msra.mxu0 0.0
  %257 = vmatprep.subr.mxu0 0.0
  %258 = vmatpush1.xpose.msra.mxu0 0.0
  %259 = vmatprep.subr.mxu0 0.0
  %260 = vmatpush1.xpose.msra.mxu0 0.0
  %261 = vmatprep.subr.mxu0 0.0
  %262 = vmatpush1.xpose.msra.mxu0 0.0
  %263 = vmatprep.subr.mxu0 0.0
  %264 = vmatpush1.xpose.msra.mxu0 0.0
  %265 = vmatprep.subr.mxu0 0.0
  %266 = vmatpush1.xpose.msra.mxu0 0.0
  %267 = vmatprep.subr.mxu0 0.0
  %268 = vmatpush1.xpose.msra.mxu0 0.0
  %269 = vmatprep.subr.mxu0 0.0
  %270 = vmatpush1.xpose.msra.mxu0 0.0
  %271 = vmatprep.subr.mxu0 0.0
  %272 = vmatpush1.xpose.msra.mxu0 0.0
  %273 = vmatprep.subr.mxu0 0.0
  %274 = vmatpush1.xpose.msra.mxu0 0.0
  %275 = vmatprep.subr.mxu0 0.0
  %276 = vmatpush1.xpose.msra.mxu0 0.0
  %277 = vmatprep.subr.mxu0 0.0
  %278 = vmatpush1.xpose.msra.mxu0 0.0
  %279 = vmatprep.subr.mxu0 0.0
  %280 = vmatpush1.xpose.msra.mxu0 0.0
  %281 = vmatprep.subr.mxu0 0.0
  %282 = vmatpush1.xpose.msra.mxu0 0.0
  %283 = vmatprep.subr.mxu0 0.0
  %284 = vmatpush1.xpose.msra.mxu0 0.0
  %285 = vmatprep.subr.mxu0 0.0
  %286 = vmatpush1.xpose.msra.mxu0 0.0
  %287 = vmatprep.subr.mxu0 0.0
  %288 = vmatpush1.xpose.msra.mxu0 0.0
  %289 = vmatprep.subr.mxu0 0.0
  %290 = vmatpush1.xpose.msra.mxu0 0.0
  %291 = vmatprep.mubr.f32.mxu0 0.0
  %292 = vmatmul.mubr.f32.gmra.mrb[0].mxu0 %v223
  %v293 = vpop.f32.mrb[0].mxu0
  %v294 = vadd.f32 %v74, %v293
  %v295 = vpop.f32.mrb[0].mxu0
  %296 = vdwg.mxu0
  %298 = vrot.lane.b32.xlu0 %v216, 96
  %v299 = vpop.permute.xlu0 %298
  %v300 = vsel %vm222, %v216, 0
  %v302 = vsel %vm222, %v299, 0
  %304 = vmatprep.subr.mxu0 0.0
  %305 = vmatpush1.xpose.msra.mxu0 %v302
  %306 = vmatprep.subr.mxu0 0.0
  %307 = vmatpush1.xpose.msra.mxu0 0.0
  %308 = vmatprep.subr.mxu0 0.0
  %309 = vmatpush1.xpose.msra.mxu0 0.0
  %310 = vmatprep.subr.mxu0 0.0
  %311 = vmatpush1.xpose.msra.mxu0 0.0
  %312 = vmatprep.subr.mxu0 0.0
  %313 = vmatpush1.xpose.msra.mxu0 0.0
  %314 = vmatprep.subr.mxu0 0.0
  %315 = vmatpush1.xpose.msra.mxu0 0.0
  %316 = vmatprep.subr.mxu0 0.0
  %317 = vmatpush1.xpose.msra.mxu0 0.0
  %318 = vmatprep.subr.mxu0 0.0
  %319 = vmatpush1.xpose.msra.mxu0 0.0
  %320 = vmatprep.subr.mxu0 0.0
  %321 = vmatpush1.xpose.msra.mxu0 0.0
  %322 = vmatprep.subr.mxu0 0.0
  %323 = vmatpush1.xpose.msra.mxu0 0.0
  %324 = vmatprep.subr.mxu0 0.0
  %325 = vmatpush1.xpose.msra.mxu0 0.0
  %326 = vmatprep.subr.mxu0 0.0
  %327 = vmatpush1.xpose.msra.mxu0 0.0
  %328 = vmatprep.subr.mxu0 0.0
  %329 = vmatpush1.xpose.msra.mxu0 0.0
  %330 = vmatprep.subr.mxu0 0.0
  %331 = vmatpush1.xpose.msra.mxu0 0.0
  %332 = vmatprep.subr.mxu0 0.0
  %333 = vmatpush1.xpose.msra.mxu0 0.0
  %334 = vmatprep.subr.mxu0 0.0
  %335 = vmatpush1.xpose.msra.mxu0 0.0
  %336 = vmatprep.subr.mxu0 0.0
  %337 = vmatpush1.xpose.msra.mxu0 0.0
  %338 = vmatprep.subr.mxu0 0.0
  %339 = vmatpush1.xpose.msra.mxu0 0.0
  %340 = vmatprep.subr.mxu0 0.0
  %341 = vmatpush1.xpose.msra.mxu0 0.0
  %342 = vmatprep.subr.mxu0 0.0
  %343 = vmatpush1.xpose.msra.mxu0 0.0
  %344 = vmatprep.subr.mxu0 0.0
  %345 = vmatpush1.xpose.msra.mxu0 0.0
  %346 = vmatprep.subr.mxu0 0.0
  %347 = vmatpush1.xpose.msra.mxu0 0.0
  %348 = vmatprep.subr.mxu0 0.0
  %349 = vmatpush1.xpose.msra.mxu0 0.0
  %350 = vmatprep.subr.mxu0 0.0
  %351 = vmatpush1.xpose.msra.mxu0 0.0
  %352 = vmatprep.subr.mxu0 0.0
  %353 = vmatpush1.xpose.msra.mxu0 0.0
  %354 = vmatprep.subr.mxu0 0.0
  %355 = vmatpush1.xpose.msra.mxu0 0.0
  %356 = vmatprep.subr.mxu0 0.0
  %357 = vmatpush1.xpose.msra.mxu0 0.0
  %358 = vmatprep.subr.mxu0 0.0
  %359 = vmatpush1.xpose.msra.mxu0 0.0
  %360 = vmatprep.subr.mxu0 0.0
  %361 = vmatpush1.xpose.msra.mxu0 0.0
  %362 = vmatprep.subr.mxu0 0.0
  %363 = vmatpush1.xpose.msra.mxu0 0.0
  %364 = vmatprep.subr.mxu0 0.0
  %365 = vmatpush1.xpose.msra.mxu0 0.0
  %366 = vmatprep.subr.mxu0 0.0
  %367 = vmatpush1.xpose.msra.mxu0 0.0
  %368 = vmatprep.mubr.f32.mxu0 0.0
  %369 = vmatmul.mubr.f32.gmra.mrb[0].mxu0 %v300
  %v370 = vpop.f32.mrb[0].mxu0
  %v371 = vadd.f32 %v78, %v370
  %v372 = vpop.f32.mrb[0].mxu0
  %373 = vdwg.mxu0
  %v374 = vsel %vm222, %v294, -inf
  %375 = vmax.xlane.f32.xlu0 %v374
  %v376 = vpop.xlane.xlu0 %375
  %v377 = vsel %vm222, %v371, -inf
  %378 = vmax.xlane.f32.xlu0 %v377
  %v379 = vpop.xlane.xlu0 %378
  %v380 = vsub.f32 %v294, %v376
  %v381 = vsub.f32 %v371, %v379
  %v382 = vmul.f32 %v380, 1.442695
  %v383 = vpow.pop %v382
  %v384 = vmul.f32 %v381, 1.442695
  %v385 = vpow.pop %v384
  %v386 = vsel %vm222, %v383, 0.0
  %387 = vadd.xlane.f32.xlu0 %v386
  %v388 = vpop.xlane.xlu0 %387
  %v389 = vsel %vm222, %v385, 0.0
  %390 = vadd.xlane.f32.xlu0 %v389
  %v391 = vpop.xlane.xlu0 %390
  %v392 = vrcp.pop %v388
  %v393 = vmul.f32 %v383, %v392
  %v394 = vrcp.pop %v391
  %v395 = vmul.f32 %v385, %v394
  %396 = vrot.lane.b32.xlu0 %v211, 64
  %v397 = vpop.permute.xlu0 %396
  %v400 = vsel %vm222, %v393, 0
  %402 = vmatprep.subr.mxu0 0.0
  %403 = vmatpush1.msra.mxu0 %v397
  %404 = vmatprep.subr.mxu0 0.0
  %405 = vmatpush1.msra.mxu0 0.0
  %406 = vmatprep.subr.mxu0 0.0
  %407 = vmatpush1.msra.mxu0 0.0
  %408 = vmatprep.subr.mxu0 0.0
  %409 = vmatpush1.msra.mxu0 0.0
  %410 = vmatprep.subr.mxu0 0.0
  %411 = vmatpush1.msra.mxu0 0.0
  %412 = vmatprep.subr.mxu0 0.0
  %413 = vmatpush1.msra.mxu0 0.0
  %414 = vmatprep.subr.mxu0 0.0
  %415 = vmatpush1.msra.mxu0 0.0
  %416 = vmatprep.subr.mxu0 0.0
  %417 = vmatpush1.msra.mxu0 0.0
  %418 = vmatprep.subr.mxu0 0.0
  %419 = vmatpush1.msra.mxu0 0.0
  %420 = vmatprep.subr.mxu0 0.0
  %421 = vmatpush1.msra.mxu0 0.0
  %422 = vmatprep.subr.mxu0 0.0
  %423 = vmatpush1.msra.mxu0 0.0
  %424 = vmatprep.subr.mxu0 0.0
  %425 = vmatpush1.msra.mxu0 0.0
  %426 = vmatprep.subr.mxu0 0.0
  %427 = vmatpush1.msra.mxu0 0.0
  %428 = vmatprep.subr.mxu0 0.0
  %429 = vmatpush1.msra.mxu0 0.0
  %430 = vmatprep.subr.mxu0 0.0
  %431 = vmatpush1.msra.mxu0 0.0
  %432 = vmatprep.subr.mxu0 0.0
  %433 = vmatpush1.msra.mxu0 0.0
  %434 = vmatprep.subr.mxu0 0.0
  %435 = vmatpush1.msra.mxu0 0.0
  %436 = vmatprep.subr.mxu0 0.0
  %437 = vmatpush1.msra.mxu0 0.0
  %438 = vmatprep.subr.mxu0 0.0
  %439 = vmatpush1.msra.mxu0 0.0
  %440 = vmatprep.subr.mxu0 0.0
  %441 = vmatpush1.msra.mxu0 0.0
  %442 = vmatprep.subr.mxu0 0.0
  %443 = vmatpush1.msra.mxu0 0.0
  %444 = vmatprep.subr.mxu0 0.0
  %445 = vmatpush1.msra.mxu0 0.0
  %446 = vmatprep.subr.mxu0 0.0
  %447 = vmatpush1.msra.mxu0 0.0
  %448 = vmatprep.subr.mxu0 0.0
  %449 = vmatpush1.msra.mxu0 0.0
  %450 = vmatprep.subr.mxu0 0.0
  %451 = vmatpush1.msra.mxu0 0.0
  %452 = vmatprep.subr.mxu0 0.0
  %453 = vmatpush1.msra.mxu0 0.0
  %454 = vmatprep.subr.mxu0 0.0
  %455 = vmatpush1.msra.mxu0 0.0
  %456 = vmatprep.subr.mxu0 0.0
  %457 = vmatpush1.msra.mxu0 0.0
  %458 = vmatprep.subr.mxu0 0.0
  %459 = vmatpush1.msra.mxu0 0.0
  %460 = vmatprep.subr.mxu0 0.0
  %461 = vmatpush1.msra.mxu0 0.0
  %462 = vmatprep.subr.mxu0 0.0
  %463 = vmatpush1.msra.mxu0 0.0
  %464 = vmatprep.subr.mxu0 0.0
  %465 = vmatpush1.msra.mxu0 0.0
  %466 = vmatprep.mubr.f32.mxu0 0.0
  %467 = vmatmul.mubr.f32.gmra.mrb[0].mxu0 %v400
  %v468 = vpop.f32.mrb[0].mxu0
  %v469 = vadd.f32 0.0, %v468
  %v470 = vpop.f32.mrb[0].mxu0
  %471 = vdwg.mxu0
  %472 = vrot.lane.b32.xlu0 %v216, 64
  %v473 = vpop.permute.xlu0 %472
  %v476 = vsel %vm222, %v395, 0
  %478 = vmatprep.subr.mxu0 0.0
  %479 = vmatpush1.msra.mxu0 %v473
  %480 = vmatprep.subr.mxu0 0.0
  %481 = vmatpush1.msra.mxu0 0.0
  %482 = vmatprep.subr.mxu0 0.0
  %483 = vmatpush1.msra.mxu0 0.0
  %484 = vmatprep.subr.mxu0 0.0
  %485 = vmatpush1.msra.mxu0 0.0
  %486 = vmatprep.subr.mxu0 0.0
  %487 = vmatpush1.msra.mxu0 0.0
  %488 = vmatprep.subr.mxu0 0.0
  %489 = vmatpush1.msra.mxu0 0.0
  %490 = vmatprep.subr.mxu0 0.0
  %491 = vmatpush1.msra.mxu0 0.0
  %492 = vmatprep.subr.mxu0 0.0
  %493 = vmatpush1.msra.mxu0 0.0
  %494 = vmatprep.subr.mxu0 0.0
  %495 = vmatpush1.msra.mxu0 0.0
  %496 = vmatprep.subr.mxu0 0.0
  %497 = vmatpush1.msra.mxu0 0.0
  %498 = vmatprep.subr.mxu0 0.0
  %499 = vmatpush1.msra.mxu0 0.0
  %500 = vmatprep.subr.mxu0 0.0
  %501 = vmatpush1.msra.mxu0 0.0
  %502 = vmatprep.subr.mxu0 0.0
  %503 = vmatpush1.msra.mxu0 0.0
  %504 = vmatprep.subr.mxu0 0.0
  %505 = vmatpush1.msra.mxu0 0.0
  %506 = vmatprep.subr.mxu0 0.0
  %507 = vmatpush1.msra.mxu0 0.0
  %508 = vmatprep.subr.mxu0 0.0
  %509 = vmatpush1.msra.mxu0 0.0
  %510 = vmatprep.subr.mxu0 0.0
  %511 = vmatpush1.msra.mxu0 0.0
  %512 = vmatprep.subr.mxu0 0.0
  %513 = vmatpush1.msra.mxu0 0.0
  %514 = vmatprep.subr.mxu0 0.0
  %515 = vmatpush1.msra.mxu0 0.0
  %516 = vmatprep.subr.mxu0 0.0
  %517 = vmatpush1.msra.mxu0 0.0
  %518 = vmatprep.subr.mxu0 0.0
  %519 = vmatpush1.msra.mxu0 0.0
  %520 = vmatprep.subr.mxu0 0.0
  %521 = vmatpush1.msra.mxu0 0.0
  %522 = vmatprep.subr.mxu0 0.0
  %523 = vmatpush1.msra.mxu0 0.0
  %524 = vmatprep.subr.mxu0 0.0
  %525 = vmatpush1.msra.mxu0 0.0
  %526 = vmatprep.subr.mxu0 0.0
  %527 = vmatpush1.msra.mxu0 0.0
  %528 = vmatprep.subr.mxu0 0.0
  %529 = vmatpush1.msra.mxu0 0.0
  %530 = vmatprep.subr.mxu0 0.0
  %531 = vmatpush1.msra.mxu0 0.0
  %532 = vmatprep.subr.mxu0 0.0
  %533 = vmatpush1.msra.mxu0 0.0
  %534 = vmatprep.subr.mxu0 0.0
  %535 = vmatpush1.msra.mxu0 0.0
  %536 = vmatprep.subr.mxu0 0.0
  %537 = vmatpush1.msra.mxu0 0.0
  %538 = vmatprep.subr.mxu0 0.0
  %539 = vmatpush1.msra.mxu0 0.0
  %540 = vmatprep.subr.mxu0 0.0
  %541 = vmatpush1.msra.mxu0 0.0
  %542 = vmatprep.mubr.f32.mxu0 0.0
  %543 = vmatmul.mubr.f32.gmra.mrb[0].mxu0 %v476
  %v544 = vpop.f32.mrb[0].mxu0
  %v545 = vadd.f32 0.0, %v544
  %v546 = vpop.f32.mrb[0].mxu0
  %547 = vdwg.mxu0
  %548 = vst.msk [vmem:[#allocation2] sm:$0xff] %vm222, %v469
  %549 = vst.msk [vmem:[#allocation2 + $0x8] sm:$0xff] %vm222, %v545
  %550 = vrot.lane.b32.xlu0 %v211, 120
  %v551 = vpop.permute.xlu0 %550
  %552 = vrot.lane.b32.xlu0 %v211, 88
  %v553 = vpop.permute.xlu0 %552
  %v554 = vsel %vm222, %v551, 0
  %v556 = vsel %vm222, %v553, 0
  %558 = vmatprep.subr.mxu0 0.0
  %559 = vmatpush1.xpose.msra.mxu0 %v556
  %560 = vmatprep.subr.mxu0 0.0
  %561 = vmatpush1.xpose.msra.mxu0 0.0
  %562 = vmatprep.subr.mxu0 0.0
  %563 = vmatpush1.xpose.msra.mxu0 0.0
  %564 = vmatprep.subr.mxu0 0.0
  %565 = vmatpush1.xpose.msra.mxu0 0.0
  %566 = vmatprep.subr.mxu0 0.0
  %567 = vmatpush1.xpose.msra.mxu0 0.0
  %568 = vmatprep.subr.mxu0 0.0
  %569 = vmatpush1.xpose.msra.mxu0 0.0
  %570 = vmatprep.subr.mxu0 0.0
  %571 = vmatpush1.xpose.msra.mxu0 0.0
  %572 = vmatprep.subr.mxu0 0.0
  %573 = vmatpush1.xpose.msra.mxu0 0.0
  %574 = vmatprep.subr.mxu0 0.0
  %575 = vmatpush1.xpose.msra.mxu0 0.0
  %576 = vmatprep.subr.mxu0 0.0
  %577 = vmatpush1.xpose.msra.mxu0 0.0
  %578 = vmatprep.subr.mxu0 0.0
  %579 = vmatpush1.xpose.msra.mxu0 0.0
  %580 = vmatprep.subr.mxu0 0.0
  %581 = vmatpush1.xpose.msra.mxu0 0.0
  %582 = vmatprep.subr.mxu0 0.0
  %583 = vmatpush1.xpose.msra.mxu0 0.0
  %584 = vmatprep.subr.mxu0 0.0
  %585 = vmatpush1.xpose.msra.mxu0 0.0
  %586 = vmatprep.subr.mxu0 0.0
  %587 = vmatpush1.xpose.msra.mxu0 0.0
  %588 = vmatprep.subr.mxu0 0.0
  %589 = vmatpush1.xpose.msra.mxu0 0.0
  %590 = vmatprep.subr.mxu0 0.0
  %591 = vmatpush1.xpose.msra.mxu0 0.0
  %592 = vmatprep.subr.mxu0 0.0
  %593 = vmatpush1.xpose.msra.mxu0 0.0
  %594 = vmatprep.subr.mxu0 0.0
  %595 = vmatpush1.xpose.msra.mxu0 0.0
  %596 = vmatprep.subr.mxu0 0.0
  %597 = vmatpush1.xpose.msra.mxu0 0.0
  %598 = vmatprep.subr.mxu0 0.0
  %599 = vmatpush1.xpose.msra.mxu0 0.0
  %600 = vmatprep.subr.mxu0 0.0
  %601 = vmatpush1.xpose.msra.mxu0 0.0
  %602 = vmatprep.subr.mxu0 0.0
  %603 = vmatpush1.xpose.msra.mxu0 0.0
  %604 = vmatprep.subr.mxu0 0.0
  %605 = vmatpush1.xpose.msra.mxu0 0.0
  %606 = vmatprep.subr.mxu0 0.0
  %607 = vmatpush1.xpose.msra.mxu0 0.0
  %608 = vmatprep.subr.mxu0 0.0
  %609 = vmatpush1.xpose.msra.mxu0 0.0
  %610 = vmatprep.subr.mxu0 0.0
  %611 = vmatpush1.xpose.msra.mxu0 0.0
  %612 = vmatprep.subr.mxu0 0.0
  %613 = vmatpush1.xpose.msra.mxu0 0.0
  %614 = vmatprep.subr.mxu0 0.0
  %615 = vmatpush1.xpose.msra.mxu0 0.0
  %616 = vmatprep.subr.mxu0 0.0
  %617 = vmatpush1.xpose.msra.mxu0 0.0
  %618 = vmatprep.subr.mxu0 0.0
  %619 = vmatpush1.xpose.msra.mxu0 0.0
  %620 = vmatprep.subr.mxu0 0.0
  %621 = vmatpush1.xpose.msra.mxu0 0.0
  %622 = vmatprep.mubr.f32.mxu0 0.0
  %623 = vmatmul.mubr.f32.gmra.mrb[0].mxu0 %v554
  %v624 = vpop.f32.mrb[0].mxu0
  %v625 = vadd.f32 %v74, %v624
  %v626 = vpop.f32.mrb[0].mxu0
  %627 = vdwg.mxu0
  %628 = vrot.lane.b32.xlu0 %v216, 120
  %v629 = vpop.permute.xlu0 %628
  %630 = vrot.lane.b32.xlu0 %v216, 88
  %v631 = vpop.permute.xlu0 %630
  %v632 = vsel %vm222, %v629, 0
  %v634 = vsel %vm222, %v631, 0
  %636 = vmatprep.subr.mxu0 0.0
  %637 = vmatpush1.xpose.msra.mxu0 %v634
  %638 = vmatprep.subr.mxu0 0.0
  %639 = vmatpush1.xpose.msra.mxu0 0.0
  %640 = vmatprep.subr.mxu0 0.0
  %641 = vmatpush1.xpose.msra.mxu0 0.0
  %642 = vmatprep.subr.mxu0 0.0
  %643 = vmatpush1.xpose.msra.mxu0 0.0
  %644 = vmatprep.subr.mxu0 0.0
  %645 = vmatpush1.xpose.msra.mxu0 0.0
  %646 = vmatprep.subr.mxu0 0.0
  %647 = vmatpush1.xpose.msra.mxu0 0.0
  %648 = vmatprep.subr.mxu0 0.0
  %649 = vmatpush1.xpose.msra.mxu0 0.0
  %650 = vmatprep.subr.mxu0 0.0
  %651 = vmatpush1.xpose.msra.mxu0 0.0
  %652 = vmatprep.subr.mxu0 0.0
  %653 = vmatpush1.xpose.msra.mxu0 0.0
  %654 = vmatprep.subr.mxu0 0.0
  %655 = vmatpush1.xpose.msra.mxu0 0.0
  %656 = vmatprep.subr.mxu0 0.0
  %657 = vmatpush1.xpose.msra.mxu0 0.0
  %658 = vmatprep.subr.mxu0 0.0
  %659 = vmatpush1.xpose.msra.mxu0 0.0
  %660 = vmatprep.subr.mxu0 0.0
  %661 = vmatpush1.xpose.msra.mxu0 0.0
  %662 = vmatprep.subr.mxu0 0.0
  %663 = vmatpush1.xpose.msra.mxu0 0.0
  %664 = vmatprep.subr.mxu0 0.0
  %665 = vmatpush1.xpose.msra.mxu0 0.0
  %666 = vmatprep.subr.mxu0 0.0
  %667 = vmatpush1.xpose.msra.mxu0 0.0
  %668 = vmatprep.subr.mxu0 0.0
  %669 = vmatpush1.xpose.msra.mxu0 0.0
  %670 = vmatprep.subr.mxu0 0.0
  %671 = vmatpush1.xpose.msra.mxu0 0.0
  %672 = vmatprep.subr.mxu0 0.0
  %673 = vmatpush1.xpose.msra.mxu0 0.0
  %674 = vmatprep.subr.mxu0 0.0
  %675 = vmatpush1.xpose.msra.mxu0 0.0
  %676 = vmatprep.subr.mxu0 0.0
  %677 = vmatpush1.xpose.msra.mxu0 0.0
  %678 = vmatprep.subr.mxu0 0.0
  %679 = vmatpush1.xpose.msra.mxu0 0.0
  %680 = vmatprep.subr.mxu0 0.0
  %681 = vmatpush1.xpose.msra.mxu0 0.0
  %682 = vmatprep.subr.mxu0 0.0
  %683 = vmatpush1.xpose.msra.mxu0 0.0
  %684 = vmatprep.subr.mxu0 0.0
  %685 = vmatpush1.xpose.msra.mxu0 0.0
  %686 = vmatprep.subr.mxu0 0.0
  %687 = vmatpush1.xpose.msra.mxu0 0.0
  %688 = vmatprep.subr.mxu0 0.0
  %689 = vmatpush1.xpose.msra.mxu0 0.0
  %690 = vmatprep.subr.mxu0 0.0
  %691 = vmatpush1.xpose.msra.mxu0 0.0
  %692 = vmatprep.subr.mxu0 0.0
  %693 = vmatpush1.xpose.msra.mxu0 0.0
  %694 = vmatprep.subr.mxu0 0.0
  %695 = vmatpush1.xpose.msra.mxu0 0.0
  %696 = vmatprep.subr.mxu0 0.0
  %697 = vmatpush1.xpose.msra.mxu0 0.0
  %698 = vmatprep.subr.mxu0 0.0
  %699 = vmatpush1.xpose.msra.mxu0 0.0
  %700 = vmatprep.mubr.f32.mxu0 0.0
  %701 = vmatmul.mubr.f32.gmra.mrb[0].mxu0 %v632
  %v702 = vpop.f32.mrb[0].mxu0
  %v703 = vadd.f32 %v78, %v702
  %v704 = vpop.f32.mrb[0].mxu0
  %705 = vdwg.mxu0
  %v706 = vsel %vm222, %v625, -inf
  %707 = vmax.xlane.f32.xlu0 %v706
  %v708 = vpop.xlane.xlu0 %707
  %v709 = vsel %vm222, %v703, -inf
  %710 = vmax.xlane.f32.xlu0 %v709
  %v711 = vpop.xlane.xlu0 %710
  %v712 = vsub.f32 %v625, %v708
  %v713 = vsub.f32 %v703, %v711
  %v714 = vmul.f32 %v712, 1.442695
  %v715 = vpow.pop %v714
  %v716 = vmul.f32 %v713, 1.442695
  %v717 = vpow.pop %v716
  %v718 = vsel %vm222, %v715, 0.0
  %719 = vadd.xlane.f32.xlu0 %v718
  %v720 = vpop.xlane.xlu0 %719
  %v721 = vsel %vm222, %v717, 0.0
  %722 = vadd.xlane.f32.xlu0 %v721
  %v723 = vpop.xlane.xlu0 %722
  %v724 = vrcp.pop %v720
  %v725 = vmul.f32 %v715, %v724
  %v726 = vrcp.pop %v723
  %v727 = vmul.f32 %v717, %v726
  %728 = vrot.lane.b32.xlu0 %v211, 56
  %v729 = vpop.permute.xlu0 %728
  %v732 = vsel %vm222, %v725, 0
  %734 = vmatprep.subr.mxu0 0.0
  %735 = vmatpush1.msra.mxu0 %v729
  %736 = vmatprep.subr.mxu0 0.0
  %737 = vmatpush1.msra.mxu0 0.0
  %738 = vmatprep.subr.mxu0 0.0
  %739 = vmatpush1.msra.mxu0 0.0
  %740 = vmatprep.subr.mxu0 0.0
  %741 = vmatpush1.msra.mxu0 0.0
  %742 = vmatprep.subr.mxu0 0.0
  %743 = vmatpush1.msra.mxu0 0.0
  %744 = vmatprep.subr.mxu0 0.0
  %745 = vmatpush1.msra.mxu0 0.0
  %746 = vmatprep.subr.mxu0 0.0
  %747 = vmatpush1.msra.mxu0 0.0
  %748 = vmatprep.subr.mxu0 0.0
  %749 = vmatpush1.msra.mxu0 0.0
  %750 = vmatprep.subr.mxu0 0.0
  %751 = vmatpush1.msra.mxu0 0.0
  %752 = vmatprep.subr.mxu0 0.0
  %753 = vmatpush1.msra.mxu0 0.0
  %754 = vmatprep.subr.mxu0 0.0
  %755 = vmatpush1.msra.mxu0 0.0
  %756 = vmatprep.subr.mxu0 0.0
  %757 = vmatpush1.msra.mxu0 0.0
  %758 = vmatprep.subr.mxu0 0.0
  %759 = vmatpush1.msra.mxu0 0.0
  %760 = vmatprep.subr.mxu0 0.0
  %761 = vmatpush1.msra.mxu0 0.0
  %762 = vmatprep.subr.mxu0 0.0
  %763 = vmatpush1.msra.mxu0 0.0
  %764 = vmatprep.subr.mxu0 0.0
  %765 = vmatpush1.msra.mxu0 0.0
  %766 = vmatprep.subr.mxu0 0.0
  %767 = vmatpush1.msra.mxu0 0.0
  %768 = vmatprep.subr.mxu0 0.0
  %769 = vmatpush1.msra.mxu0 0.0
  %770 = vmatprep.subr.mxu0 0.0
  %771 = vmatpush1.msra.mxu0 0.0
  %772 = vmatprep.subr.mxu0 0.0
  %773 = vmatpush1.msra.mxu0 0.0
  %774 = vmatprep.subr.mxu0 0.0
  %775 = vmatpush1.msra.mxu0 0.0
  %776 = vmatprep.subr.mxu0 0.0
  %777 = vmatpush1.msra.mxu0 0.0
  %778 = vmatprep.subr.mxu0 0.0
  %779 = vmatpush1.msra.mxu0 0.0
  %780 = vmatprep.subr.mxu0 0.0
  %781 = vmatpush1.msra.mxu0 0.0
  %782 = vmatprep.subr.mxu0 0.0
  %783 = vmatpush1.msra.mxu0 0.0
  %784 = vmatprep.subr.mxu0 0.0
  %785 = vmatpush1.msra.mxu0 0.0
  %786 = vmatprep.subr.mxu0 0.0
  %787 = vmatpush1.msra.mxu0 0.0
  %788 = vmatprep.subr.mxu0 0.0
  %789 = vmatpush1.msra.mxu0 0.0
  %790 = vmatprep.subr.mxu0 0.0
  %791 = vmatpush1.msra.mxu0 0.0
  %792 = vmatprep.subr.mxu0 0.0
  %793 = vmatpush1.msra.mxu0 0.0
  %794 = vmatprep.subr.mxu0 0.0
  %795 = vmatpush1.msra.mxu0 0.0
  %796 = vmatprep.subr.mxu0 0.0
  %797 = vmatpush1.msra.mxu0 0.0
  %798 = vmatprep.mubr.f32.mxu0 0.0
  %799 = vmatmul.mubr.f32.gmra.mrb[0].mxu0 %v732
  %v800 = vpop.f32.mrb[0].mxu0
  %v801 = vadd.f32 0.0, %v800
  %v802 = vpop.f32.mrb[0].mxu0
  %803 = vdwg.mxu0
  %804 = vrot.lane.b32.xlu0 %v216, 56
  %v805 = vpop.permute.xlu0 %804
  %v808 = vsel %vm222, %v727, 0
  %810 = vmatprep.subr.mxu0 0.0
  %811 = vmatpush1.msra.mxu0 %v805
  %812 = vmatprep.subr.mxu0 0.0
  %813 = vmatpush1.msra.mxu0 0.0
  %814 = vmatprep.subr.mxu0 0.0
  %815 = vmatpush1.msra.mxu0 0.0
  %816 = vmatprep.subr.mxu0 0.0
  %817 = vmatpush1.msra.mxu0 0.0
  %818 = vmatprep.subr.mxu0 0.0
  %819 = vmatpush1.msra.mxu0 0.0
  %820 = vmatprep.subr.mxu0 0.0
  %821 = vmatpush1.msra.mxu0 0.0
  %822 = vmatprep.subr.mxu0 0.0
  %823 = vmatpush1.msra.mxu0 0.0
  %824 = vmatprep.subr.mxu0 0.0
  %825 = vmatpush1.msra.mxu0 0.0
  %826 = vmatprep.subr.mxu0 0.0
  %827 = vmatpush1.msra.mxu0 0.0
  %828 = vmatprep.subr.mxu0 0.0
  %829 = vmatpush1.msra.mxu0 0.0
  %830 = vmatprep.subr.mxu0 0.0
  %831 = vmatpush1.msra.mxu0 0.0
  %832 = vmatprep.subr.mxu0 0.0
  %833 = vmatpush1.msra.mxu0 0.0
  %834 = vmatprep.subr.mxu0 0.0
  %835 = vmatpush1.msra.mxu0 0.0
  %836 = vmatprep.subr.mxu0 0.0
  %837 = vmatpush1.msra.mxu0 0.0
  %838 = vmatprep.subr.mxu0 0.0
  %839 = vmatpush1.msra.mxu0 0.0
  %840 = vmatprep.subr.mxu0 0.0
  %841 = vmatpush1.msra.mxu0 0.0
  %842 = vmatprep.subr.mxu0 0.0
  %843 = vmatpush1.msra.mxu0 0.0
  %844 = vmatprep.subr.mxu0 0.0
  %845 = vmatpush1.msra.mxu0 0.0
  %846 = vmatprep.subr.mxu0 0.0
  %847 = vmatpush1.msra.mxu0 0.0
  %848 = vmatprep.subr.mxu0 0.0
  %849 = vmatpush1.msra.mxu0 0.0
  %850 = vmatprep.subr.mxu0 0.0
  %851 = vmatpush1.msra.mxu0 0.0
  %852 = vmatprep.subr.mxu0 0.0
  %853 = vmatpush1.msra.mxu0 0.0
  %854 = vmatprep.subr.mxu0 0.0
  %855 = vmatpush1.msra.mxu0 0.0
  %856 = vmatprep.subr.mxu0 0.0
  %857 = vmatpush1.msra.mxu0 0.0
  %858 = vmatprep.subr.mxu0 0.0
  %859 = vmatpush1.msra.mxu0 0.0
  %860 = vmatprep.subr.mxu0 0.0
  %861 = vmatpush1.msra.mxu0 0.0
  %862 = vmatprep.subr.mxu0 0.0
  %863 = vmatpush1.msra.mxu0 0.0
  %864 = vmatprep.subr.mxu0 0.0
  %865 = vmatpush1.msra.mxu0 0.0
  %866 = vmatprep.subr.mxu0 0.0
  %867 = vmatpush1.msra.mxu0 0.0
  %868 = vmatprep.subr.mxu0 0.0
  %869 = vmatpush1.msra.mxu0 0.0
  %870 = vmatprep.subr.mxu0 0.0
  %871 = vmatpush1.msra.mxu0 0.0
  %872 = vmatprep.subr.mxu0 0.0
  %873 = vmatpush1.msra.mxu0 0.0
  %874 = vmatprep.mubr.f32.mxu0 0.0
  %875 = vmatmul.mubr.f32.gmra.mrb[0].mxu0 %v808
  %v876 = vpop.f32.mrb[0].mxu0
  %v877 = vadd.f32 0.0, %v876
  %v878 = vpop.f32.mrb[0].mxu0
  %879 = vdwg.mxu0
  %882 = vrot.lane.b32.xlu0 %v801, 8
  %v883 = vpop.permute.xlu0 %882
  %884 = vrot.lane.b32.xlu0 %v877, 8
  %v885 = vpop.permute.xlu0 %884
  %vm888 = vcmask 130112
  %889 = vst.msk [vmem:[#allocation2] sm:$0xff] %vm888, %v883
  %890 = vst.msk [vmem:[#allocation2 + $0x8] sm:$0xff] %vm888, %v885
  %891 = vrot.lane.b32.xlu0 %v211, 112
  %v892 = vpop.permute.xlu0 %891
  %893 = vrot.lane.b32.xlu0 %v211, 80
  %v894 = vpop.permute.xlu0 %893
  %v895 = vsel %vm222, %v892, 0
  %v897 = vsel %vm222, %v894, 0
  %899 = vmatprep.subr.mxu0 0.0
  %900 = vmatpush1.xpose.msra.mxu0 %v897
  %901 = vmatprep.subr.mxu0 0.0
  %902 = vmatpush1.xpose.msra.mxu0 0.0
  %903 = vmatprep.subr.mxu0 0.0
  %904 = vmatpush1.xpose.msra.mxu0 0.0
  %905 = vmatprep.subr.mxu0 0.0
  %906 = vmatpush1.xpose.msra.mxu0 0.0
  %907 = vmatprep.subr.mxu0 0.0
  %908 = vmatpush1.xpose.msra.mxu0 0.0
  %909 = vmatprep.subr.mxu0 0.0
  %910 = vmatpush1.xpose.msra.mxu0 0.0
  %911 = vmatprep.subr.mxu0 0.0
  %912 = vmatpush1.xpose.msra.mxu0 0.0
  %913 = vmatprep.subr.mxu0 0.0
  %914 = vmatpush1.xpose.msra.mxu0 0.0
  %915 = vmatprep.subr.mxu0 0.0
  %916 = vmatpush1.xpose.msra.mxu0 0.0
  %917 = vmatprep.subr.mxu0 0.0
  %918 = vmatpush1.xpose.msra.mxu0 0.0
  %919 = vmatprep.subr.mxu0 0.0
  %920 = vmatpush1.xpose.msra.mxu0 0.0
  %921 = vmatprep.subr.mxu0 0.0
  %922 = vmatpush1.xpose.msra.mxu0 0.0
  %923 = vmatprep.subr.mxu0 0.0
  %924 = vmatpush1.xpose.msra.mxu0 0.0
  %925 = vmatprep.subr.mxu0 0.0
  %926 = vmatpush1.xpose.msra.mxu0 0.0
  %927 = vmatprep.subr.mxu0 0.0
  %928 = vmatpush1.xpose.msra.mxu0 0.0
  %929 = vmatprep.subr.mxu0 0.0
  %930 = vmatpush1.xpose.msra.mxu0 0.0
  %931 = vmatprep.subr.mxu0 0.0
  %932 = vmatpush1.xpose.msra.mxu0 0.0
  %933 = vmatprep.subr.mxu0 0.0
  %934 = vmatpush1.xpose.msra.mxu0 0.0
  %935 = vmatprep.subr.mxu0 0.0
  %936 = vmatpush1.xpose.msra.mxu0 0.0
  %937 = vmatprep.subr.mxu0 0.0
  %938 = vmatpush1.xpose.msra.mxu0 0.0
  %939 = vmatprep.subr.mxu0 0.0
  %940 = vmatpush1.xpose.msra.mxu0 0.0
  %941 = vmatprep.subr.mxu0 0.0
  %942 = vmatpush1.xpose.msra.mxu0 0.0
  %943 = vmatprep.subr.mxu0 0.0
  %944 = vmatpush1.xpose.msra.mxu0 0.0
  %945 = vmatprep.subr.mxu0 0.0
  %946 = vmatpush1.xpose.msra.mxu0 0.0
  %947 = vmatprep.subr.mxu0 0.0
  %948 = vmatpush1.xpose.msra.mxu0 0.0
  %949 = vmatprep.subr.mxu0 0.0
  %950 = vmatpush1.xpose.msra.mxu0 0.0
  %951 = vmatprep.subr.mxu0 0.0
  %952 = vmatpush1.xpose.msra.mxu0 0.0
  %953 = vmatprep.subr.mxu0 0.0
  %954 = vmatpush1.xpose.msra.mxu0 0.0
  %955 = vmatprep.subr.mxu0 0.0
  %956 = vmatpush1.xpose.msra.mxu0 0.0
  %957 = vmatprep.subr.mxu0 0.0
  %958 = vmatpush1.xpose.msra.mxu0 0.0
  %959 = vmatprep.subr.mxu0 0.0
  %960 = vmatpush1.xpose.msra.mxu0 0.0
  %961 = vmatprep.subr.mxu0 0.0
  %962 = vmatpush1.xpose.msra.mxu0 0.0
  %963 = vmatprep.mubr.f32.mxu0 0.0
  %964 = vmatmul.mubr.f32.gmra.mrb[0].mxu0 %v895
  %v965 = vpop.f32.mrb[0].mxu0
  %v966 = vadd.f32 %v74, %v965
  %v967 = vpop.f32.mrb[0].mxu0
  %968 = vdwg.mxu0
  %969 = vrot.lane.b32.xlu0 %v216, 112
  %v970 = vpop.permute.xlu0 %969
  %971 = vrot.lane.b32.xlu0 %v216, 80
  %v972 = vpop.permute.xlu0 %971
  %v973 = vsel %vm222, %v970, 0
  %v975 = vsel %vm222, %v972, 0
  %977 = vmatprep.subr.mxu0 0.0
  %978 = vmatpush1.xpose.msra.mxu0 %v975
  %979 = vmatprep.subr.mxu0 0.0
  %980 = vmatpush1.xpose.msra.mxu0 0.0
  %981 = vmatprep.subr.mxu0 0.0
  %982 = vmatpush1.xpose.msra.mxu0 0.0
  %983 = vmatprep.subr.mxu0 0.0
  %984 = vmatpush1.xpose.msra.mxu0 0.0
  %985 = vmatprep.subr.mxu0 0.0
  %986 = vmatpush1.xpose.msra.mxu0 0.0
  %987 = vmatprep.subr.mxu0 0.0
  %988 = vmatpush1.xpose.msra.mxu0 0.0
  %989 = vmatprep.subr.mxu0 0.0
  %990 = vmatpush1.xpose.msra.mxu0 0.0
  %991 = vmatprep.subr.mxu0 0.0
  %992 = vmatpush1.xpose.msra.mxu0 0.0
  %993 = vmatprep.subr.mxu0 0.0
  %994 = vmatpush1.xpose.msra.mxu0 0.0
  %995 = vmatprep.subr.mxu0 0.0
  %996 = vmatpush1.xpose.msra.mxu0 0.0
  %997 = vmatprep.subr.mxu0 0.0
  %998 = vmatpush1.xpose.msra.mxu0 0.0
  %999 = vmatprep.subr.mxu0 0.0
  %1000 = vmatpush1.xpose.msra.mxu0 0.0
  %1001 = vmatprep.subr.mxu0 0.0
  %1002 = vmatpush1.xpose.msra.mxu0 0.0
  %1003 = vmatprep.subr.mxu0 0.0
  %1004 = vmatpush1.xpose.msra.mxu0 0.0
  %1005 = vmatprep.subr.mxu0 0.0
  %1006 = vmatpush1.xpose.msra.mxu0 0.0
  %1007 = vmatprep.subr.mxu0 0.0
  %1008 = vmatpush1.xpose.msra.mxu0 0.0
  %1009 = vmatprep.subr.mxu0 0.0
  %1010 = vmatpush1.xpose.msra.mxu0 0.0
  %1011 = vmatprep.subr.mxu0 0.0
  %1012 = vmatpush1.xpose.msra.mxu0 0.0
  %1013 = vmatprep.subr.mxu0 0.0
  %1014 = vmatpush1.xpose.msra.mxu0 0.0
  %1015 = vmatprep.subr.mxu0 0.0
  %1016 = vmatpush1.xpose.msra.mxu0 0.0
  %1017 = vmatprep.subr.mxu0 0.0
  %1018 = vmatpush1.xpose.msra.mxu0 0.0
  %1019 = vmatprep.subr.mxu0 0.0
  %1020 = vmatpush1.xpose.msra.mxu0 0.0
  %1021 = vmatprep.subr.mxu0 0.0
  %1022 = vmatpush1.xpose.msra.mxu0 0.0
  %1023 = vmatprep.subr.mxu0 0.0
  %1024 = vmatpush1.xpose.msra.mxu0 0.0
  %1025 = vmatprep.subr.mxu0 0.0
  %1026 = vmatpush1.xpose.msra.mxu0 0.0
  %1027 = vmatprep.subr.mxu0 0.0
  %1028 = vmatpush1.xpose.msra.mxu0 0.0
  %1029 = vmatprep.subr.mxu0 0.0
  %1030 = vmatpush1.xpose.msra.mxu0 0.0
  %1031 = vmatprep.subr.mxu0 0.0
  %1032 = vmatpush1.xpose.msra.mxu0 0.0
  %1033 = vmatprep.subr.mxu0 0.0
  %1034 = vmatpush1.xpose.msra.mxu0 0.0
  %1035 = vmatprep.subr.mxu0 0.0
  %1036 = vmatpush1.xpose.msra.mxu0 0.0
  %1037 = vmatprep.subr.mxu0 0.0
  %1038 = vmatpush1.xpose.msra.mxu0 0.0
  %1039 = vmatprep.subr.mxu0 0.0
  %1040 = vmatpush1.xpose.msra.mxu0 0.0
  %1041 = vmatprep.mubr.f32.mxu0 0.0
  %1042 = vmatmul.mubr.f32.gmra.mrb[0].mxu0 %v973
  %v1043 = vpop.f32.mrb[0].mxu0
  %v1044 = vadd.f32 %v78, %v1043
  %v1045 = vpop.f32.mrb[0].mxu0
  %1046 = vdwg.mxu0
  %v1047 = vsel %vm222, %v966, -inf
  %1048 = vmax.xlane.f32.xlu0 %v1047
  %v1049 = vpop.xlane.xlu0 %1048
  %v1050 = vsel %vm222, %v1044, -inf
  %1051 = vmax.xlane.f32.xlu0 %v1050
  %v1052 = vpop.xlane.xlu0 %1051
  %v1053 = vsub.f32 %v966, %v1049
  %v1054 = vsub.f32 %v1044, %v1052
  %v1055 = vmul.f32 %v1053, 1.442695
  %v1056 = vpow.pop %v1055
  %v1057 = vmul.f32 %v1054, 1.442695
  %v1058 = vpow.pop %v1057
  %v1059 = vsel %vm222, %v1056, 0.0
  %1060 = vadd.xlane.f32.xlu0 %v1059
  %v1061 = vpop.xlane.xlu0 %1060
  %v1062 = vsel %vm222, %v1058, 0.0
  %1063 = vadd.xlane.f32.xlu0 %v1062
  %v1064 = vpop.xlane.xlu0 %1063
  %v1065 = vrcp.pop %v1061
  %v1066 = vmul.f32 %v1056, %v1065
  %v1067 = vrcp.pop %v1064
  %v1068 = vmul.f32 %v1058, %v1067
  %1069 = vrot.lane.b32.xlu0 %v211, 48
  %v1070 = vpop.permute.xlu0 %1069
  %v1073 = vsel %vm222, %v1066, 0
  %1075 = vmatprep.subr.mxu0 0.0
  %1076 = vmatpush1.msra.mxu0 %v1070
  %1077 = vmatprep.subr.mxu0 0.0
  %1078 = vmatpush1.msra.mxu0 0.0
  %1079 = vmatprep.subr.mxu0 0.0
  %1080 = vmatpush1.msra.mxu0 0.0
  %1081 = vmatprep.subr.mxu0 0.0
  %1082 = vmatpush1.msra.mxu0 0.0
  %1083 = vmatprep.subr.mxu0 0.0
  %1084 = vmatpush1.msra.mxu0 0.0
  %1085 = vmatprep.subr.mxu0 0.0
  %1086 = vmatpush1.msra.mxu0 0.0
  %1087 = vmatprep.subr.mxu0 0.0
  %1088 = vmatpush1.msra.mxu0 0.0
  %1089 = vmatprep.subr.mxu0 0.0
  %1090 = vmatpush1.msra.mxu0 0.0
  %1091 = vmatprep.subr.mxu0 0.0
  %1092 = vmatpush1.msra.mxu0 0.0
  %1093 = vmatprep.subr.mxu0 0.0
  %1094 = vmatpush1.msra.mxu0 0.0
  %1095 = vmatprep.subr.mxu0 0.0
  %1096 = vmatpush1.msra.mxu0 0.0
  %1097 = vmatprep.subr.mxu0 0.0
  %1098 = vmatpush1.msra.mxu0 0.0
  %1099 = vmatprep.subr.mxu0 0.0
  %1100 = vmatpush1.msra.mxu0 0.0
  %1101 = vmatprep.subr.mxu0 0.0
  %1102 = vmatpush1.msra.mxu0 0.0
  %1103 = vmatprep.subr.mxu0 0.0
  %1104 = vmatpush1.msra.mxu0 0.0
  %1105 = vmatprep.subr.mxu0 0.0
  %1106 = vmatpush1.msra.mxu0 0.0
  %1107 = vmatprep.subr.mxu0 0.0
  %1108 = vmatpush1.msra.mxu0 0.0
  %1109 = vmatprep.subr.mxu0 0.0
  %1110 = vmatpush1.msra.mxu0 0.0
  %1111 = vmatprep.subr.mxu0 0.0
  %1112 = vmatpush1.msra.mxu0 0.0
  %1113 = vmatprep.subr.mxu0 0.0
  %1114 = vmatpush1.msra.mxu0 0.0
  %1115 = vmatprep.subr.mxu0 0.0
  %1116 = vmatpush1.msra.mxu0 0.0
  %1117 = vmatprep.subr.mxu0 0.0
  %1118 = vmatpush1.msra.mxu0 0.0
  %1119 = vmatprep.subr.mxu0 0.0
  %1120 = vmatpush1.msra.mxu0 0.0
  %1121 = vmatprep.subr.mxu0 0.0
  %1122 = vmatpush1.msra.mxu0 0.0
  %1123 = vmatprep.subr.mxu0 0.0
  %1124 = vmatpush1.msra.mxu0 0.0
  %1125 = vmatprep.subr.mxu0 0.0
  %1126 = vmatpush1.msra.mxu0 0.0
  %1127 = vmatprep.subr.mxu0 0.0
  %1128 = vmatpush1.msra.mxu0 0.0
  %1129 = vmatprep.subr.mxu0 0.0
  %1130 = vmatpush1.msra.mxu0 0.0
  %1131 = vmatprep.subr.mxu0 0.0
  %1132 = vmatpush1.msra.mxu0 0.0
  %1133 = vmatprep.subr.mxu0 0.0
  %1134 = vmatpush1.msra.mxu0 0.0
  %1135 = vmatprep.subr.mxu0 0.0
  %1136 = vmatpush1.msra.mxu0 0.0
  %1137 = vmatprep.subr.mxu0 0.0
  %1138 = vmatpush1.msra.mxu0 0.0
  %1139 = vmatprep.mubr.f32.mxu0 0.0
  %1140 = vmatmul.mubr.f32.gmra.mrb[0].mxu0 %v1073
  %v1141 = vpop.f32.mrb[0].mxu0
  %v1142 = vadd.f32 0.0, %v1141
  %v1143 = vpop.f32.mrb[0].mxu0
  %1144 = vdwg.mxu0
  %1145 = vrot.lane.b32.xlu0 %v216, 48
  %v1146 = vpop.permute.xlu0 %1145
  %v1149 = vsel %vm222, %v1068, 0
  %1151 = vmatprep.subr.mxu0 0.0
  %1152 = vmatpush1.msra.mxu0 %v1146
  %1153 = vmatprep.subr.mxu0 0.0
  %1154 = vmatpush1.msra.mxu0 0.0
  %1155 = vmatprep.subr.mxu0 0.0
  %1156 = vmatpush1.msra.mxu0 0.0
  %1157 = vmatprep.subr.mxu0 0.0
  %1158 = vmatpush1.msra.mxu0 0.0
  %1159 = vmatprep.subr.mxu0 0.0
  %1160 = vmatpush1.msra.mxu0 0.0
  %1161 = vmatprep.subr.mxu0 0.0
  %1162 = vmatpush1.msra.mxu0 0.0
  %1163 = vmatprep.subr.mxu0 0.0
  %1164 = vmatpush1.msra.mxu0 0.0
  %1165 = vmatprep.subr.mxu0 0.0
  %1166 = vmatpush1.msra.mxu0 0.0
  %1167 = vmatprep.subr.mxu0 0.0
  %1168 = vmatpush1.msra.mxu0 0.0
  %1169 = vmatprep.subr.mxu0 0.0
  %1170 = vmatpush1.msra.mxu0 0.0
  %1171 = vmatprep.subr.mxu0 0.0
  %1172 = vmatpush1.msra.mxu0 0.0
  %1173 = vmatprep.subr.mxu0 0.0
  %1174 = vmatpush1.msra.mxu0 0.0
  %1175 = vmatprep.subr.mxu0 0.0
  %1176 = vmatpush1.msra.mxu0 0.0
  %1177 = vmatprep.subr.mxu0 0.0
  %1178 = vmatpush1.msra.mxu0 0.0
  %1179 = vmatprep.subr.mxu0 0.0
  %1180 = vmatpush1.msra.mxu0 0.0
  %1181 = vmatprep.subr.mxu0 0.0
  %1182 = vmatpush1.msra.mxu0 0.0
  %1183 = vmatprep.subr.mxu0 0.0
  %1184 = vmatpush1.msra.mxu0 0.0
  %1185 = vmatprep.subr.mxu0 0.0
  %1186 = vmatpush1.msra.mxu0 0.0
  %1187 = vmatprep.subr.mxu0 0.0
  %1188 = vmatpush1.msra.mxu0 0.0
  %1189 = vmatprep.subr.mxu0 0.0
  %1190 = vmatpush1.msra.mxu0 0.0
  %1191 = vmatprep.subr.mxu0 0.0
  %1192 = vmatpush1.msra.mxu0 0.0
  %1193 = vmatprep.subr.mxu0 0.0
  %1194 = vmatpush1.msra.mxu0 0.0
  %1195 = vmatprep.subr.mxu0 0.0
  %1196 = vmatpush1.msra.mxu0 0.0
  %1197 = vmatprep.subr.mxu0 0.0
  %1198 = vmatpush1.msra.mxu0 0.0
  %1199 = vmatprep.subr.mxu0 0.0
  %1200 = vmatpush1.msra.mxu0 0.0
  %1201 = vmatprep.subr.mxu0 0.0
  %1202 = vmatpush1.msra.mxu0 0.0
  %1203 = vmatprep.subr.mxu0 0.0
  %1204 = vmatpush1.msra.mxu0 0.0
  %1205 = vmatprep.subr.mxu0 0.0
  %1206 = vmatpush1.msra.mxu0 0.0
  %1207 = vmatprep.subr.mxu0 0.0
  %1208 = vmatpush1.msra.mxu0 0.0
  %1209 = vmatprep.subr.mxu0 0.0
  %1210 = vmatpush1.msra.mxu0 0.0
  %1211 = vmatprep.subr.mxu0 0.0
  %1212 = vmatpush1.msra.mxu0 0.0
  %1213 = vmatprep.subr.mxu0 0.0
  %1214 = vmatpush1.msra.mxu0 0.0
  %1215 = vmatprep.mubr.f32.mxu0 0.0
  %1216 = vmatmul.mubr.f32.gmra.mrb[0].mxu0 %v1149
  %v1217 = vpop.f32.mrb[0].mxu0
  %v1218 = vadd.f32 0.0, %v1217
  %v1219 = vpop.f32.mrb[0].mxu0
  %1220 = vdwg.mxu0
  %1223 = vrot.lane.b32.xlu0 %v1142, 16
  %v1224 = vpop.permute.xlu0 %1223
  %1225 = vrot.lane.b32.xlu0 %v1218, 16
  %v1226 = vpop.permute.xlu0 %1225
  %vm1229 = vcmask 195712
  %1230 = vst.msk [vmem:[#allocation2] sm:$0xff] %vm1229, %v1224
  %1231 = vst.msk [vmem:[#allocation2 + $0x8] sm:$0xff] %vm1229, %v1226
  %1232 = vrot.lane.b32.xlu0 %v211, 104
  %v1233 = vpop.permute.xlu0 %1232
  %1234 = vrot.lane.b32.xlu0 %v211, 72
  %v1235 = vpop.permute.xlu0 %1234
  %v1236 = vsel %vm222, %v1233, 0
  %v1238 = vsel %vm222, %v1235, 0
  %1240 = vmatprep.subr.mxu0 0.0
  %1241 = vmatpush1.xpose.msra.mxu0 %v1238
  %1242 = vmatprep.subr.mxu0 0.0
  %1243 = vmatpush1.xpose.msra.mxu0 0.0
  %1244 = vmatprep.subr.mxu0 0.0
  %1245 = vmatpush1.xpose.msra.mxu0 0.0
  %1246 = vmatprep.subr.mxu0 0.0
  %1247 = vmatpush1.xpose.msra.mxu0 0.0
  %1248 = vmatprep.subr.mxu0 0.0
  %1249 = vmatpush1.xpose.msra.mxu0 0.0
  %1250 = vmatprep.subr.mxu0 0.0
  %1251 = vmatpush1.xpose.msra.mxu0 0.0
  %1252 = vmatprep.subr.mxu0 0.0
  %1253 = vmatpush1.xpose.msra.mxu0 0.0
  %1254 = vmatprep.subr.mxu0 0.0
  %1255 = vmatpush1.xpose.msra.mxu0 0.0
  %1256 = vmatprep.subr.mxu0 0.0
  %1257 = vmatpush1.xpose.msra.mxu0 0.0
  %1258 = vmatprep.subr.mxu0 0.0
  %1259 = vmatpush1.xpose.msra.mxu0 0.0
  %1260 = vmatprep.subr.mxu0 0.0
  %1261 = vmatpush1.xpose.msra.mxu0 0.0
  %1262 = vmatprep.subr.mxu0 0.0
  %1263 = vmatpush1.xpose.msra.mxu0 0.0
  %1264 = vmatprep.subr.mxu0 0.0
  %1265 = vmatpush1.xpose.msra.mxu0 0.0
  %1266 = vmatprep.subr.mxu0 0.0
  %1267 = vmatpush1.xpose.msra.mxu0 0.0
  %1268 = vmatprep.subr.mxu0 0.0
  %1269 = vmatpush1.xpose.msra.mxu0 0.0
  %1270 = vmatprep.subr.mxu0 0.0
  %1271 = vmatpush1.xpose.msra.mxu0 0.0
  %1272 = vmatprep.subr.mxu0 0.0
  %1273 = vmatpush1.xpose.msra.mxu0 0.0
  %1274 = vmatprep.subr.mxu0 0.0
  %1275 = vmatpush1.xpose.msra.mxu0 0.0
  %1276 = vmatprep.subr.mxu0 0.0
  %1277 = vmatpush1.xpose.msra.mxu0 0.0
  %1278 = vmatprep.subr.mxu0 0.0
  %1279 = vmatpush1.xpose.msra.mxu0 0.0
  %1280 = vmatprep.subr.mxu0 0.0
  %1281 = vmatpush1.xpose.msra.mxu0 0.0
  %1282 = vmatprep.subr.mxu0 0.0
  %1283 = vmatpush1.xpose.msra.mxu0 0.0
  %1284 = vmatprep.subr.mxu0 0.0
  %1285 = vmatpush1.xpose.msra.mxu0 0.0
  %1286 = vmatprep.subr.mxu0 0.0
  %1287 = vmatpush1.xpose.msra.mxu0 0.0
  %1288 = vmatprep.subr.mxu0 0.0
  %1289 = vmatpush1.xpose.msra.mxu0 0.0
  %1290 = vmatprep.subr.mxu0 0.0
  %1291 = vmatpush1.xpose.msra.mxu0 0.0
  %1292 = vmatprep.subr.mxu0 0.0
  %1293 = vmatpush1.xpose.msra.mxu0 0.0
  %1294 = vmatprep.subr.mxu0 0.0
  %1295 = vmatpush1.xpose.msra.mxu0 0.0
  %1296 = vmatprep.subr.mxu0 0.0
  %1297 = vmatpush1.xpose.msra.mxu0 0.0
  %1298 = vmatprep.subr.mxu0 0.0
  %1299 = vmatpush1.xpose.msra.mxu0 0.0
  %1300 = vmatprep.subr.mxu0 0.0
  %1301 = vmatpush1.xpose.msra.mxu0 0.0
  %1302 = vmatprep.subr.mxu0 0.0
  %1303 = vmatpush1.xpose.msra.mxu0 0.0
  %1304 = vmatprep.mubr.f32.mxu0 0.0
  %1305 = vmatmul.mubr.f32.gmra.mrb[0].mxu0 %v1236
  %v1306 = vpop.f32.mrb[0].mxu0
  %v1307 = vadd.f32 %v74, %v1306
  %v1308 = vpop.f32.mrb[0].mxu0
  %1309 = vdwg.mxu0
  %1310 = vrot.lane.b32.xlu0 %v216, 104
  %v1311 = vpop.permute.xlu0 %1310
  %1312 = vrot.lane.b32.xlu0 %v216, 72
  %v1313 = vpop.permute.xlu0 %1312
  %v1314 = vsel %vm222, %v1311, 0
  %v1316 = vsel %vm222, %v1313, 0
  %1318 = vmatprep.subr.mxu0 0.0
  %1319 = vmatpush1.xpose.msra.mxu0 %v1316
  %1320 = vmatprep.subr.mxu0 0.0
  %1321 = vmatpush1.xpose.msra.mxu0 0.0
  %1322 = vmatprep.subr.mxu0 0.0
  %1323 = vmatpush1.xpose.msra.mxu0 0.0
  %1324 = vmatprep.subr.mxu0 0.0
  %1325 = vmatpush1.xpose.msra.mxu0 0.0
  %1326 = vmatprep.subr.mxu0 0.0
  %1327 = vmatpush1.xpose.msra.mxu0 0.0
  %1328 = vmatprep.subr.mxu0 0.0
  %1329 = vmatpush1.xpose.msra.mxu0 0.0
  %1330 = vmatprep.subr.mxu0 0.0
  %1331 = vmatpush1.xpose.msra.mxu0 0.0
  %1332 = vmatprep.subr.mxu0 0.0
  %1333 = vmatpush1.xpose.msra.mxu0 0.0
  %1334 = vmatprep.subr.mxu0 0.0
  %1335 = vmatpush1.xpose.msra.mxu0 0.0
  %1336 = vmatprep.subr.mxu0 0.0
  %1337 = vmatpush1.xpose.msra.mxu0 0.0
  %1338 = vmatprep.subr.mxu0 0.0
  %1339 = vmatpush1.xpose.msra.mxu0 0.0
  %1340 = vmatprep.subr.mxu0 0.0
  %1341 = vmatpush1.xpose.msra.mxu0 0.0
  %1342 = vmatprep.subr.mxu0 0.0
  %1343 = vmatpush1.xpose.msra.mxu0 0.0
  %1344 = vmatprep.subr.mxu0 0.0
  %1345 = vmatpush1.xpose.msra.mxu0 0.0
  %1346 = vmatprep.subr.mxu0 0.0
  %1347 = vmatpush1.xpose.msra.mxu0 0.0
  %1348 = vmatprep.subr.mxu0 0.0
  %1349 = vmatpush1.xpose.msra.mxu0 0.0
  %1350 = vmatprep.subr.mxu0 0.0
  %1351 = vmatpush1.xpose.msra.mxu0 0.0
  %1352 = vmatprep.subr.mxu0 0.0
  %1353 = vmatpush1.xpose.msra.mxu0 0.0
  %1354 = vmatprep.subr.mxu0 0.0
  %1355 = vmatpush1.xpose.msra.mxu0 0.0
  %1356 = vmatprep.subr.mxu0 0.0
  %1357 = vmatpush1.xpose.msra.mxu0 0.0
  %1358 = vmatprep.subr.mxu0 0.0
  %1359 = vmatpush1.xpose.msra.mxu0 0.0
  %1360 = vmatprep.subr.mxu0 0.0
  %1361 = vmatpush1.xpose.msra.mxu0 0.0
  %1362 = vmatprep.subr.mxu0 0.0
  %1363 = vmatpush1.xpose.msra.mxu0 0.0
  %1364 = vmatprep.subr.mxu0 0.0
  %1365 = vmatpush1.xpose.msra.mxu0 0.0
  %1366 = vmatprep.subr.mxu0 0.0
  %1367 = vmatpush1.xpose.msra.mxu0 0.0
  %1368 = vmatprep.subr.mxu0 0.0
  %1369 = vmatpush1.xpose.msra.mxu0 0.0
  %1370 = vmatprep.subr.mxu0 0.0
  %1371 = vmatpush1.xpose.msra.mxu0 0.0
  %1372 = vmatprep.subr.mxu0 0.0
  %1373 = vmatpush1.xpose.msra.mxu0 0.0
  %1374 = vmatprep.subr.mxu0 0.0
  %1375 = vmatpush1.xpose.msra.mxu0 0.0
  %1376 = vmatprep.subr.mxu0 0.0
  %1377 = vmatpush1.xpose.msra.mxu0 0.0
  %1378 = vmatprep.subr.mxu0 0.0
  %1379 = vmatpush1.xpose.msra.mxu0 0.0
  %1380 = vmatprep.subr.mxu0 0.0
  %1381 = vmatpush1.xpose.msra.mxu0 0.0
  %1382 = vmatprep.mubr.f32.mxu0 0.0
  %1383 = vmatmul.mubr.f32.gmra.mrb[0].mxu0 %v1314
  %v1384 = vpop.f32.mrb[0].mxu0
  %v1385 = vadd.f32 %v78, %v1384
  %v1386 = vpop.f32.mrb[0].mxu0
  %1387 = vdwg.mxu0
  %v1388 = vsel %vm222, %v1307, -inf
  %1389 = vmax.xlane.f32.xlu0 %v1388
  %v1390 = vpop.xlane.xlu0 %1389
  %v1391 = vsel %vm222, %v1385, -inf
  %1392 = vmax.xlane.f32.xlu0 %v1391
  %v1393 = vpop.xlane.xlu0 %1392
  %v1394 = vsub.f32 %v1307, %v1390
  %v1395 = vsub.f32 %v1385, %v1393
  %v1396 = vmul.f32 %v1394, 1.442695
  %v1397 = vpow.pop %v1396
  %v1398 = vmul.f32 %v1395, 1.442695
  %v1399 = vpow.pop %v1398
  %v1400 = vsel %vm222, %v1397, 0.0
  %1401 = vadd.xlane.f32.xlu0 %v1400
  %v1402 = vpop.xlane.xlu0 %1401
  %v1403 = vsel %vm222, %v1399, 0.0
  %1404 = vadd.xlane.f32.xlu0 %v1403
  %v1405 = vpop.xlane.xlu0 %1404
  %v1406 = vrcp.pop %v1402
  %v1407 = vmul.f32 %v1397, %v1406
  %v1408 = vrcp.pop %v1405
  %v1409 = vmul.f32 %v1399, %v1408
  %1410 = vrot.lane.b32.xlu0 %v211, 40
  %v1411 = vpop.permute.xlu0 %1410
  %v1414 = vsel %vm222, %v1407, 0
  %1416 = vmatprep.subr.mxu0 0.0
  %1417 = vmatpush1.msra.mxu0 %v1411
  %1418 = vmatprep.subr.mxu0 0.0
  %1419 = vmatpush1.msra.mxu0 0.0
  %1420 = vmatprep.subr.mxu0 0.0
  %1421 = vmatpush1.msra.mxu0 0.0
  %1422 = vmatprep.subr.mxu0 0.0
  %1423 = vmatpush1.msra.mxu0 0.0
  %1424 = vmatprep.subr.mxu0 0.0
  %1425 = vmatpush1.msra.mxu0 0.0
  %1426 = vmatprep.subr.mxu0 0.0
  %1427 = vmatpush1.msra.mxu0 0.0
  %1428 = vmatprep.subr.mxu0 0.0
  %1429 = vmatpush1.msra.mxu0 0.0
  %1430 = vmatprep.subr.mxu0 0.0
  %1431 = vmatpush1.msra.mxu0 0.0
  %1432 = vmatprep.subr.mxu0 0.0
  %1433 = vmatpush1.msra.mxu0 0.0
  %1434 = vmatprep.subr.mxu0 0.0
  %1435 = vmatpush1.msra.mxu0 0.0
  %1436 = vmatprep.subr.mxu0 0.0
  %1437 = vmatpush1.msra.mxu0 0.0
  %1438 = vmatprep.subr.mxu0 0.0
  %1439 = vmatpush1.msra.mxu0 0.0
  %1440 = vmatprep.subr.mxu0 0.0
  %1441 = vmatpush1.msra.mxu0 0.0
  %1442 = vmatprep.subr.mxu0 0.0
  %1443 = vmatpush1.msra.mxu0 0.0
  %1444 = vmatprep.subr.mxu0 0.0
  %1445 = vmatpush1.msra.mxu0 0.0
  %1446 = vmatprep.subr.mxu0 0.0
  %1447 = vmatpush1.msra.mxu0 0.0
  %1448 = vmatprep.subr.mxu0 0.0
  %1449 = vmatpush1.msra.mxu0 0.0
  %1450 = vmatprep.subr.mxu0 0.0
  %1451 = vmatpush1.msra.mxu0 0.0
  %1452 = vmatprep.subr.mxu0 0.0
  %1453 = vmatpush1.msra.mxu0 0.0
  %1454 = vmatprep.subr.mxu0 0.0
  %1455 = vmatpush1.msra.mxu0 0.0
  %1456 = vmatprep.subr.mxu0 0.0
  %1457 = vmatpush1.msra.mxu0 0.0
  %1458 = vmatprep.subr.mxu0 0.0
  %1459 = vmatpush1.msra.mxu0 0.0
  %1460 = vmatprep.subr.mxu0 0.0
  %1461 = vmatpush1.msra.mxu0 0.0
  %1462 = vmatprep.subr.mxu0 0.0
  %1463 = vmatpush1.msra.mxu0 0.0
  %1464 = vmatprep.subr.mxu0 0.0
  %1465 = vmatpush1.msra.mxu0 0.0
  %1466 = vmatprep.subr.mxu0 0.0
  %1467 = vmatpush1.msra.mxu0 0.0
  %1468 = vmatprep.subr.mxu0 0.0
  %1469 = vmatpush1.msra.mxu0 0.0
  %1470 = vmatprep.subr.mxu0 0.0
  %1471 = vmatpush1.msra.mxu0 0.0
  %1472 = vmatprep.subr.mxu0 0.0
  %1473 = vmatpush1.msra.mxu0 0.0
  %1474 = vmatprep.subr.mxu0 0.0
  %1475 = vmatpush1.msra.mxu0 0.0
  %1476 = vmatprep.subr.mxu0 0.0
  %1477 = vmatpush1.msra.mxu0 0.0
  %1478 = vmatprep.subr.mxu0 0.0
  %1479 = vmatpush1.msra.mxu0 0.0
  %1480 = vmatprep.mubr.f32.mxu0 0.0
  %1481 = vmatmul.mubr.f32.gmra.mrb[0].mxu0 %v1414
  %v1482 = vpop.f32.mrb[0].mxu0
  %v1483 = vadd.f32 0.0, %v1482
  %v1484 = vpop.f32.mrb[0].mxu0
  %1485 = vdwg.mxu0
  %1486 = vrot.lane.b32.xlu0 %v216, 40
  %v1487 = vpop.permute.xlu0 %1486
  %v1490 = vsel %vm222, %v1409, 0
  %1492 = vmatprep.subr.mxu0 0.0
  %1493 = vmatpush1.msra.mxu0 %v1487
  %1494 = vmatprep.subr.mxu0 0.0
  %1495 = vmatpush1.msra.mxu0 0.0
  %1496 = vmatprep.subr.mxu0 0.0
  %1497 = vmatpush1.msra.mxu0 0.0
  %1498 = vmatprep.subr.mxu0 0.0
  %1499 = vmatpush1.msra.mxu0 0.0
  %1500 = vmatprep.subr.mxu0 0.0
  %1501 = vmatpush1.msra.mxu0 0.0
  %1502 = vmatprep.subr.mxu0 0.0
  %1503 = vmatpush1.msra.mxu0 0.0
  %1504 = vmatprep.subr.mxu0 0.0
  %1505 = vmatpush1.msra.mxu0 0.0
  %1506 = vmatprep.subr.mxu0 0.0
  %1507 = vmatpush1.msra.mxu0 0.0
  %1508 = vmatprep.subr.mxu0 0.0
  %1509 = vmatpush1.msra.mxu0 0.0
  %1510 = vmatprep.subr.mxu0 0.0
  %1511 = vmatpush1.msra.mxu0 0.0
  %1512 = vmatprep.subr.mxu0 0.0
  %1513 = vmatpush1.msra.mxu0 0.0
  %1514 = vmatprep.subr.mxu0 0.0
  %1515 = vmatpush1.msra.mxu0 0.0
  %1516 = vmatprep.subr.mxu0 0.0
  %1517 = vmatpush1.msra.mxu0 0.0
  %1518 = vmatprep.subr.mxu0 0.0
  %1519 = vmatpush1.msra.mxu0 0.0
  %1520 = vmatprep.subr.mxu0 0.0
  %1521 = vmatpush1.msra.mxu0 0.0
  %1522 = vmatprep.subr.mxu0 0.0
  %1523 = vmatpush1.msra.mxu0 0.0
  %1524 = vmatprep.subr.mxu0 0.0
  %1525 = vmatpush1.msra.mxu0 0.0
  %1526 = vmatprep.subr.mxu0 0.0
  %1527 = vmatpush1.msra.mxu0 0.0
  %1528 = vmatprep.subr.mxu0 0.0
  %1529 = vmatpush1.msra.mxu0 0.0
  %1530 = vmatprep.subr.mxu0 0.0
  %1531 = vmatpush1.msra.mxu0 0.0
  %1532 = vmatprep.subr.mxu0 0.0
  %1533 = vmatpush1.msra.mxu0 0.0
  %1534 = vmatprep.subr.mxu0 0.0
  %1535 = vmatpush1.msra.mxu0 0.0
  %1536 = vmatprep.subr.mxu0 0.0
  %1537 = vmatpush1.msra.mxu0 0.0
  %1538 = vmatprep.subr.mxu0 0.0
  %1539 = vmatpush1.msra.mxu0 0.0
  %1540 = vmatprep.subr.mxu0 0.0
  %1541 = vmatpush1.msra.mxu0 0.0
  %1542 = vmatprep.subr.mxu0 0.0
  %1543 = vmatpush1.msra.mxu0 0.0
  %1544 = vmatprep.subr.mxu0 0.0
  %1545 = vmatpush1.msra.mxu0 0.0
  %1546 = vmatprep.subr.mxu0 0.0
  %1547 = vmatpush1.msra.mxu0 0.0
  %1548 = vmatprep.subr.mxu0 0.0
  %1549 = vmatpush1.msra.mxu0 0.0
  %1550 = vmatprep.subr.mxu0 0.0
  %1551 = vmatpush1.msra.mxu0 0.0
  %1552 = vmatprep.subr.mxu0 0.0
  %1553 = vmatpush1.msra.mxu0 0.0
  %1554 = vmatprep.subr.mxu0 0.0
  %1555 = vmatpush1.msra.mxu0 0.0
  %1556 = vmatprep.mubr.f32.mxu0 0.0
  %1557 = vmatmul.mubr.f32.gmra.mrb[0].mxu0 %v1490
  %v1558 = vpop.f32.mrb[0].mxu0
  %v1559 = vadd.f32 0.0, %v1558
  %v1560 = vpop.f32.mrb[0].mxu0
  %1561 = vdwg.mxu0
  %1564 = vrot.lane.b32.xlu0 %v1483, 24
  %v1565 = vpop.permute.xlu0 %1564
  %1566 = vrot.lane.b32.xlu0 %v1559, 24
  %v1567 = vpop.permute.xlu0 %1566
  %vm1570 = vcmask 261312
  %1571 = vst.msk [vmem:[#allocation2] sm:$0xff] %vm1570, %v1565
  %1572 = vst.msk [vmem:[#allocation2 + $0x8] sm:$0xff] %vm1570, %v1567
  %v1573 = vld [vmem:[#allocation2] sm:$0xff]
  %v1574 = vld [vmem:[#allocation2 + $0x8] sm:$0xff]
  %v1575 = vld [vmem:[%s6] sm:$0xff]
  %v1576 = vld [vmem:[%s6 + $0x8] sm:$0xff]
  %v1577 = vld [vmem:[%s6 + $0x10] sm:$0xff]
  %v1578 = vld [vmem:[%s6 + $0x18] sm:$0xff]
  %v1579 = vld [vmem:[%s7] sm:$0x1]
  %v1581 = vlaneseq
  %v1582 = vshrl.u32 %v1581, 7
  %v1583 = vsub.s32 0, %v1582
  %v1584 = vrot.slane %v1579, %v1583
  %v1587 = vsel %vm83, %v1573, 0
  %v1590 = vsel %vm83, %v1574, 0
  %1592 = vmatprep.subr.mxu0 0.0
  %1593 = vmatpush1.msra.mxu0 %v1575
  %1594 = vmatprep.subr.mxu0 0.0
  %1595 = vmatpush1.msra.mxu0 %v1576
  %1596 = vmatprep.subr.mxu0 0.0
  %1597 = vmatpush1.msra.mxu0 %v1577
  %1598 = vmatprep.subr.mxu0 0.0
  %1599 = vmatpush1.msra.mxu0 %v1578
  %1600 = vmatprep.subr.mxu0 0.0
  %1601 = vmatpush1.msra.mxu0 0.0
  %1602 = vmatprep.subr.mxu0 0.0
  %1603 = vmatpush1.msra.mxu0 0.0
  %1604 = vmatprep.subr.mxu0 0.0
  %1605 = vmatpush1.msra.mxu0 0.0
  %1606 = vmatprep.subr.mxu0 0.0
  %1607 = vmatpush1.msra.mxu0 0.0
  %1608 = vmatprep.subr.mxu0 0.0
  %1609 = vmatpush1.msra.mxu0 0.0
  %1610 = vmatprep.subr.mxu0 0.0
  %1611 = vmatpush1.msra.mxu0 0.0
  %1612 = vmatprep.subr.mxu0 0.0
  %1613 = vmatpush1.msra.mxu0 0.0
  %1614 = vmatprep.subr.mxu0 0.0
  %1615 = vmatpush1.msra.mxu0 0.0
  %1616 = vmatprep.subr.mxu0 0.0
  %1617 = vmatpush1.msra.mxu0 0.0
  %1618 = vmatprep.subr.mxu0 0.0
  %1619 = vmatpush1.msra.mxu0 0.0
  %1620 = vmatprep.subr.mxu0 0.0
  %1621 = vmatpush1.msra.mxu0 0.0
  %1622 = vmatprep.subr.mxu0 0.0
  %1623 = vmatpush1.msra.mxu0 0.0
  %1624 = vmatprep.subr.mxu0 0.0
  %1625 = vmatpush1.msra.mxu0 0.0
  %1626 = vmatprep.subr.mxu0 0.0
  %1627 = vmatpush1.msra.mxu0 0.0
  %1628 = vmatprep.subr.mxu0 0.0
  %1629 = vmatpush1.msra.mxu0 0.0
  %1630 = vmatprep.subr.mxu0 0.0
  %1631 = vmatpush1.msra.mxu0 0.0
  %1632 = vmatprep.subr.mxu0 0.0
  %1633 = vmatpush1.msra.mxu0 0.0
  %1634 = vmatprep.subr.mxu0 0.0
  %1635 = vmatpush1.msra.mxu0 0.0
  %1636 = vmatprep.subr.mxu0 0.0
  %1637 = vmatpush1.msra.mxu0 0.0
  %1638 = vmatprep.subr.mxu0 0.0
  %1639 = vmatpush1.msra.mxu0 0.0
  %1640 = vmatprep.subr.mxu0 0.0
  %1641 = vmatpush1.msra.mxu0 0.0
  %1642 = vmatprep.subr.mxu0 0.0
  %1643 = vmatpush1.msra.mxu0 0.0
  %1644 = vmatprep.subr.mxu0 0.0
  %1645 = vmatpush1.msra.mxu0 0.0
  %1646 = vmatprep.subr.mxu0 0.0
  %1647 = vmatpush1.msra.mxu0 0.0
  %1648 = vmatprep.subr.mxu0 0.0
  %1649 = vmatpush1.msra.mxu0 0.0
  %1650 = vmatprep.subr.mxu0 0.0
  %1651 = vmatpush1.msra.mxu0 0.0
  %1652 = vmatprep.subr.mxu0 0.0
  %1653 = vmatpush1.msra.mxu0 0.0
  %1654 = vmatprep.subr.mxu0 0.0
  %1655 = vmatpush1.msra.mxu0 0.0
  %1656 = vmatprep.mubr.f32.mxu0 0.0
  %1657 = vmatmul.mubr.f32.gmra.mrb[0].mxu0 %v1587
  %v1658 = vpop.f32.mrb[0].mxu0
  %v1659 = vadd.f32 %v1584, %v1658
  %v1660 = vpop.f32.mrb[0].mxu0
  %1661 = vmatprep.mubr.f32.mxu0 0.0
  %1662 = vmatmul.mubr.f32.gmra.mrb[0].mxu0 %v1590
  %v1663 = vpop.f32.mrb[0].mxu0
  %v1664 = vadd.f32 %v1584, %v1663
  %v1665 = vpop.f32.mrb[0].mxu0
  %1666 = vdwg.mxu0
  %v1667 = vadd.f32 %v1659, %v125
  %v1668 = vadd.f32 %v1664, %v126
  %v1669 = vld [vmem:[%s8] sm:$0x1]
  %v1670 = vld [vmem:[%s9] sm:$0x1]
  %v1671 = vsel %vm83, %v1667, 0.0
  %1672 = vadd.xlane.f32.xlu0 %v1671
  %v1673 = vpop.xlane.xlu0 %1672
  %v1674 = vsel %vm83, %v1668, 0.0
  %1675 = vadd.xlane.f32.xlu0 %v1674
  %v1676 = vpop.xlane.xlu0 %1675
  %v1677 = vmul.f32 %v1673, %v90
  %v1678 = vmul.f32 %v1676, %v90
  %v1679 = vsub.f32 %v1667, %v1677
  %v1680 = vsub.f32 %v1668, %v1678
  %v1681 = vmul.f32 %v1679, %v1679
  %v1682 = vmul.f32 %v1680, %v1680
  %v1683 = vsel %vm83, %v1681, 0.0
  %1684 = vadd.xlane.f32.xlu0 %v1683
  %v1685 = vpop.xlane.xlu0 %1684
  %v1686 = vsel %vm83, %v1682, 0.0
  %1687 = vadd.xlane.f32.xlu0 %v1686
  %v1688 = vpop.xlane.xlu0 %1687
  %v1689 = vmul.f32 %v1685, %v90
  %v1690 = vmul.f32 %v1688, %v90
  %v1691 = vadd.f32 %v1689, 1e-12
  %v1692 = vadd.f32 %v1690, 1e-12
  %v1693 = vrsqrt.pop %v1691
  %v1694 = vrsqrt.pop %v1692
  %v1695 = vmul.f32 %v1679, %v1693
  %v1696 = vmul.f32 %v1680, %v1694
  %v1698 = vlaneseq
  %v1699 = vshrl.u32 %v1698, 7
  %v1700 = vsub.s32 0, %v1699
  %v1701 = vrot.slane %v1669, %v1700
  %v1703 = vmul.f32 %v1695, %v1701
  %v1704 = vmul.f32 %v1696, %v1701
  %v1706 = vlaneseq
  %v1707 = vshrl.u32 %v1706, 7
  %v1708 = vsub.s32 0, %v1707
  %v1709 = vrot.slane %v1670, %v1708
  %v1711 = vadd.f32 %v1703, %v1709
  %v1712 = vadd.f32 %v1704, %v1709
  %v1713 = vld [vmem:[%s10] sm:$0xff]
  %v1714 = vld [vmem:[%s10 + $0x8] sm:$0xff]
  %v1715 = vld [vmem:[%s10 + $0x10] sm:$0xff]
  %v1716 = vld [vmem:[%s10 + $0x18] sm:$0xff]
  %v1717 = vld [vmem:[%s11] sm:$0x1]
  %v1719 = vlaneseq
  %v1720 = vshrl.u32 %v1719, 7
  %v1721 = vsub.s32 0, %v1720
  %v1722 = vrot.slane %v1717, %v1721
  %v1725 = vsel %vm83, %v1711, 0
  %v1728 = vsel %vm83, %v1712, 0
  %1730 = vmatprep.subr.mxu0 0.0
  %1731 = vmatpush1.msra.mxu0 %v1713
  %1732 = vmatprep.subr.mxu0 0.0
  %1733 = vmatpush1.msra.mxu0 %v1714
  %1734 = vmatprep.subr.mxu0 0.0
  %1735 = vmatpush1.msra.mxu0 %v1715
  %1736 = vmatprep.subr.mxu0 0.0
  %1737 = vmatpush1.msra.mxu0 %v1716
  %1738 = vmatprep.subr.mxu0 0.0
  %1739 = vmatpush1.msra.mxu0 0.0
  %1740 = vmatprep.subr.mxu0 0.0
  %1741 = vmatpush1.msra.mxu0 0.0
  %1742 = vmatprep.subr.mxu0 0.0
  %1743 = vmatpush1.msra.mxu0 0.0
  %1744 = vmatprep.subr.mxu0 0.0
  %1745 = vmatpush1.msra.mxu0 0.0
  %1746 = vmatprep.subr.mxu0 0.0
  %1747 = vmatpush1.msra.mxu0 0.0
  %1748 = vmatprep.subr.mxu0 0.0
  %1749 = vmatpush1.msra.mxu0 0.0
  %1750 = vmatprep.subr.mxu0 0.0
  %1751 = vmatpush1.msra.mxu0 0.0
  %1752 = vmatprep.subr.mxu0 0.0
  %1753 = vmatpush1.msra.mxu0 0.0
  %1754 = vmatprep.subr.mxu0 0.0
  %1755 = vmatpush1.msra.mxu0 0.0
  %1756 = vmatprep.subr.mxu0 0.0
  %1757 = vmatpush1.msra.mxu0 0.0
  %1758 = vmatprep.subr.mxu0 0.0
  %1759 = vmatpush1.msra.mxu0 0.0
  %1760 = vmatprep.subr.mxu0 0.0
  %1761 = vmatpush1.msra.mxu0 0.0
  %1762 = vmatprep.subr.mxu0 0.0
  %1763 = vmatpush1.msra.mxu0 0.0
  %1764 = vmatprep.subr.mxu0 0.0
  %1765 = vmatpush1.msra.mxu0 0.0
  %1766 = vmatprep.subr.mxu0 0.0
  %1767 = vmatpush1.msra.mxu0 0.0
  %1768 = vmatprep.subr.mxu0 0.0
  %1769 = vmatpush1.msra.mxu0 0.0
  %1770 = vmatprep.subr.mxu0 0.0
  %1771 = vmatpush1.msra.mxu0 0.0
  %1772 = vmatprep.subr.mxu0 0.0
  %1773 = vmatpush1.msra.mxu0 0.0
  %1774 = vmatprep.subr.mxu0 0.0
  %1775 = vmatpush1.msra.mxu0 0.0
  %1776 = vmatprep.subr.mxu0 0.0
  %1777 = vmatpush1.msra.mxu0 0.0
  %1778 = vmatprep.subr.mxu0 0.0
  %1779 = vmatpush1.msra.mxu0 0.0
  %1780 = vmatprep.subr.mxu0 0.0
  %1781 = vmatpush1.msra.mxu0 0.0
  %1782 = vmatprep.subr.mxu0 0.0
  %1783 = vmatpush1.msra.mxu0 0.0
  %1784 = vmatprep.subr.mxu0 0.0
  %1785 = vmatpush1.msra.mxu0 0.0
  %1786 = vmatprep.subr.mxu0 0.0
  %1787 = vmatpush1.msra.mxu0 0.0
  %1788 = vmatprep.subr.mxu0 0.0
  %1789 = vmatpush1.msra.mxu0 0.0
  %1790 = vmatprep.subr.mxu0 0.0
  %1791 = vmatpush1.msra.mxu0 0.0
  %1792 = vmatprep.subr.mxu0 0.0
  %1793 = vmatpush1.msra.mxu0 0.0
  %1794 = vmatprep.mubr.f32.mxu0 0.0
  %1795 = vmatmul.mubr.f32.gmra.mrb[0].mxu0 %v1725
  %v1796 = vpop.f32.mrb[0].mxu0
  %v1797 = vadd.f32 %v1722, %v1796
  %v1798 = vpop.f32.mrb[0].mxu0
  %1799 = vmatprep.mubr.f32.mxu0 0.0
  %1800 = vmatmul.mubr.f32.gmra.mrb[0].mxu0 %v1728
  %v1801 = vpop.f32.mrb[0].mxu0
  %v1802 = vadd.f32 %v1722, %v1801
  %v1803 = vpop.f32.mrb[0].mxu0
  %1804 = vdwg.mxu0
  %v1805 = vmul.f32 %v1797, 0.5
  %v1806 = vmul.f32 %v1802, 0.5
  %v1807 = vmul.f32 %v1797, 0.70710677
  %v1808 = vmul.f32 %v1802, 0.70710677
  %v1809 = verf.f32.pop %v1807
  %v1810 = verf.f32.pop %v1808
  %v1811 = vadd.f32 %v1809, 1.0
  %v1812 = vadd.f32 %v1810, 1.0
  %v1813 = vmul.f32 %v1805, %v1811
  %v1814 = vmul.f32 %v1806, %v1812
  %v1815 = vld [vmem:[%s12] sm:$0xff]
  %v1816 = vld [vmem:[%s12 + $0x8] sm:$0xff]
  %v1817 = vld [vmem:[%s12 + $0x10] sm:$0xff]
  %v1818 = vld [vmem:[%s12 + $0x18] sm:$0xff]
  %v1819 = vld [vmem:[%s12 + $0x20] sm:$0xff]
  %v1820 = vld [vmem:[%s12 + $0x28] sm:$0xff]
  %v1821 = vld [vmem:[%s12 + $0x30] sm:$0xff]
  %v1822 = vld [vmem:[%s12 + $0x38] sm:$0xff]
  %v1823 = vld [vmem:[%s12 + $0x40] sm:$0xff]
  %v1824 = vld [vmem:[%s12 + $0x48] sm:$0xff]
  %v1825 = vld [vmem:[%s12 + $0x50] sm:$0xff]
  %v1826 = vld [vmem:[%s12 + $0x58] sm:$0xff]
  %v1827 = vld [vmem:[%s12 + $0x60] sm:$0xff]
  %v1828 = vld [vmem:[%s12 + $0x68] sm:$0xff]
  %v1829 = vld [vmem:[%s12 + $0x70] sm:$0xff]
  %v1830 = vld [vmem:[%s12 + $0x78] sm:$0xff]
  %v1831 = vld [vmem:[%s13] sm:$0x1]
  %v1833 = vlaneseq
  %v1834 = vshrl.u32 %v1833, 7
  %v1835 = vsub.s32 0, %v1834
  %v1836 = vrot.slane %v1831, %v1835
  %1838 = vmatprep.subr.mxu0 0.0
  %1839 = vmatpush1.msra.mxu0 %v1815
  %1840 = vmatprep.subr.mxu0 0.0
  %1841 = vmatpush1.msra.mxu0 %v1816
  %1842 = vmatprep.subr.mxu0 0.0
  %1843 = vmatpush1.msra.mxu0 %v1817
  %1844 = vmatprep.subr.mxu0 0.0
  %1845 = vmatpush1.msra.mxu0 %v1818
  %1846 = vmatprep.subr.mxu0 0.0
  %1847 = vmatpush1.msra.mxu0 %v1819
  %1848 = vmatprep.subr.mxu0 0.0
  %1849 = vmatpush1.msra.mxu0 %v1820
  %1850 = vmatprep.subr.mxu0 0.0
  %1851 = vmatpush1.msra.mxu0 %v1821
  %1852 = vmatprep.subr.mxu0 0.0
  %1853 = vmatpush1.msra.mxu0 %v1822
  %1854 = vmatprep.subr.mxu0 0.0
  %1855 = vmatpush1.msra.mxu0 %v1823
  %1856 = vmatprep.subr.mxu0 0.0
  %1857 = vmatpush1.msra.mxu0 %v1824
  %1858 = vmatprep.subr.mxu0 0.0
  %1859 = vmatpush1.msra.mxu0 %v1825
  %1860 = vmatprep.subr.mxu0 0.0
  %1861 = vmatpush1.msra.mxu0 %v1826
  %1862 = vmatprep.subr.mxu0 0.0
  %1863 = vmatpush1.msra.mxu0 %v1827
  %1864 = vmatprep.subr.mxu0 0.0
  %1865 = vmatpush1.msra.mxu0 %v1828
  %1866 = vmatprep.subr.mxu0 0.0
  %1867 = vmatpush1.msra.mxu0 %v1829
  %1868 = vmatprep.subr.mxu0 0.0
  %1869 = vmatpush1.msra.mxu0 %v1830
  %1870 = vmatprep.subr.mxu0 0.0
  %1871 = vmatpush1.msra.mxu0 0.0
  %1872 = vmatprep.subr.mxu0 0.0
  %1873 = vmatpush1.msra.mxu0 0.0
  %1874 = vmatprep.subr.mxu0 0.0
  %1875 = vmatpush1.msra.mxu0 0.0
  %1876 = vmatprep.subr.mxu0 0.0
  %1877 = vmatpush1.msra.mxu0 0.0
  %1878 = vmatprep.subr.mxu0 0.0
  %1879 = vmatpush1.msra.mxu0 0.0
  %1880 = vmatprep.subr.mxu0 0.0
  %1881 = vmatpush1.msra.mxu0 0.0
  %1882 = vmatprep.subr.mxu0 0.0
  %1883 = vmatpush1.msra.mxu0 0.0
  %1884 = vmatprep.subr.mxu0 0.0
  %1885 = vmatpush1.msra.mxu0 0.0
  %1886 = vmatprep.subr.mxu0 0.0
  %1887 = vmatpush1.msra.mxu0 0.0
  %1888 = vmatprep.subr.mxu0 0.0
  %1889 = vmatpush1.msra.mxu0 0.0
  %1890 = vmatprep.subr.mxu0 0.0
  %1891 = vmatpush1.msra.mxu0 0.0
  %1892 = vmatprep.subr.mxu0 0.0
  %1893 = vmatpush1.msra.mxu0 0.0
  %1894 = vmatprep.subr.mxu0 0.0
  %1895 = vmatpush1.msra.mxu0 0.0
  %1896 = vmatprep.subr.mxu0 0.0
  %1897 = vmatpush1.msra.mxu0 0.0
  %1898 = vmatprep.subr.mxu0 0.0
  %1899 = vmatpush1.msra.mxu0 0.0
  %1900 = vmatprep.subr.mxu0 0.0
  %1901 = vmatpush1.msra.mxu0 0.0
  %1902 = vmatprep.mubr.f32.mxu0 0.0
  %1903 = vmatmul.mubr.f32.gmra.mrb[0].mxu0 %v1813
  %v1904 = vpop.f32.mrb[0].mxu0
  %v1905 = vadd.f32 %v1836, %v1904
  %v1906 = vpop.f32.mrb[0].mxu0
  %1907 = vmatprep.mubr.f32.mxu0 0.0
  %1908 = vmatmul.mubr.f32.gmra.mrb[0].mxu0 %v1814
  %v1909 = vpop.f32.mrb[0].mxu0
  %v1910 = vadd.f32 %v1836, %v1909
  %v1911 = vpop.f32.mrb[0].mxu0
  %1912 = vdwg.mxu0
  %v1913 = vadd.f32 %v1905, %v1711
  %v1914 = vadd.f32 %v1910, %v1712
  %v1915 = vld [vmem:[%s14] sm:$0x1]
  %v1916 = vld [vmem:[%s15] sm:$0x1]
  %v1917 = vsel %vm83, %v1913, 0.0
  %1918 = vadd.xlane.f32.xlu0 %v1917
  %v1919 = vpop.xlane.xlu0 %1918
  %v1920 = vsel %vm83, %v1914, 0.0
  %1921 = vadd.xlane.f32.xlu0 %v1920
  %v1922 = vpop.xlane.xlu0 %1921
  %v1923 = vmul.f32 %v1919, %v90
  %v1924 = vmul.f32 %v1922, %v90
  %v1925 = vsub.f32 %v1913, %v1923
  %v1926 = vsub.f32 %v1914, %v1924
  %v1927 = vmul.f32 %v1925, %v1925
  %v1928 = vmul.f32 %v1926, %v1926
  %v1929 = vsel %vm83, %v1927, 0.0
  %1930 = vadd.xlane.f32.xlu0 %v1929
  %v1931 = vpop.xlane.xlu0 %1930
  %v1932 = vsel %vm83, %v1928, 0.0
  %1933 = vadd.xlane.f32.xlu0 %v1932
  %v1934 = vpop.xlane.xlu0 %1933
  %v1935 = vmul.f32 %v1931, %v90
  %v1936 = vmul.f32 %v1934, %v90
  %v1937 = vadd.f32 %v1935, 1e-12
  %v1938 = vadd.f32 %v1936, 1e-12
  %v1939 = vrsqrt.pop %v1937
  %v1940 = vrsqrt.pop %v1938
  %v1941 = vmul.f32 %v1925, %v1939
  %v1942 = vmul.f32 %v1926, %v1940
  %v1944 = vlaneseq
  %v1945 = vshrl.u32 %v1944, 7
  %v1946 = vsub.s32 0, %v1945
  %v1947 = vrot.slane %v1915, %v1946
  %v1949 = vmul.f32 %v1941, %v1947
  %v1950 = vmul.f32 %v1942, %v1947
  %v1952 = vlaneseq
  %v1953 = vshrl.u32 %v1952, 7
  %v1954 = vsub.s32 0, %v1953
  %v1955 = vrot.slane %v1916, %v1954
  %v1957 = vadd.f32 %v1949, %v1955
  %v1958 = vadd.f32 %v1950, %v1955
  %s1959 = scalar_lea.vmem %s4, 32
  %v1960 = vld [vmem:[%s1959] sm:$0xff]
  %v1961 = vld [vmem:[%s1959 + $0x8] sm:$0xff]
  %v1962 = vld [vmem:[%s1959 + $0x10] sm:$0xff]
  %v1963 = vld [vmem:[%s1959 + $0x18] sm:$0xff]
  %s1964 = scalar_lea.vmem %s5, 1
  %v1965 = vld [vmem:[%s1964] sm:$0x1]
  %v1967 = vlaneseq
  %v1968 = vshrl.u32 %v1967, 7
  %v1969 = vsub.s32 0, %v1968
  %v1970 = vrot.slane %v1965, %v1969
  %v1973 = vsel %vm83, %v1957, 0
  %v1976 = vsel %vm83, %v1958, 0
  %1978 = vmatprep.subr.mxu0 0.0
  %1979 = vmatpush1.msra.mxu0 %v1960
  %1980 = vmatprep.subr.mxu0 0.0
  %1981 = vmatpush1.msra.mxu0 %v1961
  %1982 = vmatprep.subr.mxu0 0.0
  %1983 = vmatpush1.msra.mxu0 %v1962
  %1984 = vmatprep.subr.mxu0 0.0
  %1985 = vmatpush1.msra.mxu0 %v1963
  %1986 = vmatprep.subr.mxu0 0.0
  %1987 = vmatpush1.msra.mxu0 0.0
  %1988 = vmatprep.subr.mxu0 0.0
  %1989 = vmatpush1.msra.mxu0 0.0
  %1990 = vmatprep.subr.mxu0 0.0
  %1991 = vmatpush1.msra.mxu0 0.0
  %1992 = vmatprep.subr.mxu0 0.0
  %1993 = vmatpush1.msra.mxu0 0.0
  %1994 = vmatprep.subr.mxu0 0.0
  %1995 = vmatpush1.msra.mxu0 0.0
  %1996 = vmatprep.subr.mxu0 0.0
  %1997 = vmatpush1.msra.mxu0 0.0
  %1998 = vmatprep.subr.mxu0 0.0
  %1999 = vmatpush1.msra.mxu0 0.0
  %2000 = vmatprep.subr.mxu0 0.0
  %2001 = vmatpush1.msra.mxu0 0.0
  %2002 = vmatprep.subr.mxu0 0.0
  %2003 = vmatpush1.msra.mxu0 0.0
  %2004 = vmatprep.subr.mxu0 0.0
  %2005 = vmatpush1.msra.mxu0 0.0
  %2006 = vmatprep.subr.mxu0 0.0
  %2007 = vmatpush1.msra.mxu0 0.0
  %2008 = vmatprep.subr.mxu0 0.0
  %2009 = vmatpush1.msra.mxu0 0.0
  %2010 = vmatprep.subr.mxu0 0.0
  %2011 = vmatpush1.msra.mxu0 0.0
  %2012 = vmatprep.subr.mxu0 0.0
  %2013 = vmatpush1.msra.mxu0 0.0
  %2014 = vmatprep.subr.mxu0 0.0
  %2015 = vmatpush1.msra.mxu0 0.0
  %2016 = vmatprep.subr.mxu0 0.0
  %2017 = vmatpush1.msra.mxu0 0.0
  %2018 = vmatprep.subr.mxu0 0.0
  %2019 = vmatpush1.msra.mxu0 0.0
  %2020 = vmatprep.subr.mxu0 0.0
  %2021 = vmatpush1.msra.mxu0 0.0
  %2022 = vmatprep.subr.mxu0 0.0
  %2023 = vmatpush1.msra.mxu0 0.0
  %2024 = vmatprep.subr.mxu0 0.0
  %2025 = vmatpush1.msra.mxu0 0.0
  %2026 = vmatprep.subr.mxu0 0.0
  %2027 = vmatpush1.msra.mxu0 0.0
  %2028 = vmatprep.subr.mxu0 0.0
  %2029 = vmatpush1.msra.mxu0 0.0
  %2030 = vmatprep.subr.mxu0 0.0
  %2031 = vmatpush1.msra.mxu0 0.0
  %2032 = vmatprep.subr.mxu0 0.0
  %2033 = vmatpush1.msra.mxu0 0.0
  %2034 = vmatprep.subr.mxu0 0.0
  %2035 = vmatpush1.msra.mxu0 0.0
  %2036 = vmatprep.subr.mxu0 0.0
  %2037 = vmatpush1.msra.mxu0 0.0
  %2038 = vmatprep.subr.mxu0 0.0
  %2039 = vmatpush1.msra.mxu0 0.0
  %2040 = vmatprep.subr.mxu0 0.0
  %2041 = vmatpush1.msra.mxu0 0.0
  %2042 = vmatprep.mubr.f32.mxu0 0.0
  %2043 = vmatmul.mubr.f32.gmra.mrb[0].mxu0 %v1973
  %v2044 = vpop.f32.mrb[0].mxu0
  %v2045 = vadd.f32 %v1970, %v2044
  %v2046 = vpop.f32.mrb[0].mxu0
  %2047 = vmatprep.mubr.f32.mxu0 0.0
  %2048 = vmatmul.mubr.f32.gmra.mrb[0].mxu0 %v1976
  %v2049 = vpop.f32.mrb[0].mxu0
  %v2050 = vadd.f32 %v1970, %v2049
  %v2051 = vpop.f32.mrb[0].mxu0
  %2052 = vdwg.mxu0
  %2054 = vrot.lane.b32.xlu0 %v2045, 96
  %v2055 = vpop.permute.xlu0 %2054
  %v2056 = vsel %vm222, %v2045, 0
  %v2058 = vsel %vm222, %v2055, 0
  %2060 = vmatprep.subr.mxu0 0.0
  %2061 = vmatpush1.xpose.msra.mxu0 %v2058
  %2062 = vmatprep.subr.mxu0 0.0
  %2063 = vmatpush1.xpose.msra.mxu0 0.0
  %2064 = vmatprep.subr.mxu0 0.0
  %2065 = vmatpush1.xpose.msra.mxu0 0.0
  %2066 = vmatprep.subr.mxu0 0.0
  %2067 = vmatpush1.xpose.msra.mxu0 0.0
  %2068 = vmatprep.subr.mxu0 0.0
  %2069 = vmatpush1.xpose.msra.mxu0 0.0
  %2070 = vmatprep.subr.mxu0 0.0
  %2071 = vmatpush1.xpose.msra.mxu0 0.0
  %2072 = vmatprep.subr.mxu0 0.0
  %2073 = vmatpush1.xpose.msra.mxu0 0.0
  %2074 = vmatprep.subr.mxu0 0.0
  %2075 = vmatpush1.xpose.msra.mxu0 0.0
  %2076 = vmatprep.subr.mxu0 0.0
  %2077 = vmatpush1.xpose.msra.mxu0 0.0
  %2078 = vmatprep.subr.mxu0 0.0
  %2079 = vmatpush1.xpose.msra.mxu0 0.0
  %2080 = vmatprep.subr.mxu0 0.0
  %2081 = vmatpush1.xpose.msra.mxu0 0.0
  %2082 = vmatprep.subr.mxu0 0.0
  %2083 = vmatpush1.xpose.msra.mxu0 0.0
  %2084 = vmatprep.subr.mxu0 0.0
  %2085 = vmatpush1.xpose.msra.mxu0 0.0
  %2086 = vmatprep.subr.mxu0 0.0
  %2087 = vmatpush1.xpose.msra.mxu0 0.0
  %2088 = vmatprep.subr.mxu0 0.0
  %2089 = vmatpush1.xpose.msra.mxu0 0.0
  %2090 = vmatprep.subr.mxu0 0.0
  %2091 = vmatpush1.xpose.msra.mxu0 0.0
  %2092 = vmatprep.subr.mxu0 0.0
  %2093 = vmatpush1.xpose.msra.mxu0 0.0
  %2094 = vmatprep.subr.mxu0 0.0
  %2095 = vmatpush1.xpose.msra.mxu0 0.0
  %2096 = vmatprep.subr.mxu0 0.0
  %2097 = vmatpush1.xpose.msra.mxu0 0.0
  %2098 = vmatprep.subr.mxu0 0.0
  %2099 = vmatpush1.xpose.msra.mxu0 0.0
  %2100 = vmatprep.subr.mxu0 0.0
  %2101 = vmatpush1.xpose.msra.mxu0 0.0
  %2102 = vmatprep.subr.mxu0 0.0
  %2103 = vmatpush1.xpose.msra.mxu0 0.0
  %2104 = vmatprep.subr.mxu0 0.0
  %2105 = vmatpush1.xpose.msra.mxu0 0.0
  %2106 = vmatprep.subr.mxu0 0.0
  %2107 = vmatpush1.xpose.msra.mxu0 0.0
  %2108 = vmatprep.subr.mxu0 0.0
  %2109 = vmatpush1.xpose.msra.mxu0 0.0
  %2110 = vmatprep.subr.mxu0 0.0
  %2111 = vmatpush1.xpose.msra.mxu0 0.0
  %2112 = vmatprep.subr.mxu0 0.0
  %2113 = vmatpush1.xpose.msra.mxu0 0.0
  %2114 = vmatprep.subr.mxu0 0.0
  %2115 = vmatpush1.xpose.msra.mxu0 0.0
  %2116 = vmatprep.subr.mxu0 0.0
  %2117 = vmatpush1.xpose.msra.mxu0 0.0
  %2118 = vmatprep.subr.mxu0 0.0
  %2119 = vmatpush1.xpose.msra.mxu0 0.0
  %2120 = vmatprep.subr.mxu0 0.0
  %2121 = vmatpush1.xpose.msra.mxu0 0.0
  %2122 = vmatprep.subr.mxu0 0.0
  %2123 = vmatpush1.xpose.msra.mxu0 0.0
  %2124 = vmatprep.mubr.f32.mxu0 0.0
  %2125 = vmatmul.mubr.f32.gmra.mrb[0].mxu0 %v2056
  %v2126 = vpop.f32.mrb[0].mxu0
  %v2127 = vadd.f32 %v74, %v2126
  %v2128 = vpop.f32.mrb[0].mxu0
  %2129 = vdwg.mxu0
  %2131 = vrot.lane.b32.xlu0 %v2050, 96
  %v2132 = vpop.permute.xlu0 %2131
  %v2133 = vsel %vm222, %v2050, 0
  %v2135 = vsel %vm222, %v2132, 0
  %2137 = vmatprep.subr.mxu0 0.0
  %2138 = vmatpush1.xpose.msra.mxu0 %v2135
  %2139 = vmatprep.subr.mxu0 0.0
  %2140 = vmatpush1.xpose.msra.mxu0 0.0
  %2141 = vmatprep.subr.mxu0 0.0
  %2142 = vmatpush1.xpose.msra.mxu0 0.0
  %2143 = vmatprep.subr.mxu0 0.0
  %2144 = vmatpush1.xpose.msra.mxu0 0.0
  %2145 = vmatprep.subr.mxu0 0.0
  %2146 = vmatpush1.xpose.msra.mxu0 0.0
  %2147 = vmatprep.subr.mxu0 0.0
  %2148 = vmatpush1.xpose.msra.mxu0 0.0
  %2149 = vmatprep.subr.mxu0 0.0
  %2150 = vmatpush1.xpose.msra.mxu0 0.0
  %2151 = vmatprep.subr.mxu0 0.0
  %2152 = vmatpush1.xpose.msra.mxu0 0.0
  %2153 = vmatprep.subr.mxu0 0.0
  %2154 = vmatpush1.xpose.msra.mxu0 0.0
  %2155 = vmatprep.subr.mxu0 0.0
  %2156 = vmatpush1.xpose.msra.mxu0 0.0
  %2157 = vmatprep.subr.mxu0 0.0
  %2158 = vmatpush1.xpose.msra.mxu0 0.0
  %2159 = vmatprep.subr.mxu0 0.0
  %2160 = vmatpush1.xpose.msra.mxu0 0.0
  %2161 = vmatprep.subr.mxu0 0.0
  %2162 = vmatpush1.xpose.msra.mxu0 0.0
  %2163 = vmatprep.subr.mxu0 0.0
  %2164 = vmatpush1.xpose.msra.mxu0 0.0
  %2165 = vmatprep.subr.mxu0 0.0
  %2166 = vmatpush1.xpose.msra.mxu0 0.0
  %2167 = vmatprep.subr.mxu0 0.0
  %2168 = vmatpush1.xpose.msra.mxu0 0.0
  %2169 = vmatprep.subr.mxu0 0.0
  %2170 = vmatpush1.xpose.msra.mxu0 0.0
  %2171 = vmatprep.subr.mxu0 0.0
  %2172 = vmatpush1.xpose.msra.mxu0 0.0
  %2173 = vmatprep.subr.mxu0 0.0
  %2174 = vmatpush1.xpose.msra.mxu0 0.0
  %2175 = vmatprep.subr.mxu0 0.0
  %2176 = vmatpush1.xpose.msra.mxu0 0.0
  %2177 = vmatprep.subr.mxu0 0.0
  %2178 = vmatpush1.xpose.msra.mxu0 0.0
  %2179 = vmatprep.subr.mxu0 0.0
  %2180 = vmatpush1.xpose.msra.mxu0 0.0
  %2181 = vmatprep.subr.mxu0 0.0
  %2182 = vmatpush1.xpose.msra.mxu0 0.0
  %2183 = vmatprep.subr.mxu0 0.0
  %2184 = vmatpush1.xpose.msra.mxu0 0.0
  %2185 = vmatprep.subr.mxu0 0.0
  %2186 = vmatpush1.xpose.msra.mxu0 0.0
  %2187 = vmatprep.subr.mxu0 0.0
  %2188 = vmatpush1.xpose.msra.mxu0 0.0
  %2189 = vmatprep.subr.mxu0 0.0
  %2190 = vmatpush1.xpose.msra.mxu0 0.0
  %2191 = vmatprep.subr.mxu0 0.0
  %2192 = vmatpush1.xpose.msra.mxu0 0.0
  %2193 = vmatprep.subr.mxu0 0.0
  %2194 = vmatpush1.xpose.msra.mxu0 0.0
  %2195 = vmatprep.subr.mxu0 0.0
  %2196 = vmatpush1.xpose.msra.mxu0 0.0
  %2197 = vmatprep.subr.mxu0 0.0
  %2198 = vmatpush1.xpose.msra.mxu0 0.0
  %2199 = vmatprep.subr.mxu0 0.0
  %2200 = vmatpush1.xpose.msra.mxu0 0.0
  %2201 = vmatprep.mubr.f32.mxu0 0.0
  %2202 = vmatmul.mubr.f32.gmra.mrb[0].mxu0 %v2133
  %v2203 = vpop.f32.mrb[0].mxu0
  %v2204 = vadd.f32 %v78, %v2203
  %v2205 = vpop.f32.mrb[0].mxu0
  %2206 = vdwg.mxu0
  %v2207 = vsel %vm222, %v2127, -inf
  %2208 = vmax.xlane.f32.xlu0 %v2207
  %v2209 = vpop.xlane.xlu0 %2208
  %v2210 = vsel %vm222, %v2204, -inf
  %2211 = vmax.xlane.f32.xlu0 %v2210
  %v2212 = vpop.xlane.xlu0 %2211
  %v2213 = vsub.f32 %v2127, %v2209
  %v2214 = vsub.f32 %v2204, %v2212
  %v2215 = vmul.f32 %v2213, 1.442695
  %v2216 = vpow.pop %v2215
  %v2217 = vmul.f32 %v2214, 1.442695
  %v2218 = vpow.pop %v2217
  %v2219 = vsel %vm222, %v2216, 0.0
  %2220 = vadd.xlane.f32.xlu0 %v2219
  %v2221 = vpop.xlane.xlu0 %2220
  %v2222 = vsel %vm222, %v2218, 0.0
  %2223 = vadd.xlane.f32.xlu0 %v2222
  %v2224 = vpop.xlane.xlu0 %2223
  %v2225 = vrcp.pop %v2221
  %v2226 = vmul.f32 %v2216, %v2225
  %v2227 = vrcp.pop %v2224
  %v2228 = vmul.f32 %v2218, %v2227
  %2229 = vrot.lane.b32.xlu0 %v2045, 64
  %v2230 = vpop.permute.xlu0 %2229
  %v2233 = vsel %vm222, %v2226, 0
  %2235 = vmatprep.subr.mxu0 0.0
  %2236 = vmatpush1.msra.mxu0 %v2230
  %2237 = vmatprep.subr.mxu0 0.0
  %2238 = vmatpush1.msra.mxu0 0.0
  %2239 = vmatprep.subr.mxu0 0.0
  %2240 = vmatpush1.msra.mxu0 0.0
  %2241 = vmatprep.subr.mxu0 0.0
  %2242 = vmatpush1.msra.mxu0 0.0
  %2243 = vmatprep.subr.mxu0 0.0
  %2244 = vmatpush1.msra.mxu0 0.0
  %2245 = vmatprep.subr.mxu0 0.0
  %2246 = vmatpush1.msra.mxu0 0.0
  %2247 = vmatprep.subr.mxu0 0.0
  %2248 = vmatpush1.msra.mxu0 0.0
  %2249 = vmatprep.subr.mxu0 0.0
  %2250 = vmatpush1.msra.mxu0 0.0
  %2251 = vmatprep.subr.mxu0 0.0
  %2252 = vmatpush1.msra.mxu0 0.0
  %2253 = vmatprep.subr.mxu0 0.0
  %2254 = vmatpush1.msra.mxu0 0.0
  %2255 = vmatprep.subr.mxu0 0.0
  %2256 = vmatpush1.msra.mxu0 0.0
  %2257 = vmatprep.subr.mxu0 0.0
  %2258 = vmatpush1.msra.mxu0 0.0
  %2259 = vmatprep.subr.mxu0 0.0
  %2260 = vmatpush1.msra.mxu0 0.0
  %2261 = vmatprep.subr.mxu0 0.0
  %2262 = vmatpush1.msra.mxu0 0.0
  %2263 = vmatprep.subr.mxu0 0.0
  %2264 = vmatpush1.msra.mxu0 0.0
  %2265 = vmatprep.subr.mxu0 0.0
  %2266 = vmatpush1.msra.mxu0 0.0
  %2267 = vmatprep.subr.mxu0 0.0
  %2268 = vmatpush1.msra.mxu0 0.0
  %2269 = vmatprep.subr.mxu0 0.0
  %2270 = vmatpush1.msra.mxu0 0.0
  %2271 = vmatprep.subr.mxu0 0.0
  %2272 = vmatpush1.msra.mxu0 0.0
  %2273 = vmatprep.subr.mxu0 0.0
  %2274 = vmatpush1.msra.mxu0 0.0
  %2275 = vmatprep.subr.mxu0 0.0
  %2276 = vmatpush1.msra.mxu0 0.0
  %2277 = vmatprep.subr.mxu0 0.0
  %2278 = vmatpush1.msra.mxu0 0.0
  %2279 = vmatprep.subr.mxu0 0.0
  %2280 = vmatpush1.msra.mxu0 0.0
  %2281 = vmatprep.subr.mxu0 0.0
  %2282 = vmatpush1.msra.mxu0 0.0
  %2283 = vmatprep.subr.mxu0 0.0
  %2284 = vmatpush1.msra.mxu0 0.0
  %2285 = vmatprep.subr.mxu0 0.0
  %2286 = vmatpush1.msra.mxu0 0.0
  %2287 = vmatprep.subr.mxu0 0.0
  %2288 = vmatpush1.msra.mxu0 0.0
  %2289 = vmatprep.subr.mxu0 0.0
  %2290 = vmatpush1.msra.mxu0 0.0
  %2291 = vmatprep.subr.mxu0 0.0
  %2292 = vmatpush1.msra.mxu0 0.0
  %2293 = vmatprep.subr.mxu0 0.0
  %2294 = vmatpush1.msra.mxu0 0.0
  %2295 = vmatprep.subr.mxu0 0.0
  %2296 = vmatpush1.msra.mxu0 0.0
  %2297 = vmatprep.subr.mxu0 0.0
  %2298 = vmatpush1.msra.mxu0 0.0
  %2299 = vmatprep.mubr.f32.mxu0 0.0
  %2300 = vmatmul.mubr.f32.gmra.mrb[0].mxu0 %v2233
  %v2301 = vpop.f32.mrb[0].mxu0
  %v2302 = vadd.f32 0.0, %v2301
  %v2303 = vpop.f32.mrb[0].mxu0
  %2304 = vdwg.mxu0
  %2305 = vrot.lane.b32.xlu0 %v2050, 64
  %v2306 = vpop.permute.xlu0 %2305
  %v2309 = vsel %vm222, %v2228, 0
  %2311 = vmatprep.subr.mxu0 0.0
  %2312 = vmatpush1.msra.mxu0 %v2306
  %2313 = vmatprep.subr.mxu0 0.0
  %2314 = vmatpush1.msra.mxu0 0.0
  %2315 = vmatprep.subr.mxu0 0.0
  %2316 = vmatpush1.msra.mxu0 0.0
  %2317 = vmatprep.subr.mxu0 0.0
  %2318 = vmatpush1.msra.mxu0 0.0
  %2319 = vmatprep.subr.mxu0 0.0
  %2320 = vmatpush1.msra.mxu0 0.0
  %2321 = vmatprep.subr.mxu0 0.0
  %2322 = vmatpush1.msra.mxu0 0.0
  %2323 = vmatprep.subr.mxu0 0.0
  %2324 = vmatpush1.msra.mxu0 0.0
  %2325 = vmatprep.subr.mxu0 0.0
  %2326 = vmatpush1.msra.mxu0 0.0
  %2327 = vmatprep.subr.mxu0 0.0
  %2328 = vmatpush1.msra.mxu0 0.0
  %2329 = vmatprep.subr.mxu0 0.0
  %2330 = vmatpush1.msra.mxu0 0.0
  %2331 = vmatprep.subr.mxu0 0.0
  %2332 = vmatpush1.msra.mxu0 0.0
  %2333 = vmatprep.subr.mxu0 0.0
  %2334 = vmatpush1.msra.mxu0 0.0
  %2335 = vmatprep.subr.mxu0 0.0
  %2336 = vmatpush1.msra.mxu0 0.0
  %2337 = vmatprep.subr.mxu0 0.0
  %2338 = vmatpush1.msra.mxu0 0.0
  %2339 = vmatprep.subr.mxu0 0.0
  %2340 = vmatpush1.msra.mxu0 0.0
  %2341 = vmatprep.subr.mxu0 0.0
  %2342 = vmatpush1.msra.mxu0 0.0
  %2343 = vmatprep.subr.mxu0 0.0
  %2344 = vmatpush1.msra.mxu0 0.0
  %2345 = vmatprep.subr.mxu0 0.0
  %2346 = vmatpush1.msra.mxu0 0.0
  %2347 = vmatprep.subr.mxu0 0.0
  %2348 = vmatpush1.msra.mxu0 0.0
  %2349 = vmatprep.subr.mxu0 0.0
  %2350 = vmatpush1.msra.mxu0 0.0
  %2351 = vmatprep.subr.mxu0 0.0
  %2352 = vmatpush1.msra.mxu0 0.0
  %2353 = vmatprep.subr.mxu0 0.0
  %2354 = vmatpush1.msra.mxu0 0.0
  %2355 = vmatprep.subr.mxu0 0.0
  %2356 = vmatpush1.msra.mxu0 0.0
  %2357 = vmatprep.subr.mxu0 0.0
  %2358 = vmatpush1.msra.mxu0 0.0
  %2359 = vmatprep.subr.mxu0 0.0
  %2360 = vmatpush1.msra.mxu0 0.0
  %2361 = vmatprep.subr.mxu0 0.0
  %2362 = vmatpush1.msra.mxu0 0.0
  %2363 = vmatprep.subr.mxu0 0.0
  %2364 = vmatpush1.msra.mxu0 0.0
  %2365 = vmatprep.subr.mxu0 0.0
  %2366 = vmatpush1.msra.mxu0 0.0
  %2367 = vmatprep.subr.mxu0 0.0
  %2368 = vmatpush1.msra.mxu0 0.0
  %2369 = vmatprep.subr.mxu0 0.0
  %2370 = vmatpush1.msra.mxu0 0.0
  %2371 = vmatprep.subr.mxu0 0.0
  %2372 = vmatpush1.msra.mxu0 0.0
  %2373 = vmatprep.subr.mxu0 0.0
  %2374 = vmatpush1.msra.mxu0 0.0
  %2375 = vmatprep.mubr.f32.mxu0 0.0
  %2376 = vmatmul.mubr.f32.gmra.mrb[0].mxu0 %v2309
  %v2377 = vpop.f32.mrb[0].mxu0
  %v2378 = vadd.f32 0.0, %v2377
  %v2379 = vpop.f32.mrb[0].mxu0
  %2380 = vdwg.mxu0
  %2381 = vst.msk [vmem:[#allocation2] sm:$0xff] %vm222, %v2302
  %2382 = vst.msk [vmem:[#allocation2 + $0x8] sm:$0xff] %vm222, %v2378
  %2383 = vrot.lane.b32.xlu0 %v2045, 120
  %v2384 = vpop.permute.xlu0 %2383
  %2385 = vrot.lane.b32.xlu0 %v2045, 88
  %v2386 = vpop.permute.xlu0 %2385
  %v2387 = vsel %vm222, %v2384, 0
  %v2389 = vsel %vm222, %v2386, 0
  %2391 = vmatprep.subr.mxu0 0.0
  %2392 = vmatpush1.xpose.msra.mxu0 %v2389
  %2393 = vmatprep.subr.mxu0 0.0
  %2394 = vmatpush1.xpose.msra.mxu0 0.0
  %2395 = vmatprep.subr.mxu0 0.0
  %2396 = vmatpush1.xpose.msra.mxu0 0.0
  %2397 = vmatprep.subr.mxu0 0.0
  %2398 = vmatpush1.xpose.msra.mxu0 0.0
  %2399 = vmatprep.subr.mxu0 0.0
  %2400 = vmatpush1.xpose.msra.mxu0 0.0
  %2401 = vmatprep.subr.mxu0 0.0
  %2402 = vmatpush1.xpose.msra.mxu0 0.0
  %2403 = vmatprep.subr.mxu0 0.0
  %2404 = vmatpush1.xpose.msra.mxu0 0.0
  %2405 = vmatprep.subr.mxu0 0.0
  %2406 = vmatpush1.xpose.msra.mxu0 0.0
  %2407 = vmatprep.subr.mxu0 0.0
  %2408 = vmatpush1.xpose.msra.mxu0 0.0
  %2409 = vmatprep.subr.mxu0 0.0
  %2410 = vmatpush1.xpose.msra.mxu0 0.0
  %2411 = vmatprep.subr.mxu0 0.0
  %2412 = vmatpush1.xpose.msra.mxu0 0.0
  %2413 = vmatprep.subr.mxu0 0.0
  %2414 = vmatpush1.xpose.msra.mxu0 0.0
  %2415 = vmatprep.subr.mxu0 0.0
  %2416 = vmatpush1.xpose.msra.mxu0 0.0
  %2417 = vmatprep.subr.mxu0 0.0
  %2418 = vmatpush1.xpose.msra.mxu0 0.0
  %2419 = vmatprep.subr.mxu0 0.0
  %2420 = vmatpush1.xpose.msra.mxu0 0.0
  %2421 = vmatprep.subr.mxu0 0.0
  %2422 = vmatpush1.xpose.msra.mxu0 0.0
  %2423 = vmatprep.subr.mxu0 0.0
  %2424 = vmatpush1.xpose.msra.mxu0 0.0
  %2425 = vmatprep.subr.mxu0 0.0
  %2426 = vmatpush1.xpose.msra.mxu0 0.0
  %2427 = vmatprep.subr.mxu0 0.0
  %2428 = vmatpush1.xpose.msra.mxu0 0.0
  %2429 = vmatprep.subr.mxu0 0.0
  %2430 = vmatpush1.xpose.msra.mxu0 0.0
  %2431 = vmatprep.subr.mxu0 0.0
  %2432 = vmatpush1.xpose.msra.mxu0 0.0
  %2433 = vmatprep.subr.mxu0 0.0
  %2434 = vmatpush1.xpose.msra.mxu0 0.0
  %2435 = vmatprep.subr.mxu0 0.0
  %2436 = vmatpush1.xpose.msra.mxu0 0.0
  %2437 = vmatprep.subr.mxu0 0.0
  %2438 = vmatpush1.xpose.msra.mxu0 0.0
  %2439 = vmatprep.subr.mxu0 0.0
  %2440 = vmatpush1.xpose.msra.mxu0 0.0
  %2441 = vmatprep.subr.mxu0 0.0
  %2442 = vmatpush1.xpose.msra.mxu0 0.0
  %2443 = vmatprep.subr.mxu0 0.0
  %2444 = vmatpush1.xpose.msra.mxu0 0.0
  %2445 = vmatprep.subr.mxu0 0.0
  %2446 = vmatpush1.xpose.msra.mxu0 0.0
  %2447 = vmatprep.subr.mxu0 0.0
  %2448 = vmatpush1.xpose.msra.mxu0 0.0
  %2449 = vmatprep.subr.mxu0 0.0
  %2450 = vmatpush1.xpose.msra.mxu0 0.0
  %2451 = vmatprep.subr.mxu0 0.0
  %2452 = vmatpush1.xpose.msra.mxu0 0.0
  %2453 = vmatprep.subr.mxu0 0.0
  %2454 = vmatpush1.xpose.msra.mxu0 0.0
  %2455 = vmatprep.mubr.f32.mxu0 0.0
  %2456 = vmatmul.mubr.f32.gmra.mrb[0].mxu0 %v2387
  %v2457 = vpop.f32.mrb[0].mxu0
  %v2458 = vadd.f32 %v74, %v2457
  %v2459 = vpop.f32.mrb[0].mxu0
  %2460 = vdwg.mxu0
  %2461 = vrot.lane.b32.xlu0 %v2050, 120
  %v2462 = vpop.permute.xlu0 %2461
  %2463 = vrot.lane.b32.xlu0 %v2050, 88
  %v2464 = vpop.permute.xlu0 %2463
  %v2465 = vsel %vm222, %v2462, 0
  %v2467 = vsel %vm222, %v2464, 0
  %2469 = vmatprep.subr.mxu0 0.0
  %2470 = vmatpush1.xpose.msra.mxu0 %v2467
  %2471 = vmatprep.subr.mxu0 0.0
  %2472 = vmatpush1.xpose.msra.mxu0 0.0
  %2473 = vmatprep.subr.mxu0 0.0
  %2474 = vmatpush1.xpose.msra.mxu0 0.0
  %2475 = vmatprep.subr.mxu0 0.0
  %2476 = vmatpush1.xpose.msra.mxu0 0.0
  %2477 = vmatprep.subr.mxu0 0.0
  %2478 = vmatpush1.xpose.msra.mxu0 0.0
  %2479 = vmatprep.subr.mxu0 0.0
  %2480 = vmatpush1.xpose.msra.mxu0 0.0
  %2481 = vmatprep.subr.mxu0 0.0
  %2482 = vmatpush1.xpose.msra.mxu0 0.0
  %2483 = vmatprep.subr.mxu0 0.0
  %2484 = vmatpush1.xpose.msra.mxu0 0.0
  %2485 = vmatprep.subr.mxu0 0.0
  %2486 = vmatpush1.xpose.msra.mxu0 0.0
  %2487 = vmatprep.subr.mxu0 0.0
  %2488 = vmatpush1.xpose.msra.mxu0 0.0
  %2489 = vmatprep.subr.mxu0 0.0
  %2490 = vmatpush1.xpose.msra.mxu0 0.0
  %2491 = vmatprep.subr.mxu0 0.0
  %2492 = vmatpush1.xpose.msra.mxu0 0.0
  %2493 = vmatprep.subr.mxu0 0.0
  %2494 = vmatpush1.xpose.msra.mxu0 0.0
  %2495 = vmatprep.subr.mxu0 0.0
  %2496 = vmatpush1.xpose.msra.mxu0 0.0
  %2497 = vmatprep.subr.mxu0 0.0
  %2498 = vmatpush1.xpose.msra.mxu0 0.0
  %2499 = vmatprep.subr.mxu0 0.0
  %2500 = vmatpush1.xpose.msra.mxu0 0.0
  %2501 = vmatprep.subr.mxu0 0.0
  %2502 = vmatpush1.xpose.msra.mxu0 0.0
  %2503 = vmatprep.subr.mxu0 0.0
  %2504 = vmatpush1.xpose.msra.mxu0 0.0
  %2505 = vmatprep.subr.mxu0 0.0
  %2506 = vmatpush1.xpose.msra.mxu0 0.0
  %2507 = vmatprep.subr.mxu0 0.0
  %2508 = vmatpush1.xpose.msra.mxu0 0.0
  %2509 = vmatprep.subr.mxu0 0.0
  %2510 = vmatpush1.xpose.msra.mxu0 0.0
  %2511 = vmatprep.subr.mxu0 0.0
  %2512 = vmatpush1.xpose.msra.mxu0 0.0
  %2513 = vmatprep.subr.mxu0 0.0
  %2514 = vmatpush1.xpose.msra.mxu0 0.0
  %2515 = vmatprep.subr.mxu0 0.0
  %2516 = vmatpush1.xpose.msra.mxu0 0.0
  %2517 = vmatprep.subr.mxu0 0.0
  %2518 = vmatpush1.xpose.msra.mxu0 0.0
  %2519 = vmatprep.subr.mxu0 0.0
  %2520 = vmatpush1.xpose.msra.mxu0 0.0
  %2521 = vmatprep.subr.mxu0 0.0
  %2522 = vmatpush1.xpose.msra.mxu0 0.0
  %2523 = vmatprep.subr.mxu0 0.0
  %2524 = vmatpush1.xpose.msra.mxu0 0.0
  %2525 = vmatprep.subr.mxu0 0.0
  %2526 = vmatpush1.xpose.msra.mxu0 0.0
  %2527 = vmatprep.subr.mxu0 0.0
  %2528 = vmatpush1.xpose.msra.mxu0 0.0
  %2529 = vmatprep.subr.mxu0 0.0
  %2530 = vmatpush1.xpose.msra.mxu0 0.0
  %2531 = vmatprep.subr.mxu0 0.0
  %2532 = vmatpush1.xpose.msra.mxu0 0.0
  %2533 = vmatprep.mubr.f32.mxu0 0.0
  %2534 = vmatmul.mubr.f32.gmra.mrb[0].mxu0 %v2465
  %v2535 = vpop.f32.mrb[0].mxu0
  %v2536 = vadd.f32 %v78, %v2535
  %v2537 = vpop.f32.mrb[0].mxu0
  %2538 = vdwg.mxu0
  %v2539 = vsel %vm222, %v2458, -inf
  %2540 = vmax.xlane.f32.xlu0 %v2539
  %v2541 = vpop.xlane.xlu0 %2540
  %v2542 = vsel %vm222, %v2536, -inf
  %2543 = vmax.xlane.f32.xlu0 %v2542
  %v2544 = vpop.xlane.xlu0 %2543
  %v2545 = vsub.f32 %v2458, %v2541
  %v2546 = vsub.f32 %v2536, %v2544
  %v2547 = vmul.f32 %v2545, 1.442695
  %v2548 = vpow.pop %v2547
  %v2549 = vmul.f32 %v2546, 1.442695
  %v2550 = vpow.pop %v2549
  %v2551 = vsel %vm222, %v2548, 0.0
  %2552 = vadd.xlane.f32.xlu0 %v2551
  %v2553 = vpop.xlane.xlu0 %2552
  %v2554 = vsel %vm222, %v2550, 0.0
  %2555 = vadd.xlane.f32.xlu0 %v2554
  %v2556 = vpop.xlane.xlu0 %2555
  %v2557 = vrcp.pop %v2553
  %v2558 = vmul.f32 %v2548, %v2557
  %v2559 = vrcp.pop %v2556
  %v2560 = vmul.f32 %v2550, %v2559
  %2561 = vrot.lane.b32.xlu0 %v2045, 56
  %v2562 = vpop.permute.xlu0 %2561
  %v2565 = vsel %vm222, %v2558, 0
  %2567 = vmatprep.subr.mxu0 0.0
  %2568 = vmatpush1.msra.mxu0 %v2562
  %2569 = vmatprep.subr.mxu0 0.0
  %2570 = vmatpush1.msra.mxu0 0.0
  %2571 = vmatprep.subr.mxu0 0.0
  %2572 = vmatpush1.msra.mxu0 0.0
  %2573 = vmatprep.subr.mxu0 0.0
  %2574 = vmatpush1.msra.mxu0 0.0
  %2575 = vmatprep.subr.mxu0 0.0
  %2576 = vmatpush1.msra.mxu0 0.0
  %2577 = vmatprep.subr.mxu0 0.0
  %2578 = vmatpush1.msra.mxu0 0.0
  %2579 = vmatprep.subr.mxu0 0.0
  %2580 = vmatpush1.msra.mxu0 0.0
  %2581 = vmatprep.subr.mxu0 0.0
  %2582 = vmatpush1.msra.mxu0 0.0
  %2583 = vmatprep.subr.mxu0 0.0
  %2584 = vmatpush1.msra.mxu0 0.0
  %2585 = vmatprep.subr.mxu0 0.0
  %2586 = vmatpush1.msra.mxu0 0.0
  %2587 = vmatprep.subr.mxu0 0.0
  %2588 = vmatpush1.msra.mxu0 0.0
  %2589 = vmatprep.subr.mxu0 0.0
  %2590 = vmatpush1.msra.mxu0 0.0
  %2591 = vmatprep.subr.mxu0 0.0
  %2592 = vmatpush1.msra.mxu0 0.0
  %2593 = vmatprep.subr.mxu0 0.0
  %2594 = vmatpush1.msra.mxu0 0.0
  %2595 = vmatprep.subr.mxu0 0.0
  %2596 = vmatpush1.msra.mxu0 0.0
  %2597 = vmatprep.subr.mxu0 0.0
  %2598 = vmatpush1.msra.mxu0 0.0
  %2599 = vmatprep.subr.mxu0 0.0
  %2600 = vmatpush1.msra.mxu0 0.0
  %2601 = vmatprep.subr.mxu0 0.0
  %2602 = vmatpush1.msra.mxu0 0.0
  %2603 = vmatprep.subr.mxu0 0.0
  %2604 = vmatpush1.msra.mxu0 0.0
  %2605 = vmatprep.subr.mxu0 0.0
  %2606 = vmatpush1.msra.mxu0 0.0
  %2607 = vmatprep.subr.mxu0 0.0
  %2608 = vmatpush1.msra.mxu0 0.0
  %2609 = vmatprep.subr.mxu0 0.0
  %2610 = vmatpush1.msra.mxu0 0.0
  %2611 = vmatprep.subr.mxu0 0.0
  %2612 = vmatpush1.msra.mxu0 0.0
  %2613 = vmatprep.subr.mxu0 0.0
  %2614 = vmatpush1.msra.mxu0 0.0
  %2615 = vmatprep.subr.mxu0 0.0
  %2616 = vmatpush1.msra.mxu0 0.0
  %2617 = vmatprep.subr.mxu0 0.0
  %2618 = vmatpush1.msra.mxu0 0.0
  %2619 = vmatprep.subr.mxu0 0.0
  %2620 = vmatpush1.msra.mxu0 0.0
  %2621 = vmatprep.subr.mxu0 0.0
  %2622 = vmatpush1.msra.mxu0 0.0
  %2623 = vmatprep.subr.mxu0 0.0
  %2624 = vmatpush1.msra.mxu0 0.0
  %2625 = vmatprep.subr.mxu0 0.0
  %2626 = vmatpush1.msra.mxu0 0.0
  %2627 = vmatprep.subr.mxu0 0.0
  %2628 = vmatpush1.msra.mxu0 0.0
  %2629 = vmatprep.subr.mxu0 0.0
  %2630 = vmatpush1.msra.mxu0 0.0
  %2631 = vmatprep.mubr.f32.mxu0 0.0
  %2632 = vmatmul.mubr.f32.gmra.mrb[0].mxu0 %v2565
  %v2633 = vpop.f32.mrb[0].mxu0
  %v2634 = vadd.f32 0.0, %v2633
  %v2635 = vpop.f32.mrb[0].mxu0
  %2636 = vdwg.mxu0
  %2637 = vrot.lane.b32.xlu0 %v2050, 56
  %v2638 = vpop.permute.xlu0 %2637
  %v2641 = vsel %vm222, %v2560, 0
  %2643 = vmatprep.subr.mxu0 0.0
  %2644 = vmatpush1.msra.mxu0 %v2638
  %2645 = vmatprep.subr.mxu0 0.0
  %2646 = vmatpush1.msra.mxu0 0.0
  %2647 = vmatprep.subr.mxu0 0.0
  %2648 = vmatpush1.msra.mxu0 0.0
  %2649 = vmatprep.subr.mxu0 0.0
  %2650 = vmatpush1.msra.mxu0 0.0
  %2651 = vmatprep.subr.mxu0 0.0
  %2652 = vmatpush1.msra.mxu0 0.0
  %2653 = vmatprep.subr.mxu0 0.0
  %2654 = vmatpush1.msra.mxu0 0.0
  %2655 = vmatprep.subr.mxu0 0.0
  %2656 = vmatpush1.msra.mxu0 0.0
  %2657 = vmatprep.subr.mxu0 0.0
  %2658 = vmatpush1.msra.mxu0 0.0
  %2659 = vmatprep.subr.mxu0 0.0
  %2660 = vmatpush1.msra.mxu0 0.0
  %2661 = vmatprep.subr.mxu0 0.0
  %2662 = vmatpush1.msra.mxu0 0.0
  %2663 = vmatprep.subr.mxu0 0.0
  %2664 = vmatpush1.msra.mxu0 0.0
  %2665 = vmatprep.subr.mxu0 0.0
  %2666 = vmatpush1.msra.mxu0 0.0
  %2667 = vmatprep.subr.mxu0 0.0
  %2668 = vmatpush1.msra.mxu0 0.0
  %2669 = vmatprep.subr.mxu0 0.0
  %2670 = vmatpush1.msra.mxu0 0.0
  %2671 = vmatprep.subr.mxu0 0.0
  %2672 = vmatpush1.msra.mxu0 0.0
  %2673 = vmatprep.subr.mxu0 0.0
  %2674 = vmatpush1.msra.mxu0 0.0
  %2675 = vmatprep.subr.mxu0 0.0
  %2676 = vmatpush1.msra.mxu0 0.0
  %2677 = vmatprep.subr.mxu0 0.0
  %2678 = vmatpush1.msra.mxu0 0.0
  %2679 = vmatprep.subr.mxu0 0.0
  %2680 = vmatpush1.msra.mxu0 0.0
  %2681 = vmatprep.subr.mxu0 0.0
  %2682 = vmatpush1.msra.mxu0 0.0
  %2683 = vmatprep.subr.mxu0 0.0
  %2684 = vmatpush1.msra.mxu0 0.0
  %2685 = vmatprep.subr.mxu0 0.0
  %2686 = vmatpush1.msra.mxu0 0.0
  %2687 = vmatprep.subr.mxu0 0.0
  %2688 = vmatpush1.msra.mxu0 0.0
  %2689 = vmatprep.subr.mxu0 0.0
  %2690 = vmatpush1.msra.mxu0 0.0
  %2691 = vmatprep.subr.mxu0 0.0
  %2692 = vmatpush1.msra.mxu0 0.0
  %2693 = vmatprep.subr.mxu0 0.0
  %2694 = vmatpush1.msra.mxu0 0.0
  %2695 = vmatprep.subr.mxu0 0.0
  %2696 = vmatpush1.msra.mxu0 0.0
  %2697 = vmatprep.subr.mxu0 0.0
  %2698 = vmatpush1.msra.mxu0 0.0
  %2699 = vmatprep.subr.mxu0 0.0
  %2700 = vmatpush1.msra.mxu0 0.0
  %2701 = vmatprep.subr.mxu0 0.0
  %2702 = vmatpush1.msra.mxu0 0.0
  %2703 = vmatprep.subr.mxu0 0.0
  %2704 = vmatpush1.msra.mxu0 0.0
  %2705 = vmatprep.subr.mxu0 0.0
  %2706 = vmatpush1.msra.mxu0 0.0
  %2707 = vmatprep.mubr.f32.mxu0 0.0
  %2708 = vmatmul.mubr.f32.gmra.mrb[0].mxu0 %v2641
  %v2709 = vpop.f32.mrb[0].mxu0
  %v2710 = vadd.f32 0.0, %v2709
  %v2711 = vpop.f32.mrb[0].mxu0
  %2712 = vdwg.mxu0
  %2715 = vrot.lane.b32.xlu0 %v2634, 8
  %v2716 = vpop.permute.xlu0 %2715
  %2717 = vrot.lane.b32.xlu0 %v2710, 8
  %v2718 = vpop.permute.xlu0 %2717
  %2721 = vst.msk [vmem:[#allocation2] sm:$0xff] %vm888, %v2716
  %2722 = vst.msk [vmem:[#allocation2 + $0x8] sm:$0xff] %vm888, %v2718
  %2723 = vrot.lane.b32.xlu0 %v2045, 112
  %v2724 = vpop.permute.xlu0 %2723
  %2725 = vrot.lane.b32.xlu0 %v2045, 80
  %v2726 = vpop.permute.xlu0 %2725
  %v2727 = vsel %vm222, %v2724, 0
  %v2729 = vsel %vm222, %v2726, 0
  %2731 = vmatprep.subr.mxu0 0.0
  %2732 = vmatpush1.xpose.msra.mxu0 %v2729
  %2733 = vmatprep.subr.mxu0 0.0
  %2734 = vmatpush1.xpose.msra.mxu0 0.0
  %2735 = vmatprep.subr.mxu0 0.0
  %2736 = vmatpush1.xpose.msra.mxu0 0.0
  %2737 = vmatprep.subr.mxu0 0.0
  %2738 = vmatpush1.xpose.msra.mxu0 0.0
  %2739 = vmatprep.subr.mxu0 0.0
  %2740 = vmatpush1.xpose.msra.mxu0 0.0
  %2741 = vmatprep.subr.mxu0 0.0
  %2742 = vmatpush1.xpose.msra.mxu0 0.0
  %2743 = vmatprep.subr.mxu0 0.0
  %2744 = vmatpush1.xpose.msra.mxu0 0.0
  %2745 = vmatprep.subr.mxu0 0.0
  %2746 = vmatpush1.xpose.msra.mxu0 0.0
  %2747 = vmatprep.subr.mxu0 0.0
  %2748 = vmatpush1.xpose.msra.mxu0 0.0
  %2749 = vmatprep.subr.mxu0 0.0
  %2750 = vmatpush1.xpose.msra.mxu0 0.0
  %2751 = vmatprep.subr.mxu0 0.0
  %2752 = vmatpush1.xpose.msra.mxu0 0.0
  %2753 = vmatprep.subr.mxu0 0.0
  %2754 = vmatpush1.xpose.msra.mxu0 0.0
  %2755 = vmatprep.subr.mxu0 0.0
  %2756 = vmatpush1.xpose.msra.mxu0 0.0
  %2757 = vmatprep.subr.mxu0 0.0
  %2758 = vmatpush1.xpose.msra.mxu0 0.0
  %2759 = vmatprep.subr.mxu0 0.0
  %2760 = vmatpush1.xpose.msra.mxu0 0.0
  %2761 = vmatprep.subr.mxu0 0.0
  %2762 = vmatpush1.xpose.msra.mxu0 0.0
  %2763 = vmatprep.subr.mxu0 0.0
  %2764 = vmatpush1.xpose.msra.mxu0 0.0
  %2765 = vmatprep.subr.mxu0 0.0
  %2766 = vmatpush1.xpose.msra.mxu0 0.0
  %2767 = vmatprep.subr.mxu0 0.0
  %2768 = vmatpush1.xpose.msra.mxu0 0.0
  %2769 = vmatprep.subr.mxu0 0.0
  %2770 = vmatpush1.xpose.msra.mxu0 0.0
  %2771 = vmatprep.subr.mxu0 0.0
  %2772 = vmatpush1.xpose.msra.mxu0 0.0
  %2773 = vmatprep.subr.mxu0 0.0
  %2774 = vmatpush1.xpose.msra.mxu0 0.0
  %2775 = vmatprep.subr.mxu0 0.0
  %2776 = vmatpush1.xpose.msra.mxu0 0.0
  %2777 = vmatprep.subr.mxu0 0.0
  %2778 = vmatpush1.xpose.msra.mxu0 0.0
  %2779 = vmatprep.subr.mxu0 0.0
  %2780 = vmatpush1.xpose.msra.mxu0 0.0
  %2781 = vmatprep.subr.mxu0 0.0
  %2782 = vmatpush1.xpose.msra.mxu0 0.0
  %2783 = vmatprep.subr.mxu0 0.0
  %2784 = vmatpush1.xpose.msra.mxu0 0.0
  %2785 = vmatprep.subr.mxu0 0.0
  %2786 = vmatpush1.xpose.msra.mxu0 0.0
  %2787 = vmatprep.subr.mxu0 0.0
  %2788 = vmatpush1.xpose.msra.mxu0 0.0
  %2789 = vmatprep.subr.mxu0 0.0
  %2790 = vmatpush1.xpose.msra.mxu0 0.0
  %2791 = vmatprep.subr.mxu0 0.0
  %2792 = vmatpush1.xpose.msra.mxu0 0.0
  %2793 = vmatprep.subr.mxu0 0.0
  %2794 = vmatpush1.xpose.msra.mxu0 0.0
  %2795 = vmatprep.mubr.f32.mxu0 0.0
  %2796 = vmatmul.mubr.f32.gmra.mrb[0].mxu0 %v2727
  %v2797 = vpop.f32.mrb[0].mxu0
  %v2798 = vadd.f32 %v74, %v2797
  %v2799 = vpop.f32.mrb[0].mxu0
  %2800 = vdwg.mxu0
  %2801 = vrot.lane.b32.xlu0 %v2050, 112
  %v2802 = vpop.permute.xlu0 %2801
  %2803 = vrot.lane.b32.xlu0 %v2050, 80
  %v2804 = vpop.permute.xlu0 %2803
  %v2805 = vsel %vm222, %v2802, 0
  %v2807 = vsel %vm222, %v2804, 0
  %2809 = vmatprep.subr.mxu0 0.0
  %2810 = vmatpush1.xpose.msra.mxu0 %v2807
  %2811 = vmatprep.subr.mxu0 0.0
  %2812 = vmatpush1.xpose.msra.mxu0 0.0
  %2813 = vmatprep.subr.mxu0 0.0
  %2814 = vmatpush1.xpose.msra.mxu0 0.0
  %2815 = vmatprep.subr.mxu0 0.0
  %2816 = vmatpush1.xpose.msra.mxu0 0.0
  %2817 = vmatprep.subr.mxu0 0.0
  %2818 = vmatpush1.xpose.msra.mxu0 0.0
  %2819 = vmatprep.subr.mxu0 0.0
  %2820 = vmatpush1.xpose.msra.mxu0 0.0
  %2821 = vmatprep.subr.mxu0 0.0
  %2822 = vmatpush1.xpose.msra.mxu0 0.0
  %2823 = vmatprep.subr.mxu0 0.0
  %2824 = vmatpush1.xpose.msra.mxu0 0.0
  %2825 = vmatprep.subr.mxu0 0.0
  %2826 = vmatpush1.xpose.msra.mxu0 0.0
  %2827 = vmatprep.subr.mxu0 0.0
  %2828 = vmatpush1.xpose.msra.mxu0 0.0
  %2829 = vmatprep.subr.mxu0 0.0
  %2830 = vmatpush1.xpose.msra.mxu0 0.0
  %2831 = vmatprep.subr.mxu0 0.0
  %2832 = vmatpush1.xpose.msra.mxu0 0.0
  %2833 = vmatprep.subr.mxu0 0.0
  %2834 = vmatpush1.xpose.msra.mxu0 0.0
  %2835 = vmatprep.subr.mxu0 0.0
  %2836 = vmatpush1.xpose.msra.mxu0 0.0
  %2837 = vmatprep.subr.mxu0 0.0
  %2838 = vmatpush1.xpose.msra.mxu0 0.0
  %2839 = vmatprep.subr.mxu0 0.0
  %2840 = vmatpush1.xpose.msra.mxu0 0.0
  %2841 = vmatprep.subr.mxu0 0.0
  %2842 = vmatpush1.xpose.msra.mxu0 0.0
  %2843 = vmatprep.subr.mxu0 0.0
  %2844 = vmatpush1.xpose.msra.mxu0 0.0
  %2845 = vmatprep.subr.mxu0 0.0
  %2846 = vmatpush1.xpose.msra.mxu0 0.0
  %2847 = vmatprep.subr.mxu0 0.0
  %2848 = vmatpush1.xpose.msra.mxu0 0.0
  %2849 = vmatprep.subr.mxu0 0.0
  %2850 = vmatpush1.xpose.msra.mxu0 0.0
  %2851 = vmatprep.subr.mxu0 0.0
  %2852 = vmatpush1.xpose.msra.mxu0 0.0
  %2853 = vmatprep.subr.mxu0 0.0
  %2854 = vmatpush1.xpose.msra.mxu0 0.0
  %2855 = vmatprep.subr.mxu0 0.0
  %2856 = vmatpush1.xpose.msra.mxu0 0.0
  %2857 = vmatprep.subr.mxu0 0.0
  %2858 = vmatpush1.xpose.msra.mxu0 0.0
  %2859 = vmatprep.subr.mxu0 0.0
  %2860 = vmatpush1.xpose.msra.mxu0 0.0
  %2861 = vmatprep.subr.mxu0 0.0
  %2862 = vmatpush1.xpose.msra.mxu0 0.0
  %2863 = vmatprep.subr.mxu0 0.0
  %2864 = vmatpush1.xpose.msra.mxu0 0.0
  %2865 = vmatprep.subr.mxu0 0.0
  %2866 = vmatpush1.xpose.msra.mxu0 0.0
  %2867 = vmatprep.subr.mxu0 0.0
  %2868 = vmatpush1.xpose.msra.mxu0 0.0
  %2869 = vmatprep.subr.mxu0 0.0
  %2870 = vmatpush1.xpose.msra.mxu0 0.0
  %2871 = vmatprep.subr.mxu0 0.0
  %2872 = vmatpush1.xpose.msra.mxu0 0.0
  %2873 = vmatprep.mubr.f32.mxu0 0.0
  %2874 = vmatmul.mubr.f32.gmra.mrb[0].mxu0 %v2805
  %v2875 = vpop.f32.mrb[0].mxu0
  %v2876 = vadd.f32 %v78, %v2875
  %v2877 = vpop.f32.mrb[0].mxu0
  %2878 = vdwg.mxu0
  %v2879 = vsel %vm222, %v2798, -inf
  %2880 = vmax.xlane.f32.xlu0 %v2879
  %v2881 = vpop.xlane.xlu0 %2880
  %v2882 = vsel %vm222, %v2876, -inf
  %2883 = vmax.xlane.f32.xlu0 %v2882
  %v2884 = vpop.xlane.xlu0 %2883
  %v2885 = vsub.f32 %v2798, %v2881
  %v2886 = vsub.f32 %v2876, %v2884
  %v2887 = vmul.f32 %v2885, 1.442695
  %v2888 = vpow.pop %v2887
  %v2889 = vmul.f32 %v2886, 1.442695
  %v2890 = vpow.pop %v2889
  %v2891 = vsel %vm222, %v2888, 0.0
  %2892 = vadd.xlane.f32.xlu0 %v2891
  %v2893 = vpop.xlane.xlu0 %2892
  %v2894 = vsel %vm222, %v2890, 0.0
  %2895 = vadd.xlane.f32.xlu0 %v2894
  %v2896 = vpop.xlane.xlu0 %2895
  %v2897 = vrcp.pop %v2893
  %v2898 = vmul.f32 %v2888, %v2897
  %v2899 = vrcp.pop %v2896
  %v2900 = vmul.f32 %v2890, %v2899
  %2901 = vrot.lane.b32.xlu0 %v2045, 48
  %v2902 = vpop.permute.xlu0 %2901
  %v2905 = vsel %vm222, %v2898, 0
  %2907 = vmatprep.subr.mxu0 0.0
  %2908 = vmatpush1.msra.mxu0 %v2902
  %2909 = vmatprep.subr.mxu0 0.0
  %2910 = vmatpush1.msra.mxu0 0.0
  %2911 = vmatprep.subr.mxu0 0.0
  %2912 = vmatpush1.msra.mxu0 0.0
  %2913 = vmatprep.subr.mxu0 0.0
  %2914 = vmatpush1.msra.mxu0 0.0
  %2915 = vmatprep.subr.mxu0 0.0
  %2916 = vmatpush1.msra.mxu0 0.0
  %2917 = vmatprep.subr.mxu0 0.0
  %2918 = vmatpush1.msra.mxu0 0.0
  %2919 = vmatprep.subr.mxu0 0.0
  %2920 = vmatpush1.msra.mxu0 0.0
  %2921 = vmatprep.subr.mxu0 0.0
  %2922 = vmatpush1.msra.mxu0 0.0
  %2923 = vmatprep.subr.mxu0 0.0
  %2924 = vmatpush1.msra.mxu0 0.0
  %2925 = vmatprep.subr.mxu0 0.0
  %2926 = vmatpush1.msra.mxu0 0.0
  %2927 = vmatprep.subr.mxu0 0.0
  %2928 = vmatpush1.msra.mxu0 0.0
  %2929 = vmatprep.subr.mxu0 0.0
  %2930 = vmatpush1.msra.mxu0 0.0
  %2931 = vmatprep.subr.mxu0 0.0
  %2932 = vmatpush1.msra.mxu0 0.0
  %2933 = vmatprep.subr.mxu0 0.0
  %2934 = vmatpush1.msra.mxu0 0.0
  %2935 = vmatprep.subr.mxu0 0.0
  %2936 = vmatpush1.msra.mxu0 0.0
  %2937 = vmatprep.subr.mxu0 0.0
  %2938 = vmatpush1.msra.mxu0 0.0
  %2939 = vmatprep.subr.mxu0 0.0
  %2940 = vmatpush1.msra.mxu0 0.0
  %2941 = vmatprep.subr.mxu0 0.0
  %2942 = vmatpush1.msra.mxu0 0.0
  %2943 = vmatprep.subr.mxu0 0.0
  %2944 = vmatpush1.msra.mxu0 0.0
  %2945 = vmatprep.subr.mxu0 0.0
  %2946 = vmatpush1.msra.mxu0 0.0
  %2947 = vmatprep.subr.mxu0 0.0
  %2948 = vmatpush1.msra.mxu0 0.0
  %2949 = vmatprep.subr.mxu0 0.0
  %2950 = vmatpush1.msra.mxu0 0.0
  %2951 = vmatprep.subr.mxu0 0.0
  %2952 = vmatpush1.msra.mxu0 0.0
  %2953 = vmatprep.subr.mxu0 0.0
  %2954 = vmatpush1.msra.mxu0 0.0
  %2955 = vmatprep.subr.mxu0 0.0
  %2956 = vmatpush1.msra.mxu0 0.0
  %2957 = vmatprep.subr.mxu0 0.0
  %2958 = vmatpush1.msra.mxu0 0.0
  %2959 = vmatprep.subr.mxu0 0.0
  %2960 = vmatpush1.msra.mxu0 0.0
  %2961 = vmatprep.subr.mxu0 0.0
  %2962 = vmatpush1.msra.mxu0 0.0
  %2963 = vmatprep.subr.mxu0 0.0
  %2964 = vmatpush1.msra.mxu0 0.0
  %2965 = vmatprep.subr.mxu0 0.0
  %2966 = vmatpush1.msra.mxu0 0.0
  %2967 = vmatprep.subr.mxu0 0.0
  %2968 = vmatpush1.msra.mxu0 0.0
  %2969 = vmatprep.subr.mxu0 0.0
  %2970 = vmatpush1.msra.mxu0 0.0
  %2971 = vmatprep.mubr.f32.mxu0 0.0
  %2972 = vmatmul.mubr.f32.gmra.mrb[0].mxu0 %v2905
  %v2973 = vpop.f32.mrb[0].mxu0
  %v2974 = vadd.f32 0.0, %v2973
  %v2975 = vpop.f32.mrb[0].mxu0
  %2976 = vdwg.mxu0
  %2977 = vrot.lane.b32.xlu0 %v2050, 48
  %v2978 = vpop.permute.xlu0 %2977
  %v2981 = vsel %vm222, %v2900, 0
  %2983 = vmatprep.subr.mxu0 0.0
  %2984 = vmatpush1.msra.mxu0 %v2978
  %2985 = vmatprep.subr.mxu0 0.0
  %2986 = vmatpush1.msra.mxu0 0.0
  %2987 = vmatprep.subr.mxu0 0.0
  %2988 = vmatpush1.msra.mxu0 0.0
  %2989 = vmatprep.subr.mxu0 0.0
  %2990 = vmatpush1.msra.mxu0 0.0
  %2991 = vmatprep.subr.mxu0 0.0
  %2992 = vmatpush1.msra.mxu0 0.0
  %2993 = vmatprep.subr.mxu0 0.0
  %2994 = vmatpush1.msra.mxu0 0.0
  %2995 = vmatprep.subr.mxu0 0.0
  %2996 = vmatpush1.msra.mxu0 0.0
  %2997 = vmatprep.subr.mxu0 0.0
  %2998 = vmatpush1.msra.mxu0 0.0
  %2999 = vmatprep.subr.mxu0 0.0
  %3000 = vmatpush1.msra.mxu0 0.0
  %3001 = vmatprep.subr.mxu0 0.0
  %3002 = vmatpush1.msra.mxu0 0.0
  %3003 = vmatprep.subr.mxu0 0.0
  %3004 = vmatpush1.msra.mxu0 0.0
  %3005 = vmatprep.subr.mxu0 0.0
  %3006 = vmatpush1.msra.mxu0 0.0
  %3007 = vmatprep.subr.mxu0 0.0
  %3008 = vmatpush1.msra.mxu0 0.0
  %3009 = vmatprep.subr.mxu0 0.0
  %3010 = vmatpush1.msra.mxu0 0.0
  %3011 = vmatprep.subr.mxu0 0.0
  %3012 = vmatpush1.msra.mxu0 0.0
  %3013 = vmatprep.subr.mxu0 0.0
  %3014 = vmatpush1.msra.mxu0 0.0
  %3015 = vmatprep.subr.mxu0 0.0
  %3016 = vmatpush1.msra.mxu0 0.0
  %3017 = vmatprep.subr.mxu0 0.0
  %3018 = vmatpush1.msra.mxu0 0.0
  %3019 = vmatprep.subr.mxu0 0.0
  %3020 = vmatpush1.msra.mxu0 0.0
  %3021 = vmatprep.subr.mxu0 0.0
  %3022 = vmatpush1.msra.mxu0 0.0
  %3023 = vmatprep.subr.mxu0 0.0
  %3024 = vmatpush1.msra.mxu0 0.0
  %3025 = vmatprep.subr.mxu0 0.0
  %3026 = vmatpush1.msra.mxu0 0.0
  %3027 = vmatprep.subr.mxu0 0.0
  %3028 = vmatpush1.msra.mxu0 0.0
  %3029 = vmatprep.subr.mxu0 0.0
  %3030 = vmatpush1.msra.mxu0 0.0
  %3031 = vmatprep.subr.mxu0 0.0
  %3032 = vmatpush1.msra.mxu0 0.0
  %3033 = vmatprep.subr.mxu0 0.0
  %3034 = vmatpush1.msra.mxu0 0.0
  %3035 = vmatprep.subr.mxu0 0.0
  %3036 = vmatpush1.msra.mxu0 0.0
  %3037 = vmatprep.subr.mxu0 0.0
  %3038 = vmatpush1.msra.mxu0 0.0
  %3039 = vmatprep.subr.mxu0 0.0
  %3040 = vmatpush1.msra.mxu0 0.0
  %3041 = vmatprep.subr.mxu0 0.0
  %3042 = vmatpush1.msra.mxu0 0.0
  %3043 = vmatprep.subr.mxu0 0.0
  %3044 = vmatpush1.msra.mxu0 0.0
  %3045 = vmatprep.subr.mxu0 0.0
  %3046 = vmatpush1.msra.mxu0 0.0
  %3047 = vmatprep.mubr.f32.mxu0 0.0
  %3048 = vmatmul.mubr.f32.gmra.mrb[0].mxu0 %v2981
  %v3049 = vpop.f32.mrb[0].mxu0
  %v3050 = vadd.f32 0.0, %v3049
  %v3051 = vpop.f32.mrb[0].mxu0
  %3052 = vdwg.mxu0
  %3055 = vrot.lane.b32.xlu0 %v2974, 16
  %v3056 = vpop.permute.xlu0 %3055
  %3057 = vrot.lane.b32.xlu0 %v3050, 16
  %v3058 = vpop.permute.xlu0 %3057
  %3061 = vst.msk [vmem:[#allocation2] sm:$0xff] %vm1229, %v3056
  %3062 = vst.msk [vmem:[#allocation2 + $0x8] sm:$0xff] %vm1229, %v3058
  %3063 = vrot.lane.b32.xlu0 %v2045, 104
  %v3064 = vpop.permute.xlu0 %3063
  %3065 = vrot.lane.b32.xlu0 %v2045, 72
  %v3066 = vpop.permute.xlu0 %3065
  %v3067 = vsel %vm222, %v3064, 0
  %v3069 = vsel %vm222, %v3066, 0
  %3071 = vmatprep.subr.mxu0 0.0
  %3072 = vmatpush1.xpose.msra.mxu0 %v3069
  %3073 = vmatprep.subr.mxu0 0.0
  %3074 = vmatpush1.xpose.msra.mxu0 0.0
  %3075 = vmatprep.subr.mxu0 0.0
  %3076 = vmatpush1.xpose.msra.mxu0 0.0
  %3077 = vmatprep.subr.mxu0 0.0
  %3078 = vmatpush1.xpose.msra.mxu0 0.0
  %3079 = vmatprep.subr.mxu0 0.0
  %3080 = vmatpush1.xpose.msra.mxu0 0.0
  %3081 = vmatprep.subr.mxu0 0.0
  %3082 = vmatpush1.xpose.msra.mxu0 0.0
  %3083 = vmatprep.subr.mxu0 0.0
  %3084 = vmatpush1.xpose.msra.mxu0 0.0
  %3085 = vmatprep.subr.mxu0 0.0
  %3086 = vmatpush1.xpose.msra.mxu0 0.0
  %3087 = vmatprep.subr.mxu0 0.0
  %3088 = vmatpush1.xpose.msra.mxu0 0.0
  %3089 = vmatprep.subr.mxu0 0.0
  %3090 = vmatpush1.xpose.msra.mxu0 0.0
  %3091 = vmatprep.subr.mxu0 0.0
  %3092 = vmatpush1.xpose.msra.mxu0 0.0
  %3093 = vmatprep.subr.mxu0 0.0
  %3094 = vmatpush1.xpose.msra.mxu0 0.0
  %3095 = vmatprep.subr.mxu0 0.0
  %3096 = vmatpush1.xpose.msra.mxu0 0.0
  %3097 = vmatprep.subr.mxu0 0.0
  %3098 = vmatpush1.xpose.msra.mxu0 0.0
  %3099 = vmatprep.subr.mxu0 0.0
  %3100 = vmatpush1.xpose.msra.mxu0 0.0
  %3101 = vmatprep.subr.mxu0 0.0
  %3102 = vmatpush1.xpose.msra.mxu0 0.0
  %3103 = vmatprep.subr.mxu0 0.0
  %3104 = vmatpush1.xpose.msra.mxu0 0.0
  %3105 = vmatprep.subr.mxu0 0.0
  %3106 = vmatpush1.xpose.msra.mxu0 0.0
  %3107 = vmatprep.subr.mxu0 0.0
  %3108 = vmatpush1.xpose.msra.mxu0 0.0
  %3109 = vmatprep.subr.mxu0 0.0
  %3110 = vmatpush1.xpose.msra.mxu0 0.0
  %3111 = vmatprep.subr.mxu0 0.0
  %3112 = vmatpush1.xpose.msra.mxu0 0.0
  %3113 = vmatprep.subr.mxu0 0.0
  %3114 = vmatpush1.xpose.msra.mxu0 0.0
  %3115 = vmatprep.subr.mxu0 0.0
  %3116 = vmatpush1.xpose.msra.mxu0 0.0
  %3117 = vmatprep.subr.mxu0 0.0
  %3118 = vmatpush1.xpose.msra.mxu0 0.0
  %3119 = vmatprep.subr.mxu0 0.0
  %3120 = vmatpush1.xpose.msra.mxu0 0.0
  %3121 = vmatprep.subr.mxu0 0.0
  %3122 = vmatpush1.xpose.msra.mxu0 0.0
  %3123 = vmatprep.subr.mxu0 0.0
  %3124 = vmatpush1.xpose.msra.mxu0 0.0
  %3125 = vmatprep.subr.mxu0 0.0
  %3126 = vmatpush1.xpose.msra.mxu0 0.0
  %3127 = vmatprep.subr.mxu0 0.0
  %3128 = vmatpush1.xpose.msra.mxu0 0.0
  %3129 = vmatprep.subr.mxu0 0.0
  %3130 = vmatpush1.xpose.msra.mxu0 0.0
  %3131 = vmatprep.subr.mxu0 0.0
  %3132 = vmatpush1.xpose.msra.mxu0 0.0
  %3133 = vmatprep.subr.mxu0 0.0
  %3134 = vmatpush1.xpose.msra.mxu0 0.0
  %3135 = vmatprep.mubr.f32.mxu0 0.0
  %3136 = vmatmul.mubr.f32.gmra.mrb[0].mxu0 %v3067
  %v3137 = vpop.f32.mrb[0].mxu0
  %v3138 = vadd.f32 %v74, %v3137
  %v3139 = vpop.f32.mrb[0].mxu0
  %3140 = vdwg.mxu0
  %3141 = vrot.lane.b32.xlu0 %v2050, 104
  %v3142 = vpop.permute.xlu0 %3141
  %3143 = vrot.lane.b32.xlu0 %v2050, 72
  %v3144 = vpop.permute.xlu0 %3143
  %v3145 = vsel %vm222, %v3142, 0
  %v3147 = vsel %vm222, %v3144, 0
  %3149 = vmatprep.subr.mxu0 0.0
  %3150 = vmatpush1.xpose.msra.mxu0 %v3147
  %3151 = vmatprep.subr.mxu0 0.0
  %3152 = vmatpush1.xpose.msra.mxu0 0.0
  %3153 = vmatprep.subr.mxu0 0.0
  %3154 = vmatpush1.xpose.msra.mxu0 0.0
  %3155 = vmatprep.subr.mxu0 0.0
  %3156 = vmatpush1.xpose.msra.mxu0 0.0
  %3157 = vmatprep.subr.mxu0 0.0
  %3158 = vmatpush1.xpose.msra.mxu0 0.0
  %3159 = vmatprep.subr.mxu0 0.0
  %3160 = vmatpush1.xpose.msra.mxu0 0.0
  %3161 = vmatprep.subr.mxu0 0.0
  %3162 = vmatpush1.xpose.msra.mxu0 0.0
  %3163 = vmatprep.subr.mxu0 0.0
  %3164 = vmatpush1.xpose.msra.mxu0 0.0
  %3165 = vmatprep.subr.mxu0 0.0
  %3166 = vmatpush1.xpose.msra.mxu0 0.0
  %3167 = vmatprep.subr.mxu0 0.0
  %3168 = vmatpush1.xpose.msra.mxu0 0.0
  %3169 = vmatprep.subr.mxu0 0.0
  %3170 = vmatpush1.xpose.msra.mxu0 0.0
  %3171 = vmatprep.subr.mxu0 0.0
  %3172 = vmatpush1.xpose.msra.mxu0 0.0
  %3173 = vmatprep.subr.mxu0 0.0
  %3174 = vmatpush1.xpose.msra.mxu0 0.0
  %3175 = vmatprep.subr.mxu0 0.0
  %3176 = vmatpush1.xpose.msra.mxu0 0.0
  %3177 = vmatprep.subr.mxu0 0.0
  %3178 = vmatpush1.xpose.msra.mxu0 0.0
  %3179 = vmatprep.subr.mxu0 0.0
  %3180 = vmatpush1.xpose.msra.mxu0 0.0
  %3181 = vmatprep.subr.mxu0 0.0
  %3182 = vmatpush1.xpose.msra.mxu0 0.0
  %3183 = vmatprep.subr.mxu0 0.0
  %3184 = vmatpush1.xpose.msra.mxu0 0.0
  %3185 = vmatprep.subr.mxu0 0.0
  %3186 = vmatpush1.xpose.msra.mxu0 0.0
  %3187 = vmatprep.subr.mxu0 0.0
  %3188 = vmatpush1.xpose.msra.mxu0 0.0
  %3189 = vmatprep.subr.mxu0 0.0
  %3190 = vmatpush1.xpose.msra.mxu0 0.0
  %3191 = vmatprep.subr.mxu0 0.0
  %3192 = vmatpush1.xpose.msra.mxu0 0.0
  %3193 = vmatprep.subr.mxu0 0.0
  %3194 = vmatpush1.xpose.msra.mxu0 0.0
  %3195 = vmatprep.subr.mxu0 0.0
  %3196 = vmatpush1.xpose.msra.mxu0 0.0
  %3197 = vmatprep.subr.mxu0 0.0
  %3198 = vmatpush1.xpose.msra.mxu0 0.0
  %3199 = vmatprep.subr.mxu0 0.0
  %3200 = vmatpush1.xpose.msra.mxu0 0.0
  %3201 = vmatprep.subr.mxu0 0.0
  %3202 = vmatpush1.xpose.msra.mxu0 0.0
  %3203 = vmatprep.subr.mxu0 0.0
  %3204 = vmatpush1.xpose.msra.mxu0 0.0
  %3205 = vmatprep.subr.mxu0 0.0
  %3206 = vmatpush1.xpose.msra.mxu0 0.0
  %3207 = vmatprep.subr.mxu0 0.0
  %3208 = vmatpush1.xpose.msra.mxu0 0.0
  %3209 = vmatprep.subr.mxu0 0.0
  %3210 = vmatpush1.xpose.msra.mxu0 0.0
  %3211 = vmatprep.subr.mxu0 0.0
  %3212 = vmatpush1.xpose.msra.mxu0 0.0
  %3213 = vmatprep.mubr.f32.mxu0 0.0
  %3214 = vmatmul.mubr.f32.gmra.mrb[0].mxu0 %v3145
  %v3215 = vpop.f32.mrb[0].mxu0
  %v3216 = vadd.f32 %v78, %v3215
  %v3217 = vpop.f32.mrb[0].mxu0
  %3218 = vdwg.mxu0
  %v3219 = vsel %vm222, %v3138, -inf
  %3220 = vmax.xlane.f32.xlu0 %v3219
  %v3221 = vpop.xlane.xlu0 %3220
  %v3222 = vsel %vm222, %v3216, -inf
  %3223 = vmax.xlane.f32.xlu0 %v3222
  %v3224 = vpop.xlane.xlu0 %3223
  %v3225 = vsub.f32 %v3138, %v3221
  %v3226 = vsub.f32 %v3216, %v3224
  %v3227 = vmul.f32 %v3225, 1.442695
  %v3228 = vpow.pop %v3227
  %v3229 = vmul.f32 %v3226, 1.442695
  %v3230 = vpow.pop %v3229
  %v3231 = vsel %vm222, %v3228, 0.0
  %3232 = vadd.xlane.f32.xlu0 %v3231
  %v3233 = vpop.xlane.xlu0 %3232
  %v3234 = vsel %vm222, %v3230, 0.0
  %3235 = vadd.xlane.f32.xlu0 %v3234
  %v3236 = vpop.xlane.xlu0 %3235
  %v3237 = vrcp.pop %v3233
  %v3238 = vmul.f32 %v3228, %v3237
  %v3239 = vrcp.pop %v3236
  %v3240 = vmul.f32 %v3230, %v3239
  %3241 = vrot.lane.b32.xlu0 %v2045, 40
  %v3242 = vpop.permute.xlu0 %3241
  %v3245 = vsel %vm222, %v3238, 0
  %3247 = vmatprep.subr.mxu0 0.0
  %3248 = vmatpush1.msra.mxu0 %v3242
  %3249 = vmatprep.subr.mxu0 0.0
  %3250 = vmatpush1.msra.mxu0 0.0
  %3251 = vmatprep.subr.mxu0 0.0
  %3252 = vmatpush1.msra.mxu0 0.0
  %3253 = vmatprep.subr.mxu0 0.0
  %3254 = vmatpush1.msra.mxu0 0.0
  %3255 = vmatprep.subr.mxu0 0.0
  %3256 = vmatpush1.msra.mxu0 0.0
  %3257 = vmatprep.subr.mxu0 0.0
  %3258 = vmatpush1.msra.mxu0 0.0
  %3259 = vmatprep.subr.mxu0 0.0
  %3260 = vmatpush1.msra.mxu0 0.0
  %3261 = vmatprep.subr.mxu0 0.0
  %3262 = vmatpush1.msra.mxu0 0.0
  %3263 = vmatprep.subr.mxu0 0.0
  %3264 = vmatpush1.msra.mxu0 0.0
  %3265 = vmatprep.subr.mxu0 0.0
  %3266 = vmatpush1.msra.mxu0 0.0
  %3267 = vmatprep.subr.mxu0 0.0
  %3268 = vmatpush1.msra.mxu0 0.0
  %3269 = vmatprep.subr.mxu0 0.0
  %3270 = vmatpush1.msra.mxu0 0.0
  %3271 = vmatprep.subr.mxu0 0.0
  %3272 = vmatpush1.msra.mxu0 0.0
  %3273 = vmatprep.subr.mxu0 0.0
  %3274 = vmatpush1.msra.mxu0 0.0
  %3275 = vmatprep.subr.mxu0 0.0
  %3276 = vmatpush1.msra.mxu0 0.0
  %3277 = vmatprep.subr.mxu0 0.0
  %3278 = vmatpush1.msra.mxu0 0.0
  %3279 = vmatprep.subr.mxu0 0.0
  %3280 = vmatpush1.msra.mxu0 0.0
  %3281 = vmatprep.subr.mxu0 0.0
  %3282 = vmatpush1.msra.mxu0 0.0
  %3283 = vmatprep.subr.mxu0 0.0
  %3284 = vmatpush1.msra.mxu0 0.0
  %3285 = vmatprep.subr.mxu0 0.0
  %3286 = vmatpush1.msra.mxu0 0.0
  %3287 = vmatprep.subr.mxu0 0.0
  %3288 = vmatpush1.msra.mxu0 0.0
  %3289 = vmatprep.subr.mxu0 0.0
  %3290 = vmatpush1.msra.mxu0 0.0
  %3291 = vmatprep.subr.mxu0 0.0
  %3292 = vmatpush1.msra.mxu0 0.0
  %3293 = vmatprep.subr.mxu0 0.0
  %3294 = vmatpush1.msra.mxu0 0.0
  %3295 = vmatprep.subr.mxu0 0.0
  %3296 = vmatpush1.msra.mxu0 0.0
  %3297 = vmatprep.subr.mxu0 0.0
  %3298 = vmatpush1.msra.mxu0 0.0
  %3299 = vmatprep.subr.mxu0 0.0
  %3300 = vmatpush1.msra.mxu0 0.0
  %3301 = vmatprep.subr.mxu0 0.0
  %3302 = vmatpush1.msra.mxu0 0.0
  %3303 = vmatprep.subr.mxu0 0.0
  %3304 = vmatpush1.msra.mxu0 0.0
  %3305 = vmatprep.subr.mxu0 0.0
  %3306 = vmatpush1.msra.mxu0 0.0
  %3307 = vmatprep.subr.mxu0 0.0
  %3308 = vmatpush1.msra.mxu0 0.0
  %3309 = vmatprep.subr.mxu0 0.0
  %3310 = vmatpush1.msra.mxu0 0.0
  %3311 = vmatprep.mubr.f32.mxu0 0.0
  %3312 = vmatmul.mubr.f32.gmra.mrb[0].mxu0 %v3245
  %v3313 = vpop.f32.mrb[0].mxu0
  %v3314 = vadd.f32 0.0, %v3313
  %v3315 = vpop.f32.mrb[0].mxu0
  %3316 = vdwg.mxu0
  %3317 = vrot.lane.b32.xlu0 %v2050, 40
  %v3318 = vpop.permute.xlu0 %3317
  %v3321 = vsel %vm222, %v3240, 0
  %3323 = vmatprep.subr.mxu0 0.0
  %3324 = vmatpush1.msra.mxu0 %v3318
  %3325 = vmatprep.subr.mxu0 0.0
  %3326 = vmatpush1.msra.mxu0 0.0
  %3327 = vmatprep.subr.mxu0 0.0
  %3328 = vmatpush1.msra.mxu0 0.0
  %3329 = vmatprep.subr.mxu0 0.0
  %3330 = vmatpush1.msra.mxu0 0.0
  %3331 = vmatprep.subr.mxu0 0.0
  %3332 = vmatpush1.msra.mxu0 0.0
  %3333 = vmatprep.subr.mxu0 0.0
  %3334 = vmatpush1.msra.mxu0 0.0
  %3335 = vmatprep.subr.mxu0 0.0
  %3336 = vmatpush1.msra.mxu0 0.0
  %3337 = vmatprep.subr.mxu0 0.0
  %3338 = vmatpush1.msra.mxu0 0.0
  %3339 = vmatprep.subr.mxu0 0.0
  %3340 = vmatpush1.msra.mxu0 0.0
  %3341 = vmatprep.subr.mxu0 0.0
  %3342 = vmatpush1.msra.mxu0 0.0
  %3343 = vmatprep.subr.mxu0 0.0
  %3344 = vmatpush1.msra.mxu0 0.0
  %3345 = vmatprep.subr.mxu0 0.0
  %3346 = vmatpush1.msra.mxu0 0.0
  %3347 = vmatprep.subr.mxu0 0.0
  %3348 = vmatpush1.msra.mxu0 0.0
  %3349 = vmatprep.subr.mxu0 0.0
  %3350 = vmatpush1.msra.mxu0 0.0
  %3351 = vmatprep.subr.mxu0 0.0
  %3352 = vmatpush1.msra.mxu0 0.0
  %3353 = vmatprep.subr.mxu0 0.0
  %3354 = vmatpush1.msra.mxu0 0.0
  %3355 = vmatprep.subr.mxu0 0.0
  %3356 = vmatpush1.msra.mxu0 0.0
  %3357 = vmatprep.subr.mxu0 0.0
  %3358 = vmatpush1.msra.mxu0 0.0
  %3359 = vmatprep.subr.mxu0 0.0
  %3360 = vmatpush1.msra.mxu0 0.0
  %3361 = vmatprep.subr.mxu0 0.0
  %3362 = vmatpush1.msra.mxu0 0.0
  %3363 = vmatprep.subr.mxu0 0.0
  %3364 = vmatpush1.msra.mxu0 0.0
  %3365 = vmatprep.subr.mxu0 0.0
  %3366 = vmatpush1.msra.mxu0 0.0
  %3367 = vmatprep.subr.mxu0 0.0
  %3368 = vmatpush1.msra.mxu0 0.0
  %3369 = vmatprep.subr.mxu0 0.0
  %3370 = vmatpush1.msra.mxu0 0.0
  %3371 = vmatprep.subr.mxu0 0.0
  %3372 = vmatpush1.msra.mxu0 0.0
  %3373 = vmatprep.subr.mxu0 0.0
  %3374 = vmatpush1.msra.mxu0 0.0
  %3375 = vmatprep.subr.mxu0 0.0
  %3376 = vmatpush1.msra.mxu0 0.0
  %3377 = vmatprep.subr.mxu0 0.0
  %3378 = vmatpush1.msra.mxu0 0.0
  %3379 = vmatprep.subr.mxu0 0.0
  %3380 = vmatpush1.msra.mxu0 0.0
  %3381 = vmatprep.subr.mxu0 0.0
  %3382 = vmatpush1.msra.mxu0 0.0
  %3383 = vmatprep.subr.mxu0 0.0
  %3384 = vmatpush1.msra.mxu0 0.0
  %3385 = vmatprep.subr.mxu0 0.0
  %3386 = vmatpush1.msra.mxu0 0.0
  %3387 = vmatprep.mubr.f32.mxu0 0.0
  %3388 = vmatmul.mubr.f32.gmra.mrb[0].mxu0 %v3321
  %v3389 = vpop.f32.mrb[0].mxu0
  %v3390 = vadd.f32 0.0, %v3389
  %v3391 = vpop.f32.mrb[0].mxu0
  %3392 = vdwg.mxu0
  %3395 = vrot.lane.b32.xlu0 %v3314, 24
  %v3396 = vpop.permute.xlu0 %3395
  %3397 = vrot.lane.b32.xlu0 %v3390, 24
  %v3398 = vpop.permute.xlu0 %3397
  %3401 = vst.msk [vmem:[#allocation2] sm:$0xff] %vm1570, %v3396
  %3402 = vst.msk [vmem:[#allocation2 + $0x8] sm:$0xff] %vm1570, %v3398
  %v3403 = vld [vmem:[#allocation2] sm:$0xff]
  %v3404 = vld [vmem:[#allocation2 + $0x8] sm:$0xff]
  %s3405 = scalar_lea.vmem %s6, 32
  %v3406 = vld [vmem:[%s3405] sm:$0xff]
  %v3407 = vld [vmem:[%s3405 + $0x8] sm:$0xff]
  %v3408 = vld [vmem:[%s3405 + $0x10] sm:$0xff]
  %v3409 = vld [vmem:[%s3405 + $0x18] sm:$0xff]
  %s3410 = scalar_lea.vmem %s7, 1
  %v3411 = vld [vmem:[%s3410] sm:$0x1]
  %v3413 = vlaneseq
  %v3414 = vshrl.u32 %v3413, 7
  %v3415 = vsub.s32 0, %v3414
  %v3416 = vrot.slane %v3411, %v3415
  %v3419 = vsel %vm83, %v3403, 0
  %v3422 = vsel %vm83, %v3404, 0
  %3424 = vmatprep.subr.mxu0 0.0
  %3425 = vmatpush1.msra.mxu0 %v3406
  %3426 = vmatprep.subr.mxu0 0.0
  %3427 = vmatpush1.msra.mxu0 %v3407
  %3428 = vmatprep.subr.mxu0 0.0
  %3429 = vmatpush1.msra.mxu0 %v3408
  %3430 = vmatprep.subr.mxu0 0.0
  %3431 = vmatpush1.msra.mxu0 %v3409
  %3432 = vmatprep.subr.mxu0 0.0
  %3433 = vmatpush1.msra.mxu0 0.0
  %3434 = vmatprep.subr.mxu0 0.0
  %3435 = vmatpush1.msra.mxu0 0.0
  %3436 = vmatprep.subr.mxu0 0.0
  %3437 = vmatpush1.msra.mxu0 0.0
  %3438 = vmatprep.subr.mxu0 0.0
  %3439 = vmatpush1.msra.mxu0 0.0
  %3440 = vmatprep.subr.mxu0 0.0
  %3441 = vmatpush1.msra.mxu0 0.0
  %3442 = vmatprep.subr.mxu0 0.0
  %3443 = vmatpush1.msra.mxu0 0.0
  %3444 = vmatprep.subr.mxu0 0.0
  %3445 = vmatpush1.msra.mxu0 0.0
  %3446 = vmatprep.subr.mxu0 0.0
  %3447 = vmatpush1.msra.mxu0 0.0
  %3448 = vmatprep.subr.mxu0 0.0
  %3449 = vmatpush1.msra.mxu0 0.0
  %3450 = vmatprep.subr.mxu0 0.0
  %3451 = vmatpush1.msra.mxu0 0.0
  %3452 = vmatprep.subr.mxu0 0.0
  %3453 = vmatpush1.msra.mxu0 0.0
  %3454 = vmatprep.subr.mxu0 0.0
  %3455 = vmatpush1.msra.mxu0 0.0
  %3456 = vmatprep.subr.mxu0 0.0
  %3457 = vmatpush1.msra.mxu0 0.0
  %3458 = vmatprep.subr.mxu0 0.0
  %3459 = vmatpush1.msra.mxu0 0.0
  %3460 = vmatprep.subr.mxu0 0.0
  %3461 = vmatpush1.msra.mxu0 0.0
  %3462 = vmatprep.subr.mxu0 0.0
  %3463 = vmatpush1.msra.mxu0 0.0
  %3464 = vmatprep.subr.mxu0 0.0
  %3465 = vmatpush1.msra.mxu0 0.0
  %3466 = vmatprep.subr.mxu0 0.0
  %3467 = vmatpush1.msra.mxu0 0.0
  %3468 = vmatprep.subr.mxu0 0.0
  %3469 = vmatpush1.msra.mxu0 0.0
  %3470 = vmatprep.subr.mxu0 0.0
  %3471 = vmatpush1.msra.mxu0 0.0
  %3472 = vmatprep.subr.mxu0 0.0
  %3473 = vmatpush1.msra.mxu0 0.0
  %3474 = vmatprep.subr.mxu0 0.0
  %3475 = vmatpush1.msra.mxu0 0.0
  %3476 = vmatprep.subr.mxu0 0.0
  %3477 = vmatpush1.msra.mxu0 0.0
  %3478 = vmatprep.subr.mxu0 0.0
  %3479 = vmatpush1.msra.mxu0 0.0
  %3480 = vmatprep.subr.mxu0 0.0
  %3481 = vmatpush1.msra.mxu0 0.0
  %3482 = vmatprep.subr.mxu0 0.0
  %3483 = vmatpush1.msra.mxu0 0.0
  %3484 = vmatprep.subr.mxu0 0.0
  %3485 = vmatpush1.msra.mxu0 0.0
  %3486 = vmatprep.subr.mxu0 0.0
  %3487 = vmatpush1.msra.mxu0 0.0
  %3488 = vmatprep.mubr.f32.mxu0 0.0
  %3489 = vmatmul.mubr.f32.gmra.mrb[0].mxu0 %v3419
  %v3490 = vpop.f32.mrb[0].mxu0
  %v3491 = vadd.f32 %v3416, %v3490
  %v3492 = vpop.f32.mrb[0].mxu0
  %3493 = vmatprep.mubr.f32.mxu0 0.0
  %3494 = vmatmul.mubr.f32.gmra.mrb[0].mxu0 %v3422
  %v3495 = vpop.f32.mrb[0].mxu0
  %v3496 = vadd.f32 %v3416, %v3495
  %v3497 = vpop.f32.mrb[0].mxu0
  %3498 = vdwg.mxu0
  %v3499 = vadd.f32 %v3491, %v1957
  %v3500 = vadd.f32 %v3496, %v1958
  %s3501 = scalar_lea.vmem %s8, 1
  %v3502 = vld [vmem:[%s3501] sm:$0x1]
  %s3503 = scalar_lea.vmem %s9, 1
  %v3504 = vld [vmem:[%s3503] sm:$0x1]
  %v3505 = vsel %vm83, %v3499, 0.0
  %3506 = vadd.xlane.f32.xlu0 %v3505
  %v3507 = vpop.xlane.xlu0 %3506
  %v3508 = vsel %vm83, %v3500, 0.0
  %3509 = vadd.xlane.f32.xlu0 %v3508
  %v3510 = vpop.xlane.xlu0 %3509
  %v3511 = vmul.f32 %v3507, %v90
  %v3512 = vmul.f32 %v3510, %v90
  %v3513 = vsub.f32 %v3499, %v3511
  %v3514 = vsub.f32 %v3500, %v3512
  %v3515 = vmul.f32 %v3513, %v3513
  %v3516 = vmul.f32 %v3514, %v3514
  %v3517 = vsel %vm83, %v3515, 0.0
  %3518 = vadd.xlane.f32.xlu0 %v3517
  %v3519 = vpop.xlane.xlu0 %3518
  %v3520 = vsel %vm83, %v3516, 0.0
  %3521 = vadd.xlane.f32.xlu0 %v3520
  %v3522 = vpop.xlane.xlu0 %3521
  %v3523 = vmul.f32 %v3519, %v90
  %v3524 = vmul.f32 %v3522, %v90
  %v3525 = vadd.f32 %v3523, 1e-12
  %v3526 = vadd.f32 %v3524, 1e-12
  %v3527 = vrsqrt.pop %v3525
  %v3528 = vrsqrt.pop %v3526
  %v3529 = vmul.f32 %v3513, %v3527
  %v3530 = vmul.f32 %v3514, %v3528
  %v3532 = vlaneseq
  %v3533 = vshrl.u32 %v3532, 7
  %v3534 = vsub.s32 0, %v3533
  %v3535 = vrot.slane %v3502, %v3534
  %v3537 = vmul.f32 %v3529, %v3535
  %v3538 = vmul.f32 %v3530, %v3535
  %v3540 = vlaneseq
  %v3541 = vshrl.u32 %v3540, 7
  %v3542 = vsub.s32 0, %v3541
  %v3543 = vrot.slane %v3504, %v3542
  %v3545 = vadd.f32 %v3537, %v3543
  %v3546 = vadd.f32 %v3538, %v3543
  %s3547 = scalar_lea.vmem %s10, 32
  %v3548 = vld [vmem:[%s3547] sm:$0xff]
  %v3549 = vld [vmem:[%s3547 + $0x8] sm:$0xff]
  %v3550 = vld [vmem:[%s3547 + $0x10] sm:$0xff]
  %v3551 = vld [vmem:[%s3547 + $0x18] sm:$0xff]
  %s3552 = scalar_lea.vmem %s11, 1
  %v3553 = vld [vmem:[%s3552] sm:$0x1]
  %v3555 = vlaneseq
  %v3556 = vshrl.u32 %v3555, 7
  %v3557 = vsub.s32 0, %v3556
  %v3558 = vrot.slane %v3553, %v3557
  %v3561 = vsel %vm83, %v3545, 0
  %v3564 = vsel %vm83, %v3546, 0
  %3566 = vmatprep.subr.mxu0 0.0
  %3567 = vmatpush1.msra.mxu0 %v3548
  %3568 = vmatprep.subr.mxu0 0.0
  %3569 = vmatpush1.msra.mxu0 %v3549
  %3570 = vmatprep.subr.mxu0 0.0
  %3571 = vmatpush1.msra.mxu0 %v3550
  %3572 = vmatprep.subr.mxu0 0.0
  %3573 = vmatpush1.msra.mxu0 %v3551
  %3574 = vmatprep.subr.mxu0 0.0
  %3575 = vmatpush1.msra.mxu0 0.0
  %3576 = vmatprep.subr.mxu0 0.0
  %3577 = vmatpush1.msra.mxu0 0.0
  %3578 = vmatprep.subr.mxu0 0.0
  %3579 = vmatpush1.msra.mxu0 0.0
  %3580 = vmatprep.subr.mxu0 0.0
  %3581 = vmatpush1.msra.mxu0 0.0
  %3582 = vmatprep.subr.mxu0 0.0
  %3583 = vmatpush1.msra.mxu0 0.0
  %3584 = vmatprep.subr.mxu0 0.0
  %3585 = vmatpush1.msra.mxu0 0.0
  %3586 = vmatprep.subr.mxu0 0.0
  %3587 = vmatpush1.msra.mxu0 0.0
  %3588 = vmatprep.subr.mxu0 0.0
  %3589 = vmatpush1.msra.mxu0 0.0
  %3590 = vmatprep.subr.mxu0 0.0
  %3591 = vmatpush1.msra.mxu0 0.0
  %3592 = vmatprep.subr.mxu0 0.0
  %3593 = vmatpush1.msra.mxu0 0.0
  %3594 = vmatprep.subr.mxu0 0.0
  %3595 = vmatpush1.msra.mxu0 0.0
  %3596 = vmatprep.subr.mxu0 0.0
  %3597 = vmatpush1.msra.mxu0 0.0
  %3598 = vmatprep.subr.mxu0 0.0
  %3599 = vmatpush1.msra.mxu0 0.0
  %3600 = vmatprep.subr.mxu0 0.0
  %3601 = vmatpush1.msra.mxu0 0.0
  %3602 = vmatprep.subr.mxu0 0.0
  %3603 = vmatpush1.msra.mxu0 0.0
  %3604 = vmatprep.subr.mxu0 0.0
  %3605 = vmatpush1.msra.mxu0 0.0
  %3606 = vmatprep.subr.mxu0 0.0
  %3607 = vmatpush1.msra.mxu0 0.0
  %3608 = vmatprep.subr.mxu0 0.0
  %3609 = vmatpush1.msra.mxu0 0.0
  %3610 = vmatprep.subr.mxu0 0.0
  %3611 = vmatpush1.msra.mxu0 0.0
  %3612 = vmatprep.subr.mxu0 0.0
  %3613 = vmatpush1.msra.mxu0 0.0
  %3614 = vmatprep.subr.mxu0 0.0
  %3615 = vmatpush1.msra.mxu0 0.0
  %3616 = vmatprep.subr.mxu0 0.0
  %3617 = vmatpush1.msra.mxu0 0.0
  %3618 = vmatprep.subr.mxu0 0.0
  %3619 = vmatpush1.msra.mxu0 0.0
  %3620 = vmatprep.subr.mxu0 0.0
  %3621 = vmatpush1.msra.mxu0 0.0
  %3622 = vmatprep.subr.mxu0 0.0
  %3623 = vmatpush1.msra.mxu0 0.0
  %3624 = vmatprep.subr.mxu0 0.0
  %3625 = vmatpush1.msra.mxu0 0.0
  %3626 = vmatprep.subr.mxu0 0.0
  %3627 = vmatpush1.msra.mxu0 0.0
  %3628 = vmatprep.subr.mxu0 0.0
  %3629 = vmatpush1.msra.mxu0 0.0
  %3630 = vmatprep.mubr.f32.mxu0 0.0
  %3631 = vmatmul.mubr.f32.gmra.mrb[0].mxu0 %v3561
  %v3632 = vpop.f32.mrb[0].mxu0
  %v3633 = vadd.f32 %v3558, %v3632
  %v3634 = vpop.f32.mrb[0].mxu0
  %3635 = vmatprep.mubr.f32.mxu0 0.0
  %3636 = vmatmul.mubr.f32.gmra.mrb[0].mxu0 %v3564
  %v3637 = vpop.f32.mrb[0].mxu0
  %v3638 = vadd.f32 %v3558, %v3637
  %v3639 = vpop.f32.mrb[0].mxu0
  %3640 = vdwg.mxu0
  %v3641 = vmul.f32 %v3633, 0.5
  %v3642 = vmul.f32 %v3638, 0.5
  %v3643 = vmul.f32 %v3633, 0.70710677
  %v3644 = vmul.f32 %v3638, 0.70710677
  %v3645 = verf.f32.pop %v3643
  %v3646 = verf.f32.pop %v3644
  %v3647 = vadd.f32 %v3645, 1.0
  %v3648 = vadd.f32 %v3646, 1.0
  %v3649 = vmul.f32 %v3641, %v3647
  %v3650 = vmul.f32 %v3642, %v3648
  %s3651 = scalar_lea.vmem %s12, 128
  %v3652 = vld [vmem:[%s3651] sm:$0xff]
  %v3653 = vld [vmem:[%s3651 + $0x8] sm:$0xff]
  %v3654 = vld [vmem:[%s3651 + $0x10] sm:$0xff]
  %v3655 = vld [vmem:[%s3651 + $0x18] sm:$0xff]
  %v3656 = vld [vmem:[%s3651 + $0x20] sm:$0xff]
  %v3657 = vld [vmem:[%s3651 + $0x28] sm:$0xff]
  %v3658 = vld [vmem:[%s3651 + $0x30] sm:$0xff]
  %v3659 = vld [vmem:[%s3651 + $0x38] sm:$0xff]
  %v3660 = vld [vmem:[%s3651 + $0x40] sm:$0xff]
  %v3661 = vld [vmem:[%s3651 + $0x48] sm:$0xff]
  %v3662 = vld [vmem:[%s3651 + $0x50] sm:$0xff]
  %v3663 = vld [vmem:[%s3651 + $0x58] sm:$0xff]
  %v3664 = vld [vmem:[%s3651 + $0x60] sm:$0xff]
  %v3665 = vld [vmem:[%s3651 + $0x68] sm:$0xff]
  %v3666 = vld [vmem:[%s3651 + $0x70] sm:$0xff]
  %v3667 = vld [vmem:[%s3651 + $0x78] sm:$0xff]
  %s3668 = scalar_lea.vmem %s13, 1
  %v3669 = vld [vmem:[%s3668] sm:$0x1]
  %v3671 = vlaneseq
  %v3672 = vshrl.u32 %v3671, 7
  %v3673 = vsub.s32 0, %v3672
  %v3674 = vrot.slane %v3669, %v3673
  %3676 = vmatprep.subr.mxu0 0.0
  %3677 = vmatpush1.msra.mxu0 %v3652
  %3678 = vmatprep.subr.mxu0 0.0
  %3679 = vmatpush1.msra.mxu0 %v3653
  %3680 = vmatprep.subr.mxu0 0.0
  %3681 = vmatpush1.msra.mxu0 %v3654
  %3682 = vmatprep.subr.mxu0 0.0
  %3683 = vmatpush1.msra.mxu0 %v3655
  %3684 = vmatprep.subr.mxu0 0.0
  %3685 = vmatpush1.msra.mxu0 %v3656
  %3686 = vmatprep.subr.mxu0 0.0
  %3687 = vmatpush1.msra.mxu0 %v3657
  %3688 = vmatprep.subr.mxu0 0.0
  %3689 = vmatpush1.msra.mxu0 %v3658
  %3690 = vmatprep.subr.mxu0 0.0
  %3691 = vmatpush1.msra.mxu0 %v3659
  %3692 = vmatprep.subr.mxu0 0.0
  %3693 = vmatpush1.msra.mxu0 %v3660
  %3694 = vmatprep.subr.mxu0 0.0
  %3695 = vmatpush1.msra.mxu0 %v3661
  %3696 = vmatprep.subr.mxu0 0.0
  %3697 = vmatpush1.msra.mxu0 %v3662
  %3698 = vmatprep.subr.mxu0 0.0
  %3699 = vmatpush1.msra.mxu0 %v3663
  %3700 = vmatprep.subr.mxu0 0.0
  %3701 = vmatpush1.msra.mxu0 %v3664
  %3702 = vmatprep.subr.mxu0 0.0
  %3703 = vmatpush1.msra.mxu0 %v3665
  %3704 = vmatprep.subr.mxu0 0.0
  %3705 = vmatpush1.msra.mxu0 %v3666
  %3706 = vmatprep.subr.mxu0 0.0
  %3707 = vmatpush1.msra.mxu0 %v3667
  %3708 = vmatprep.subr.mxu0 0.0
  %3709 = vmatpush1.msra.mxu0 0.0
  %3710 = vmatprep.subr.mxu0 0.0
  %3711 = vmatpush1.msra.mxu0 0.0
  %3712 = vmatprep.subr.mxu0 0.0
  %3713 = vmatpush1.msra.mxu0 0.0
  %3714 = vmatprep.subr.mxu0 0.0
  %3715 = vmatpush1.msra.mxu0 0.0
  %3716 = vmatprep.subr.mxu0 0.0
  %3717 = vmatpush1.msra.mxu0 0.0
  %3718 = vmatprep.subr.mxu0 0.0
  %3719 = vmatpush1.msra.mxu0 0.0
  %3720 = vmatprep.subr.mxu0 0.0
  %3721 = vmatpush1.msra.mxu0 0.0
  %3722 = vmatprep.subr.mxu0 0.0
  %3723 = vmatpush1.msra.mxu0 0.0
  %3724 = vmatprep.subr.mxu0 0.0
  %3725 = vmatpush1.msra.mxu0 0.0
  %3726 = vmatprep.subr.mxu0 0.0
  %3727 = vmatpush1.msra.mxu0 0.0
  %3728 = vmatprep.subr.mxu0 0.0
  %3729 = vmatpush1.msra.mxu0 0.0
  %3730 = vmatprep.subr.mxu0 0.0
  %3731 = vmatpush1.msra.mxu0 0.0
  %3732 = vmatprep.subr.mxu0 0.0
  %3733 = vmatpush1.msra.mxu0 0.0
  %3734 = vmatprep.subr.mxu0 0.0
  %3735 = vmatpush1.msra.mxu0 0.0
  %3736 = vmatprep.subr.mxu0 0.0
  %3737 = vmatpush1.msra.mxu0 0.0
  %3738 = vmatprep.subr.mxu0 0.0
  %3739 = vmatpush1.msra.mxu0 0.0
  %3740 = vmatprep.mubr.f32.mxu0 0.0
  %3741 = vmatmul.mubr.f32.gmra.mrb[0].mxu0 %v3649
  %v3742 = vpop.f32.mrb[0].mxu0
  %v3743 = vadd.f32 %v3674, %v3742
  %v3744 = vpop.f32.mrb[0].mxu0
  %3745 = vmatprep.mubr.f32.mxu0 0.0
  %3746 = vmatmul.mubr.f32.gmra.mrb[0].mxu0 %v3650
  %v3747 = vpop.f32.mrb[0].mxu0
  %v3748 = vadd.f32 %v3674, %v3747
  %v3749 = vpop.f32.mrb[0].mxu0
  %3750 = vdwg.mxu0
  %v3751 = vadd.f32 %v3743, %v3545
  %v3752 = vadd.f32 %v3748, %v3546
  %s3753 = scalar_lea.vmem %s14, 1
  %v3754 = vld [vmem:[%s3753] sm:$0x1]
  %s3755 = scalar_lea.vmem %s15, 1
  %v3756 = vld [vmem:[%s3755] sm:$0x1]
  %v3757 = vsel %vm83, %v3751, 0.0
  %3758 = vadd.xlane.f32.xlu0 %v3757
  %v3759 = vpop.xlane.xlu0 %3758
  %v3760 = vsel %vm83, %v3752, 0.0
  %3761 = vadd.xlane.f32.xlu0 %v3760
  %v3762 = vpop.xlane.xlu0 %3761
  %v3763 = vmul.f32 %v3759, %v90
  %v3764 = vmul.f32 %v3762, %v90
  %v3765 = vsub.f32 %v3751, %v3763
  %v3766 = vsub.f32 %v3752, %v3764
  %v3767 = vmul.f32 %v3765, %v3765
  %v3768 = vmul.f32 %v3766, %v3766
  %v3769 = vsel %vm83, %v3767, 0.0
  %3770 = vadd.xlane.f32.xlu0 %v3769
  %v3771 = vpop.xlane.xlu0 %3770
  %v3772 = vsel %vm83, %v3768, 0.0
  %3773 = vadd.xlane.f32.xlu0 %v3772
  %v3774 = vpop.xlane.xlu0 %3773
  %v3775 = vmul.f32 %v3771, %v90
  %v3776 = vmul.f32 %v3774, %v90
  %v3777 = vadd.f32 %v3775, 1e-12
  %v3778 = vadd.f32 %v3776, 1e-12
  %v3779 = vrsqrt.pop %v3777
  %v3780 = vrsqrt.pop %v3778
  %v3781 = vmul.f32 %v3765, %v3779
  %v3782 = vmul.f32 %v3766, %v3780
  %v3784 = vlaneseq
  %v3785 = vshrl.u32 %v3784, 7
  %v3786 = vsub.s32 0, %v3785
  %v3787 = vrot.slane %v3754, %v3786
  %v3789 = vmul.f32 %v3781, %v3787
  %v3790 = vmul.f32 %v3782, %v3787
  %v3792 = vlaneseq
  %v3793 = vshrl.u32 %v3792, 7
  %v3794 = vsub.s32 0, %v3793
  %v3795 = vrot.slane %v3756, %v3794
  %v3797 = vadd.f32 %v3789, %v3795
  %v3798 = vadd.f32 %v3790, %v3795
  %v3799 = vld [vmem:[%s16] sm:$0xff]
  %v3800 = vld [vmem:[%s16 + $0x8] sm:$0xff]
  %v3801 = vld [vmem:[%s16 + $0x10] sm:$0xff]
  %v3802 = vld [vmem:[%s16 + $0x18] sm:$0xff]
  %v3803 = vld [vmem:[%s17] sm:$0x1]
  %v3805 = vlaneseq
  %v3806 = vshrl.u32 %v3805, 7
  %v3807 = vsub.s32 0, %v3806
  %v3808 = vrot.slane %v3803, %v3807
  %v3812 = vrot.slane %v3798, 7
  %vm3813 = vcmask 1041409
  %v3814 = vsel %vm3813, %v3812, %v3797
  %v3815 = vsel %vm83, %v3814, 0
  %3817 = vmatprep.subr.mxu0 0.0
  %3818 = vmatpush1.msra.mxu0 %v3799
  %3819 = vmatprep.subr.mxu0 0.0
  %3820 = vmatpush1.msra.mxu0 %v3800
  %3821 = vmatprep.subr.mxu0 0.0
  %3822 = vmatpush1.msra.mxu0 %v3801
  %3823 = vmatprep.subr.mxu0 0.0
  %3824 = vmatpush1.msra.mxu0 %v3802
  %3825 = vmatprep.subr.mxu0 0.0
  %3826 = vmatpush1.msra.mxu0 0.0
  %3827 = vmatprep.subr.mxu0 0.0
  %3828 = vmatpush1.msra.mxu0 0.0
  %3829 = vmatprep.subr.mxu0 0.0
  %3830 = vmatpush1.msra.mxu0 0.0
  %3831 = vmatprep.subr.mxu0 0.0
  %3832 = vmatpush1.msra.mxu0 0.0
  %3833 = vmatprep.subr.mxu0 0.0
  %3834 = vmatpush1.msra.mxu0 0.0
  %3835 = vmatprep.subr.mxu0 0.0
  %3836 = vmatpush1.msra.mxu0 0.0
  %3837 = vmatprep.subr.mxu0 0.0
  %3838 = vmatpush1.msra.mxu0 0.0
  %3839 = vmatprep.subr.mxu0 0.0
  %3840 = vmatpush1.msra.mxu0 0.0
  %3841 = vmatprep.subr.mxu0 0.0
  %3842 = vmatpush1.msra.mxu0 0.0
  %3843 = vmatprep.subr.mxu0 0.0
  %3844 = vmatpush1.msra.mxu0 0.0
  %3845 = vmatprep.subr.mxu0 0.0
  %3846 = vmatpush1.msra.mxu0 0.0
  %3847 = vmatprep.subr.mxu0 0.0
  %3848 = vmatpush1.msra.mxu0 0.0
  %3849 = vmatprep.subr.mxu0 0.0
  %3850 = vmatpush1.msra.mxu0 0.0
  %3851 = vmatprep.subr.mxu0 0.0
  %3852 = vmatpush1.msra.mxu0 0.0
  %3853 = vmatprep.subr.mxu0 0.0
  %3854 = vmatpush1.msra.mxu0 0.0
  %3855 = vmatprep.subr.mxu0 0.0
  %3856 = vmatpush1.msra.mxu0 0.0
  %3857 = vmatprep.subr.mxu0 0.0
  %3858 = vmatpush1.msra.mxu0 0.0
  %3859 = vmatprep.subr.mxu0 0.0
  %3860 = vmatpush1.msra.mxu0 0.0
  %3861 = vmatprep.subr.mxu0 0.0
  %3862 = vmatpush1.msra.mxu0 0.0
  %3863 = vmatprep.subr.mxu0 0.0
  %3864 = vmatpush1.msra.mxu0 0.0
  %3865 = vmatprep.subr.mxu0 0.0
  %3866 = vmatpush1.msra.mxu0 0.0
  %3867 = vmatprep.subr.mxu0 0.0
  %3868 = vmatpush1.msra.mxu0 0.0
  %3869 = vmatprep.subr.mxu0 0.0
  %3870 = vmatpush1.msra.mxu0 0.0
  %3871 = vmatprep.subr.mxu0 0.0
  %3872 = vmatpush1.msra.mxu0 0.0
  %3873 = vmatprep.subr.mxu0 0.0
  %3874 = vmatpush1.msra.mxu0 0.0
  %3875 = vmatprep.subr.mxu0 0.0
  %3876 = vmatpush1.msra.mxu0 0.0
  %3877 = vmatprep.subr.mxu0 0.0
  %3878 = vmatpush1.msra.mxu0 0.0
  %3879 = vmatprep.subr.mxu0 0.0
  %3880 = vmatpush1.msra.mxu0 0.0
  %3881 = vmatprep.mubr.f32.mxu0 0.0
  %3882 = vmatmul.mubr.f32.gmra.mrb[0].mxu0 %v3815
  %v3883 = vpop.f32.mrb[0].mxu0
  %v3884 = vadd.f32 %v3808, %v3883
  %v3885 = vpop.f32.mrb[0].mxu0
  %3886 = vdwg.mxu0
  %v3887 = vmax.f32 %v3884, 0.0
  %v3888 = vld [vmem:[%s18] sm:$0xff]
  %v3889 = vld [vmem:[%s18 + $0x8] sm:$0xff]
  %v3890 = vld [vmem:[%s18 + $0x10] sm:$0xff]
  %v3891 = vld [vmem:[%s18 + $0x18] sm:$0xff]
  %v3892 = vld [vmem:[%s19] sm:$0x1]
  %v3894 = vlaneseq
  %v3895 = vshrl.u32 %v3894, 7
  %v3896 = vsub.s32 0, %v3895
  %v3897 = vrot.slane %v3892, %v3896
  %v3900 = vsel %vm83, %v3887, 0
  %3902 = vmatprep.subr.mxu0 0.0
  %3903 = vmatpush1.msra.mxu0 %v3888
  %3904 = vmatprep.subr.mxu0 0.0
  %3905 = vmatpush1.msra.mxu0 %v3889
  %3906 = vmatprep.subr.mxu0 0.0
  %3907 = vmatpush1.msra.mxu0 %v3890
  %3908 = vmatprep.subr.mxu0 0.0
  %3909 = vmatpush1.msra.mxu0 %v3891
  %3910 = vmatprep.subr.mxu0 0.0
  %3911 = vmatpush1.msra.mxu0 0.0
  %3912 = vmatprep.subr.mxu0 0.0
  %3913 = vmatpush1.msra.mxu0 0.0
  %3914 = vmatprep.subr.mxu0 0.0
  %3915 = vmatpush1.msra.mxu0 0.0
  %3916 = vmatprep.subr.mxu0 0.0
  %3917 = vmatpush1.msra.mxu0 0.0
  %3918 = vmatprep.subr.mxu0 0.0
  %3919 = vmatpush1.msra.mxu0 0.0
  %3920 = vmatprep.subr.mxu0 0.0
  %3921 = vmatpush1.msra.mxu0 0.0
  %3922 = vmatprep.subr.mxu0 0.0
  %3923 = vmatpush1.msra.mxu0 0.0
  %3924 = vmatprep.subr.mxu0 0.0
  %3925 = vmatpush1.msra.mxu0 0.0
  %3926 = vmatprep.subr.mxu0 0.0
  %3927 = vmatpush1.msra.mxu0 0.0
  %3928 = vmatprep.subr.mxu0 0.0
  %3929 = vmatpush1.msra.mxu0 0.0
  %3930 = vmatprep.subr.mxu0 0.0
  %3931 = vmatpush1.msra.mxu0 0.0
  %3932 = vmatprep.subr.mxu0 0.0
  %3933 = vmatpush1.msra.mxu0 0.0
  %3934 = vmatprep.subr.mxu0 0.0
  %3935 = vmatpush1.msra.mxu0 0.0
  %3936 = vmatprep.subr.mxu0 0.0
  %3937 = vmatpush1.msra.mxu0 0.0
  %3938 = vmatprep.subr.mxu0 0.0
  %3939 = vmatpush1.msra.mxu0 0.0
  %3940 = vmatprep.subr.mxu0 0.0
  %3941 = vmatpush1.msra.mxu0 0.0
  %3942 = vmatprep.subr.mxu0 0.0
  %3943 = vmatpush1.msra.mxu0 0.0
  %3944 = vmatprep.subr.mxu0 0.0
  %3945 = vmatpush1.msra.mxu0 0.0
  %3946 = vmatprep.subr.mxu0 0.0
  %3947 = vmatpush1.msra.mxu0 0.0
  %3948 = vmatprep.subr.mxu0 0.0
  %3949 = vmatpush1.msra.mxu0 0.0
  %3950 = vmatprep.subr.mxu0 0.0
  %3951 = vmatpush1.msra.mxu0 0.0
  %3952 = vmatprep.subr.mxu0 0.0
  %3953 = vmatpush1.msra.mxu0 0.0
  %3954 = vmatprep.subr.mxu0 0.0
  %3955 = vmatpush1.msra.mxu0 0.0
  %3956 = vmatprep.subr.mxu0 0.0
  %3957 = vmatpush1.msra.mxu0 0.0
  %3958 = vmatprep.subr.mxu0 0.0
  %3959 = vmatpush1.msra.mxu0 0.0
  %3960 = vmatprep.subr.mxu0 0.0
  %3961 = vmatpush1.msra.mxu0 0.0
  %3962 = vmatprep.subr.mxu0 0.0
  %3963 = vmatpush1.msra.mxu0 0.0
  %3964 = vmatprep.subr.mxu0 0.0
  %3965 = vmatpush1.msra.mxu0 0.0
  %3966 = vmatprep.mubr.f32.mxu0 0.0
  %3967 = vmatmul.mubr.f32.gmra.mrb[0].mxu0 %v3900
  %v3968 = vpop.f32.mrb[0].mxu0
  %v3969 = vadd.f32 %v3897, %v3968
  %v3970 = vpop.f32.mrb[0].mxu0
  %3971 = vdwg.mxu0
  %vm3972 = vcmask 17408
  %3973 = vst.msk [vmem:[%s20] sm:$0x3] %vm3972, %v3969
  // Predicated region
  $region82: #{distilbert_sem_forward.1} parent=0 // pred_check
    _
  $region83: #{distilbert_sem_forward.1} parent=0 // pred_check_branch
    %3975 = sbr.rel (0) target = $region85
  $region84: #{distilbert_sem_forward.1} parent=0 // pred_region
    _
  $region85: #{distilbert_sem_forward.1} parent=0 // pred_fallthru
    _
  // Predicated region
  $region86: #{distilbert_sem_forward.1} parent=0 // pred_check
    _
  $region87: #{distilbert_sem_forward.1} parent=0 // pred_check_branch
    %3977 = sbr.rel (0) target = $region89
  $region88: #{distilbert_sem_forward.1} parent=0 // pred_region
    _
  $region89: #{distilbert_sem_forward.1} parent=0 // pred_fallthru
    _

</llo_original>
